<compile_context>
chip_gen: v7x
topology: tpu7x:2x2x1
jax: 0.10.0
libtpu: 0.0.40
codegen_flags: <defaults>
</compile_context>

<pallas_src>
import functools

import jax
import jax.numpy as jnp
from jax.experimental import pallas as pl
from jax.experimental.pallas import tpu as pltpu


def _round_up(x, m):
    return (x + m - 1) // m * m


def _pick_tile(dim, candidates):
    for c in candidates:
        if c <= dim and dim % c == 0:
            return c
    return None


# ----------------------------- tiled linear (1x1 conv) kernels -----------------------------

def _linear_bias_kernel(x_ref, w_ref, b_ref, o_ref, acc_ref):
    @pl.when(pl.program_id(2) == 0)
    def _init():
        acc_ref[...] = jnp.zeros_like(acc_ref)

    acc_ref[...] += jnp.dot(x_ref[...], w_ref[...], preferred_element_type=jnp.float32)

    @pl.when(pl.program_id(2) == pl.num_programs(2) - 1)
    def _done():
        o_ref[...] = (acc_ref[...] + b_ref[...]).astype(o_ref.dtype)


def _linear_nobias_kernel(x_ref, w_ref, o_ref, acc_ref):
    @pl.when(pl.program_id(2) == 0)
    def _init():
        acc_ref[...] = jnp.zeros_like(acc_ref)

    acc_ref[...] += jnp.dot(x_ref[...], w_ref[...], preferred_element_type=jnp.float32)

    @pl.when(pl.program_id(2) == pl.num_programs(2) - 1)
    def _done():
        o_ref[...] = acc_ref[...].astype(o_ref.dtype)


def pallas_linear(x, w, b=None, *, out_dtype=jnp.float32):
    """x: (M, K), w: (K, N), optional b: (N,) -> (M, N).

    bf16 MXU matmul with an f32 VMEM accumulator, pl.when init/finalize on the reduction
    axis and megacore-parallel M/N grid axes.  No padded HBM copies: tk always divides K;
    partial trailing M/N blocks only produce rows/cols Pallas masks off on write.
    """
    M, K = x.shape
    N = w.shape[1]
    xb = x.astype(jnp.bfloat16)
    wb = w.astype(jnp.bfloat16)

    tm = _pick_tile(M, (512, 256, 128, 64, 32, 16, 8))
    if tm is None:
        tm = min(512, _round_up(M, 8))       # partial last M block: rows are independent
    tn = _pick_tile(N, (512, 384, 256, 128))
    if tn is None:
        tn = N                               # full-N block (equal-to-dim blocks always legal)
    tk = _pick_tile(K, (1024, 512, 256, 128))
    if tk is None:
        tk = K                               # never allow a padded / partial K block

    grid = (pl.cdiv(M, tm), pl.cdiv(N, tn), pl.cdiv(K, tk))
    x_spec = pl.BlockSpec((tm, tk), lambda i, j, k: (i, k))
    w_spec = pl.BlockSpec((tk, tn), lambda i, j, k: (k, j))
    o_spec = pl.BlockSpec((tm, tn), lambda i, j, k: (i, j))
    cost = pl.CostEstimate(flops=int(2 * M * K * N), transcendentals=0,
                           bytes_accessed=int(2 * (M * K + K * N) + 4 * M * N))
    cparams = pltpu.CompilerParams(
        dimension_semantics=("parallel", "parallel", "arbitrary"))
    scratch = [pltpu.VMEM((tm, tn), jnp.float32)]

    if b is None:
        return pl.pallas_call(
            _linear_nobias_kernel,
            out_shape=jax.ShapeDtypeStruct((M, N), out_dtype),
            grid=grid,
            in_specs=[x_spec, w_spec],
            out_specs=o_spec,
            scratch_shapes=scratch,
            compiler_params=cparams,
            cost_estimate=cost,
        )(xb, wb)

    bp = b.astype(jnp.float32).reshape(1, N)
    b_spec = pl.BlockSpec((1, tn), lambda i, j, k: (0, j))
    return pl.pallas_call(
        _linear_bias_kernel,
        out_shape=jax.ShapeDtypeStruct((M, N), out_dtype),
        grid=grid,
        in_specs=[x_spec, w_spec, b_spec],
        out_specs=o_spec,
        scratch_shapes=scratch,
        compiler_params=cparams,
        cost_estimate=cost,
    )(xb, wb, bp)


# ----------------------------- windowed attention kernel -----------------------------

def _window_attn_kernel(q_ref, k_ref, v_ref, rcat_ref, mcat_ref, pcat_ref, o_ref, *, scale):
    gb, n, d = q_ref.shape
    e2 = rcat_ref.shape[1]                 # 2 * n

    q = q_ref[...]                         # (gb, n, d) bf16; gb batches (window, head)
    k = k_ref[...]
    v = v_ref[...]

    # scaled attention logits on the MXU, batched over windows*heads.
    s = jnp.einsum('gqd,gkd->gqk', q, k,
                   preferred_element_type=jnp.float32) * scale            # (gb, n, n) f32

    # Decomposed rel-pos v2 bias, entirely on the MXU (unscaled q, as in the reference):
    #   t[g, q, e]    = q[g, q, :] . rcat[:, e]
    #   bias[g, q, k] = sum_e t[g, q, e] * mcat[q, e] * pcat[e, k]
    # which equals  q . rel_pos_h[dist(q_row, k_row)] + q . rel_pos_w[dist(q_col, k_col)].
    rcat_b = jnp.broadcast_to(rcat_ref[...][None], (gb, d, e2))
    pcat_b = jnp.broadcast_to(pcat_ref[...][None], (gb, e2, n))
    t = jnp.einsum('gqd,gde->gqe', q, rcat_b,
                   preferred_element_type=jnp.float32)                    # (gb, n, 2n) f32
    te = (t * mcat_ref[...][None]).astype(jnp.bfloat16)
    bias = jnp.einsum('gqe,gek->gqk', te, pcat_b,
                      preferred_element_type=jnp.float32)                 # (gb, n, n) f32
    s = s + bias

    # softmax; denominator via the EUP approx reciprocal.
    s = s - jnp.max(s, axis=-1, keepdims=True)
    p = jnp.exp(s)
    p = p * pl.reciprocal(jnp.sum(p, axis=-1, keepdims=True), approx=True)

    o = jnp.einsum('gqk,gkd->gqd', p.astype(v.dtype), v,
                   preferred_element_type=jnp.float32)                    # (gb, n, d) f32
    o_ref[...] = o.astype(o_ref.dtype)                                    # single full-block store


def _pick_batch_block(GH, block_g):
    cap = max(1, min(block_g, GH))
    if GH >= 2:
        cap = max(1, min(cap, GH // 2))    # keep >= 2 grid steps (v7x: use both TensorCores)
    for g in range(cap, 0, -1):
        if GH % g == 0:
            return g
    return 1


def pallas_window_attention(qw, kw, vw, rcat, mcat, pcat, *, scale, block_g=64):
    """qw/kw/vw: (G*H, n, d) per-(window, head) tokens (bf16).
    rcat: (d, 2n), mcat: (n, 2n), pcat: (2n, n) rel-pos-v2 tables.  Returns (G*H, n, d) bf16."""
    GH, n, d = qw.shape
    gb = _pick_batch_block(GH, block_g)
    grid = (GH // gb,)

    tok_spec = pl.BlockSpec((gb, n, d), lambda g: (g, 0, 0))
    cost = pl.CostEstimate(
        flops=int(2 * GH * n * (2 * n * d + 2 * n * d + 2 * n * n)),
        transcendentals=int(GH * n * n),
        bytes_accessed=int(2 * 4 * GH * n * d + 4 * (d * 2 * n + n * 2 * n + 2 * n * n)),
    )
    kern = functools.partial(_window_attn_kernel, scale=scale)
    return pl.pallas_call(
        kern,
        out_shape=jax.ShapeDtypeStruct((GH, n, d), jnp.bfloat16),
        grid=grid,
        in_specs=[tok_spec, tok_spec, tok_spec,
                  pl.BlockSpec((d, 2 * n), lambda g: (0, 0)),
                  pl.BlockSpec((n, 2 * n), lambda g: (0, 0)),
                  pl.BlockSpec((2 * n, n), lambda g: (0, 0))],
        out_specs=tok_spec,
        compiler_params=pltpu.CompilerParams(dimension_semantics=("parallel",)),
        cost_estimate=cost,
    )(qw, kw, vw, rcat, mcat, pcat)


# ----------------------------- rel-pos-v2 tables (wrapper-side, tiny) -----------------------------

def _rel_pos_v2_tables(rel_pos_h, rel_pos_w, ws):
    """Tables for the in-kernel MXU rel-pos computation:
       bias[q, k] = sum_e (q_vec . rcat[:, e]) * mcat[q, e] * pcat[e, k]."""
    d = rel_pos_h.shape[1]
    n = ws * ws
    idx = jnp.arange(ws)
    dist = idx[:, None] - idx[None, :] + (ws - 1)                         # (ws, ws)
    Rh = rel_pos_h[dist]                                                  # (ws, ws, d): [q_row, k_row]
    Rw = rel_pos_w[dist]                                                  # (ws, ws, d): [q_col, k_col]
    rcat = jnp.concatenate([Rh.reshape(n, d), Rw.reshape(n, d)], axis=0).T  # (d, 2n)

    qi = jnp.arange(n)
    e_major = jnp.arange(n) // ws
    e_minor = jnp.arange(n) % ws
    m_h = (qi[:, None] // ws == e_major[None, :])
    m_w = (qi[:, None] % ws == e_major[None, :])
    mcat = jnp.concatenate([m_h, m_w], axis=1).astype(jnp.float32)        # (n, 2n)

    ki = jnp.arange(n)
    p_h = (e_minor[:, None] == (ki[None, :] // ws))
    p_w = (e_minor[:, None] == (ki[None, :] % ws))
    pcat = jnp.concatenate([p_h, p_w], axis=0).astype(jnp.float32)        # (2n, n)
    return rcat.astype(jnp.bfloat16), mcat, pcat.astype(jnp.bfloat16)


# ----------------------------- JAX glue (coords, sampling, params) -----------------------------

def _leaky_relu(x, slope=0.01):
    return jnp.where(x >= 0, x, slope * x)


def _grid_sample_bilinear_zeros(img, grid):
    """PyTorch F.grid_sample(bilinear, padding_mode='zeros', align_corners=True), NHWC.
    img: (B, H, W, C); grid: (B, Hg, Wg, 2), last dim = (x, y) in [-1, 1].
    Implemented as ONE fused gather over the flattened (B*H*W) axis (4 corners + batch folded).
    """
    # TODO(synk): data-dependent bilinear gather kept as XLA glue rather than a Pallas
    # DMA-gather kernel.
    B, Hh, Wn, Cc = img.shape
    _, Hg, Wg, _ = grid.shape
    x = (grid[..., 0] + 1.0) * 0.5 * (Wn - 1)
    y = (grid[..., 1] + 1.0) * 0.5 * (Hh - 1)
    x0 = jnp.floor(x)
    y0 = jnp.floor(y)
    xs = jnp.stack([x0, x0 + 1.0, x0, x0 + 1.0], axis=-1)                 # (B, Hg, Wg, 4)
    ys = jnp.stack([y0, y0, y0 + 1.0, y0 + 1.0], axis=-1)
    wx1 = x - x0
    wy1 = y - y0
    wgt = jnp.stack([(1.0 - wx1) * (1.0 - wy1), wx1 * (1.0 - wy1),
                     (1.0 - wx1) * wy1, wx1 * wy1], axis=-1)              # (B, Hg, Wg, 4)
    valid = ((xs >= 0) & (xs <= Wn - 1) & (ys >= 0) & (ys <= Hh - 1))
    wgt = wgt * valid.astype(wgt.dtype)
    xi = jnp.clip(xs, 0, Wn - 1).astype(jnp.int32)
    yi = jnp.clip(ys, 0, Hh - 1).astype(jnp.int32)
    bidx = jnp.arange(B, dtype=jnp.int32).reshape(B, 1, 1, 1)
    flat_idx = (bidx * (Hh * Wn) + yi * Wn + xi).reshape(-1)
    vals = jnp.take(img.reshape(B * Hh * Wn, Cc), flat_idx, axis=0)
    vals = vals.reshape(B, Hg, Wg, 4, Cc).astype(jnp.float32)
    return jnp.sum(vals * wgt[..., None], axis=-2)


def init_params(key, dim, num_heads, ws):
    head_dim = dim // num_heads
    ks = jax.random.split(key, 11)
    std = 0.02
    p = {}
    p['w_qkv'] = std * jax.random.normal(ks[0], (dim, 3 * dim), jnp.float32)   # qkv_bias=False
    p['w_proj'] = std * jax.random.normal(ks[1], (dim, dim), jnp.float32)
    p['b_proj'] = std * jax.random.normal(ks[2], (dim,), jnp.float32)
    # transform = [depthwise Conv2d(ws, stride=ws, groups=dim), 1x1 Conv, LeakyReLU, 1x1 Conv -> 9*heads]
    p['dw_w'] = std * jax.random.normal(ks[3], (dim, ws, ws), jnp.float32)
    p['dw_b'] = std * jax.random.normal(ks[4], (dim,), jnp.float32)
    p['pw1_w'] = std * jax.random.normal(ks[5], (dim, dim), jnp.float32)       # (out, in)
    p['pw1_b'] = std * jax.random.normal(ks[6], (dim,), jnp.float32)
    p['pw2_w'] = std * jax.random.normal(ks[7], (num_heads * 9, dim), jnp.float32)
    p['pw2_b'] = std * jax.random.normal(ks[8], (num_heads * 9,), jnp.float32)
    # rpe == 'v2'
    p['rel_pos_h'] = std * jax.random.normal(ks[9], (2 * ws - 1, head_dim), jnp.float32)
    p['rel_pos_w'] = std * jax.random.normal(ks[10], (2 * ws - 1, head_dim), jnp.float32)
    return p


def quadrangle_attention_forward(params, x, h, w, *, num_heads, window_size):
    b, N, C = x.shape
    assert N == h * w
    H = num_heads
    d = C // H
    ws = window_size
    n = ws * ws
    scale = d ** -0.5

    # --- qkv projection (1x1 conv == per-token linear); qkv_bias=False so bias-free matmul ---
    qkv_flat = pallas_linear(x.reshape(b * N, C), params['w_qkv'], out_dtype=jnp.bfloat16)

    pad_d = (ws - h % ws) % ws
    pad_r = (ws - w % ws) % ws
    eh, ew = h + pad_d, w + pad_r
    wh, ww = eh // ws, ew // ws

    qkv_map = qkv_flat.reshape(b, h, w, 3, H, d)
    qkv_map = jnp.pad(qkv_map, ((0, 0), (0, pad_d), (0, pad_r), (0, 0), (0, 0), (0, 0)))
    q_map = qkv_map[:, :, :, 0]          # (b, eh, ew, H, d) bf16
    k_map = qkv_map[:, :, :, 1]
    v_map = qkv_map[:, :, :, 2]

    # TODO(synk): window extraction could be folded into the attention BlockSpec index_map
    # (reading (ws, ws, d) patches straight from the padded maps) to avoid these XLA copies.
    def windows_from_bhwc(tmap):         # (b, eh, ew, H, d) -> (b*wh*ww*H, n, d)
        t = tmap.reshape(b, wh, ws, ww, ws, H, d)
        return t.transpose(0, 1, 3, 5, 2, 4, 6).reshape(b * wh * ww * H, n, d)

    def windows_from_bhhw(tmap):         # (b*H, eh, ew, d) -> (b*wh*ww*H, n, d)
        t = tmap.reshape(b, H, wh, ws, ww, ws, d)
        return t.transpose(0, 2, 4, 1, 3, 5, 6).reshape(b * wh * ww * H, n, d)

    qw = windows_from_bhwc(q_map)

    if h > ws or w > ws:
        # --- quadrangle transform prediction + resampling (small; plain-JAX glue, f32) ---
        shortcut = x.reshape(b, h, w, C).transpose(0, 3, 1, 2)                 # (b, C, h, w)

        lin_h = jnp.linspace(-1.0, 1.0, eh)
        lin_w = jnp.linspace(-1.0, 1.0, ew)
        img_ref = jnp.stack([jnp.broadcast_to(lin_w[None, :], (eh, ew)),
                             jnp.broadcast_to(lin_h[:, None], (eh, ew))], 0)[None]   # (1,2,eh,ew)
        window_center = img_ref.reshape(1, 2, wh, ws, ww, ws).mean(axis=(3, 5)).reshape(1, 2, wh, 1, ww, 1)

        base_h = jnp.arange(ws, dtype=jnp.float32) * 2.0 / (eh - 1)
        base_h = base_h - base_h.mean()
        base_w = jnp.arange(ws, dtype=jnp.float32) * 2.0 / (ew - 1)
        base_w = base_w - base_w.mean()
        wc = jnp.stack([jnp.broadcast_to(base_w[None, :], (ws, ws)),
                        jnp.broadcast_to(base_h[:, None], (ws, ws))], 0)              # (2, ws, ws)
        window_coords = jnp.broadcast_to(wc[None, None, None], (1, wh, ww, 2, ws, ws))

        x_pad = jnp.pad(shortcut, ((0, 0), (0, 0), (0, pad_d), (0, pad_r)))
        xr = x_pad.reshape(b, C, wh, ws, ww, ws)
        t = jnp.einsum('bchkwl,ckl->bchw', xr, params['dw_w']) + params['dw_b'][None, :, None, None]
        t = jnp.einsum('bchw,oc->bohw', t, params['pw1_w']) + params['pw1_b'][None, :, None, None]
        t = _leaky_relu(t)
        t = jnp.einsum('bchw,oc->bohw', t, params['pw2_w']) + params['pw2_b'][None, :, None, None]
        sampling = t.reshape(b * H, 9, wh, ww).transpose(0, 2, 3, 1)                  # (bH, wh, ww, 9)

        off = jnp.stack([sampling[..., 0] / (ew // ws),
                         sampling[..., 1] / (eh // ws)], -1).reshape(-1, wh, ww, 2, 1)
        scales = sampling[..., 2:4] + 1.0
        shear = sampling[..., 4:6]
        projc = sampling[..., 6:8]
        rot = sampling[..., 8]
        ones = jnp.ones_like(rot)
        zeros = jnp.zeros_like(rot)
        shear_m = jnp.stack([ones, shear[..., 0], shear[..., 1], ones], -1).reshape(-1, wh, ww, 2, 2)
        scales_m = jnp.stack([scales[..., 0], zeros, zeros, scales[..., 1]], -1).reshape(-1, wh, ww, 2, 2)
        rot_m = jnp.stack([jnp.cos(rot), jnp.sin(rot), -jnp.sin(rot), jnp.cos(rot)], -1).reshape(-1, wh, ww, 2, 2)
        basic = rot_m @ shear_m @ scales_m
        proj_row = jnp.concatenate([projc.reshape(-1, wh, ww, 1, 2),
                                    jnp.ones((b * H, wh, ww, 1, 1), jnp.float32)], -1)
        affine = jnp.concatenate([jnp.concatenate([basic, off], -1), proj_row], -2)   # (bH,wh,ww,3,3)

        wcp = jnp.concatenate([window_coords.reshape(1, wh, ww, 2, n),
                               jnp.ones((1, wh, ww, 1, n), jnp.float32)], -2)
        twc = affine @ wcp                                                            # (bH,wh,ww,3,n)
        denom = twc[..., 2, :]
        denom = jnp.where(denom == 0.0, 1e-6, denom)
        twc2 = twc[..., :2, :] / denom[..., None, :]
        twc2 = twc2.reshape(-1, wh, ww, 2, ws, ws).transpose(0, 3, 1, 4, 2, 5)        # (bH,2,wh,ws,ww,ws)
        coords = window_center + twc2
        sample_coords = coords.transpose(0, 2, 3, 4, 5, 1).reshape(b * H, eh, ew, 2)
        # RectifyCoordsGradient is identity in the forward pass.
        k_nhwc = k_map.transpose(0, 3, 1, 2, 4).reshape(b * H, eh, ew, d)
        v_nhwc = v_map.transpose(0, 3, 1, 2, 4).reshape(b * H, eh, ew, d)
        k_sel = _grid_sample_bilinear_zeros(k_nhwc, sample_coords).astype(jnp.bfloat16)
        v_sel = _grid_sample_bilinear_zeros(v_nhwc, sample_coords).astype(jnp.bfloat16)
        kw = windows_from_bhhw(k_sel)
        vw = windows_from_bhhw(v_sel)
        # transform_window_coords_distance only feeds an nn.Identity tap (unused) -> omitted.
    else:
        kw = windows_from_bhwc(k_map)
        vw = windows_from_bhwc(v_map)

    rcat, mcat, pcat = _rel_pos_v2_tables(params['rel_pos_h'], params['rel_pos_w'], ws)

    out_w = pallas_window_attention(qw, kw, vw, rcat, mcat, pcat, scale=scale)

    out = out_w.reshape(b, wh, ww, H, ws, ws, d).transpose(0, 1, 4, 2, 5, 3, 6)
    out = out.reshape(b, eh, ew, C)[:, :h, :w, :].reshape(b * N, C)
    out = pallas_linear(out, params['w_proj'], params['b_proj'], out_dtype=jnp.float32)
    return out.reshape(b, N, C)


# ----------------------------- main -----------------------------

if __name__ == "__main__":
    b, h, w = 2, 8, 8
    dim, num_heads, window_size = 32, 4, 4          # head_dim = 8, window grid = 2x2

    key = jax.random.PRNGKey(0)
    kx, kp = jax.random.split(key)
    x = jax.random.normal(kx, (b, h * w, dim), jnp.float32)
    params = init_params(kp, dim, num_heads, window_size)

    fwd = jax.jit(lambda p, xx: quadrangle_attention_forward(
        p, xx, h, w, num_heads=num_heads, window_size=window_size))
    out = fwd(params, x)
    jax.block_until_ready(out)
    assert out.shape == (b, h * w, dim)
    print("KERNEL_OK")
</pallas_src>

<mosaic_0001>
module attributes {stable_mosaic.version = 11 : i64} {
  func.func @_linear_nobias_kernel(%arg0: i32, %arg1: i32, %arg2: i32, %arg3: memref<128x32xbf16, #tpu.memory_space<vmem>>, %arg4: memref<32x96xbf16, #tpu.memory_space<vmem>>, %arg5: memref<128x96xbf16, #tpu.memory_space<vmem>>, %arg6: memref<128x96xf32, #tpu.memory_space<vmem>>) attributes {dimension_semantics = [#tpu.dimension_semantics<parallel>, #tpu.dimension_semantics<parallel>, #tpu.dimension_semantics<arbitrary>], iteration_bounds = array<i64: 1, 1, 1>, scalar_prefetch = 0 : i64, scratch_operands = 1 : i64, tpu.core_type = #tpu.core_type<tc>, window_params = [{transform_indices = @transform_0, window_bounds = array<i64: 128, 32>}, {transform_indices = @transform_1, window_bounds = array<i64: 32, 96>}, {transform_indices = @transform_2, window_bounds = array<i64: 128, 96>}]} {
    %c0_i32 = arith.constant 0 : i32
    %0 = arith.cmpi eq, %arg2, %c0_i32 : i32
    %1 = arith.extui %0 : i1 to i32
    %c0_i32_0 = arith.constant 0 : i32
    %2 = arith.cmpi ne, %1, %c0_i32_0 : i32
    scf.if %2 {
      %cst_10 = arith.constant 0.000000e+00 : f32
      %12 = vector.broadcast %cst_10 : f32 to vector<128x96xf32>
      %c0_11 = arith.constant 0 : index
      %c0_12 = arith.constant 0 : index
      %13 = vector.load %arg6[%c0_11, %c0_12] : memref<128x96xf32, #tpu.memory_space<vmem>>, vector<128x96xf32>
      tpu.vector_store %arg6[%c0_11, %c0_12], %12 {strides = array<i32>} : memref<128x96xf32, #tpu.memory_space<vmem>>, vector<128x96xf32>,
    } else {
    }
    %c0 = arith.constant 0 : index
    %c0_1 = arith.constant 0 : index
    %3 = vector.load %arg6[%c0, %c0_1] : memref<128x96xf32, #tpu.memory_space<vmem>>, vector<128x96xf32>
    %c0_2 = arith.constant 0 : index
    %c0_3 = arith.constant 0 : index
    %4 = vector.load %arg3[%c0_2, %c0_3] : memref<128x32xbf16, #tpu.memory_space<vmem>>, vector<128x32xbf16>
    %c0_4 = arith.constant 0 : index
    %c0_5 = arith.constant 0 : index
    %5 = vector.load %arg4[%c0_4, %c0_5] : memref<32x96xbf16, #tpu.memory_space<vmem>>, vector<32x96xbf16>
    %cst = arith.constant dense<0.000000e+00> : vector<128x96xf32>
    %6 = tpu.matmul %4, %5, %cst {dimension_numbers = #tpu.dot_dimension_numbers<[1], [0], [0], [1], [0, 0, 1, 1], [], []>} : vector<128x32xbf16>, vector<32x96xbf16>, vector<128x96xf32> -> vector<128x96xf32>
    %7 = arith.addf %3, %6 : vector<128x96xf32>
    %c0_6 = arith.constant 0 : index
    %c0_7 = arith.constant 0 : index
    %8 = vector.load %arg6[%c0_6, %c0_7] : memref<128x96xf32, #tpu.memory_space<vmem>>, vector<128x96xf32>
    tpu.vector_store %arg6[%c0_6, %c0_7], %7 {strides = array<i32>} : memref<128x96xf32, #tpu.memory_space<vmem>>, vector<128x96xf32>,
    %c0_i32_8 = arith.constant 0 : i32
    %9 = arith.cmpi eq, %arg2, %c0_i32_8 : i32
    %10 = arith.extui %9 : i1 to i32
    %c0_i32_9 = arith.constant 0 : i32
    %11 = arith.cmpi ne, %10, %c0_i32_9 : i32
    scf.if %11 {
      %c0_10 = arith.constant 0 : index
      %c0_11 = arith.constant 0 : index
      %12 = vector.load %arg6[%c0_10, %c0_11] : memref<128x96xf32, #tpu.memory_space<vmem>>, vector<128x96xf32>
      %13 = arith.truncf %12 : vector<128x96xf32> to vector<128x96xbf16>
      %c0_12 = arith.constant 0 : index
      %c0_13 = arith.constant 0 : index
      %14 = vector.load %arg5[%c0_12, %c0_13] : memref<128x96xbf16, #tpu.memory_space<vmem>>, vector<128x96xbf16>
      tpu.vector_store %arg5[%c0_12, %c0_13], %13 {strides = array<i32>} : memref<128x96xbf16, #tpu.memory_space<vmem>>, vector<128x96xbf16>,
    } else {
    }
    return
  }
  func.func @transform_0(%arg0: i32, %arg1: i32, %arg2: i32) -> (i32, i32) {
    %c0_i32 = arith.constant 0 : i32
    return %arg0, %arg2 : i32, i32
  }
  func.func @transform_1(%arg0: i32, %arg1: i32, %arg2: i32) -> (i32, i32) {
    %c0_i32 = arith.constant 0 : i32
    return %arg2, %arg1 : i32, i32
  }
  func.func @transform_2(%arg0: i32, %arg1: i32, %arg2: i32) -> (i32, i32) {
    %c0_i32 = arith.constant 0 : i32
    return %arg0, %arg1 : i32, i32
  }
}

module attributes {stable_mosaic.version = 11 : i64} {
  func.func @_window_attn_kernel(%arg0: i32, %arg1: memref<16x16x8xbf16, #tpu.memory_space<vmem>>, %arg2: memref<16x16x8xbf16, #tpu.memory_space<vmem>>, %arg3: memref<16x16x8xbf16, #tpu.memory_space<vmem>>, %arg4: memref<8x32xbf16, #tpu.memory_space<vmem>>, %arg5: memref<16x32xf32, #tpu.memory_space<vmem>>, %arg6: memref<32x16xbf16, #tpu.memory_space<vmem>>, %arg7: memref<16x16x8xbf16, #tpu.memory_space<vmem>>) attributes {dimension_semantics = [#tpu.dimension_semantics<parallel>], iteration_bounds = array<i64: 2>, scalar_prefetch = 0 : i64, scratch_operands = 0 : i64, tpu.core_type = #tpu.core_type<tc>, window_params = [{transform_indices = @transform_0, window_bounds = array<i64: 16, 16, 8>}, {transform_indices = @transform_1, window_bounds = array<i64: 16, 16, 8>}, {transform_indices = @transform_2, window_bounds = array<i64: 16, 16, 8>}, {pipeline_mode = #tpu.pipeline_mode<synchronous>, transform_indices = @transform_3, window_bounds = array<i64: 8, 32>}, {pipeline_mode = #tpu.pipeline_mode<synchronous>, transform_indices = @transform_4, window_bounds = array<i64: 16, 32>}, {pipeline_mode = #tpu.pipeline_mode<synchronous>, transform_indices = @transform_5, window_bounds = array<i64: 32, 16>}, {transform_indices = @transform_6, window_bounds = array<i64: 16, 16, 8>}]} {
    %c0 = arith.constant 0 : index
    %c0_0 = arith.constant 0 : index
    %c0_1 = arith.constant 0 : index
    %0 = vector.load %arg1[%c0, %c0_0, %c0_1] : memref<16x16x8xbf16, #tpu.memory_space<vmem>>, vector<16x16x8xbf16>
    %c0_2 = arith.constant 0 : index
    %c0_3 = arith.constant 0 : index
    %c0_4 = arith.constant 0 : index
    %1 = vector.load %arg2[%c0_2, %c0_3, %c0_4] : memref<16x16x8xbf16, #tpu.memory_space<vmem>>, vector<16x16x8xbf16>
    %c0_5 = arith.constant 0 : index
    %c0_6 = arith.constant 0 : index
    %c0_7 = arith.constant 0 : index
    %2 = vector.load %arg3[%c0_5, %c0_6, %c0_7] : memref<16x16x8xbf16, #tpu.memory_space<vmem>>, vector<16x16x8xbf16>
    "tpu.trace_start"() <{level = 10 : i32, message = "gqd,gkd->gqk"}> : () -> ()
    %cst = arith.constant dense<0.000000e+00> : vector<16x16x16xf32>
    %3 = tpu.matmul %0, %1, %cst {dimension_numbers = #tpu.dot_dimension_numbers<[2], [2], [1], [1], [0, 0, 0, 1, 1, 1], [0], [0]>} : vector<16x16x8xbf16>, vector<16x16x8xbf16>, vector<16x16x16xf32> -> vector<16x16x16xf32>
    "tpu.trace_stop"() : () -> ()
    %cst_8 = arith.constant 0.353553385 : f32
    %4 = vector.broadcast %cst_8 : f32 to vector<16x16x16xf32>
    %5 = arith.mulf %3, %4 : vector<16x16x16xf32>
    %c0_9 = arith.constant 0 : index
    %c0_10 = arith.constant 0 : index
    %6 = vector.load %arg4[%c0_9, %c0_10] : memref<8x32xbf16, #tpu.memory_space<vmem>>, vector<8x32xbf16>
    %7 = vector.shape_cast %6 : vector<8x32xbf16> to vector<1x8x32xbf16>
    %8 = vector.shape_cast %7 : vector<1x8x32xbf16> to vector<1x8x32xbf16>
    %9 = vector.broadcast %8 : vector<1x8x32xbf16> to vector<16x8x32xbf16>
    %c0_11 = arith.constant 0 : index
    %c0_12 = arith.constant 0 : index
    %10 = vector.load %arg6[%c0_11, %c0_12] : memref<32x16xbf16, #tpu.memory_space<vmem>>, vector<32x16xbf16>
    %11 = vector.shape_cast %10 : vector<32x16xbf16> to vector<1x32x16xbf16>
    %12 = vector.shape_cast %11 : vector<1x32x16xbf16> to vector<1x32x16xbf16>
    %13 = vector.broadcast %12 : vector<1x32x16xbf16> to vector<16x32x16xbf16>
    "tpu.trace_start"() <{level = 10 : i32, message = "gqd,gde->gqe"}> : () -> ()
    %cst_13 = arith.constant dense<0.000000e+00> : vector<16x16x32xf32>
    %14 = tpu.matmul %0, %9, %cst_13 {dimension_numbers = #tpu.dot_dimension_numbers<[2], [1], [1], [2], [0, 0, 0, 1, 1, 2], [0], [0]>} : vector<16x16x8xbf16>, vector<16x8x32xbf16>, vector<16x16x32xf32> -> vector<16x16x32xf32>
    "tpu.trace_stop"() : () -> ()
    %c0_14 = arith.constant 0 : index
    %c0_15 = arith.constant 0 : index
    %15 = vector.load %arg5[%c0_14, %c0_15] : memref<16x32xf32, #tpu.memory_space<vmem>>, vector<16x32xf32>
    %16 = vector.shape_cast %15 : vector<16x32xf32> to vector<1x16x32xf32>
    %17 = vector.broadcast %16 : vector<1x16x32xf32> to vector<16x16x32xf32>
    %18 = arith.mulf %14, %17 : vector<16x16x32xf32>
    %19 = arith.truncf %18 : vector<16x16x32xf32> to vector<16x16x32xbf16>
    "tpu.trace_start"() <{level = 10 : i32, message = "gqe,gek->gqk"}> : () -> ()
    %cst_16 = arith.constant dense<0.000000e+00> : vector<16x16x16xf32>
    %20 = tpu.matmul %19, %13, %cst_16 {dimension_numbers = #tpu.dot_dimension_numbers<[2], [1], [1], [2], [0, 0, 0, 1, 1, 2], [0], [0]>} : vector<16x16x32xbf16>, vector<16x32x16xbf16>, vector<16x16x16xf32> -> vector<16x16x16xf32>
    "tpu.trace_stop"() : () -> ()
    %21 = arith.addf %5, %20 : vector<16x16x16xf32>
    %cst_17 = arith.constant dense<0xFF800000> : vector<16x16xf32>
    %22 = vector.multi_reduction <maximumf>, %21, %cst_17 [2] : vector<16x16x16xf32> to vector<16x16xf32>
    %23 = vector.shape_cast %22 : vector<16x16xf32> to vector<16x16x1xf32>
    %24 = vector.broadcast %23 : vector<16x16x1xf32> to vector<16x16x16xf32>
    %25 = arith.subf %21, %24 : vector<16x16x16xf32>
    %26 = math.exp %25 : vector<16x16x16xf32>
    %cst_18 = arith.constant dense<0.000000e+00> : vector<16x16xf32>
    %27 = vector.multi_reduction <add>, %26, %cst_18 [2] : vector<16x16x16xf32> to vector<16x16xf32>
    %28 = vector.shape_cast %27 : vector<16x16xf32> to vector<16x16x1xf32>
    %29 = tpu.reciprocal %28 {approx = true} : vector<16x16x1xf32> -> vector<16x16x1xf32>
    %30 = vector.broadcast %29 : vector<16x16x1xf32> to vector<16x16x16xf32>
    %31 = arith.mulf %26, %30 : vector<16x16x16xf32>
    %32 = arith.truncf %31 : vector<16x16x16xf32> to vector<16x16x16xbf16>
    "tpu.trace_start"() <{level = 10 : i32, message = "gqk,gkd->gqd"}> : () -> ()
    %cst_19 = arith.constant dense<0.000000e+00> : vector<16x16x8xf32>
    %33 = tpu.matmul %32, %2, %cst_19 {dimension_numbers = #tpu.dot_dimension_numbers<[2], [1], [1], [2], [0, 0, 0, 1, 1, 2], [0], [0]>} : vector<16x16x16xbf16>, vector<16x16x8xbf16>, vector<16x16x8xf32> -> vector<16x16x8xf32>
    "tpu.trace_stop"() : () -> ()
    %34 = arith.truncf %33 : vector<16x16x8xf32> to vector<16x16x8xbf16>
    %c0_20 = arith.constant 0 : index
    %c0_21 = arith.constant 0 : index
    %c0_22 = arith.constant 0 : index
    %35 = vector.load %arg7[%c0_20, %c0_21, %c0_22] : memref<16x16x8xbf16, #tpu.memory_space<vmem>>, vector<16x16x8xbf16>
    tpu.vector_store %arg7[%c0_20, %c0_21, %c0_22], %34 {strides = array<i32>} : memref<16x16x8xbf16, #tpu.memory_space<vmem>>, vector<16x16x8xbf16>,
    return
  }
  func.func @transform_0(%arg0: i32) -> (i32, i32, i32) {
    %c0_i32 = arith.constant 0 : i32
    %c0_i32_0 = arith.constant 0 : i32
    %c0_i32_1 = arith.constant 0 : i32
    return %arg0, %c0_i32, %c0_i32_0 : i32, i32, i32
  }
  func.func @transform_1(%arg0: i32) -> (i32, i32, i32) {
    %c0_i32 = arith.constant 0 : i32
    %c0_i32_0 = arith.constant 0 : i32
    %c0_i32_1 = arith.constant 0 : i32
    return %arg0, %c0_i32, %c0_i32_0 : i32, i32, i32
  }
  func.func @transform_2(%arg0: i32) -> (i32, i32, i32) {
    %c0_i32 = arith.constant 0 : i32
    %c0_i32_0 = arith.constant 0 : i32
    %c0_i32_1 = arith.constant 0 : i32
    return %arg0, %c0_i32, %c0_i32_0 : i32, i32, i32
  }
  func.func @transform_3(%arg0: i32) -> (i32, i32) {
    %c0_i32 = arith.constant 0 : i32
    %c0_i32_0 = arith.constant 0 : i32
    %c0_i32_1 = arith.constant 0 : i32
    return %c0_i32, %c0_i32_0 : i32, i32
  }
  func.func @transform_4(%arg0: i32) -> (i32, i32) {
    %c0_i32 = arith.constant 0 : i32
    %c0_i32_0 = arith.constant 0 : i32
    %c0_i32_1 = arith.constant 0 : i32
    return %c0_i32, %c0_i32_0 : i32, i32
  }
  func.func @transform_5(%arg0: i32) -> (i32, i32) {
    %c0_i32 = arith.constant 0 : i32
    %c0_i32_0 = arith.constant 0 : i32
    %c0_i32_1 = arith.constant 0 : i32
    return %c0_i32, %c0_i32_0 : i32, i32
  }
  func.func @transform_6(%arg0: i32) -> (i32, i32, i32) {
    %c0_i32 = arith.constant 0 : i32
    %c0_i32_0 = arith.constant 0 : i32
    %c0_i32_1 = arith.constant 0 : i32
    return %arg0, %c0_i32, %c0_i32_0 : i32, i32, i32
  }
}

module attributes {stable_mosaic.version = 11 : i64} {
  func.func @_linear_bias_kernel(%arg0: i32, %arg1: i32, %arg2: i32, %arg3: memref<128x32xbf16, #tpu.memory_space<vmem>>, %arg4: memref<32x32xbf16, #tpu.memory_space<vmem>>, %arg5: memref<1x32xf32, #tpu.memory_space<vmem>>, %arg6: memref<128x32xf32, #tpu.memory_space<vmem>>, %arg7: memref<128x32xf32, #tpu.memory_space<vmem>>) attributes {dimension_semantics = [#tpu.dimension_semantics<parallel>, #tpu.dimension_semantics<parallel>, #tpu.dimension_semantics<arbitrary>], iteration_bounds = array<i64: 1, 1, 1>, scalar_prefetch = 0 : i64, scratch_operands = 1 : i64, tpu.core_type = #tpu.core_type<tc>, window_params = [{transform_indices = @transform_0, window_bounds = array<i64: 128, 32>}, {transform_indices = @transform_1, window_bounds = array<i64: 32, 32>}, {transform_indices = @transform_2, window_bounds = array<i64: 1, 32>}, {transform_indices = @transform_3, window_bounds = array<i64: 128, 32>}]} {
    %c0_i32 = arith.constant 0 : i32
    %0 = arith.cmpi eq, %arg2, %c0_i32 : i32
    %1 = arith.extui %0 : i1 to i32
    %c0_i32_0 = arith.constant 0 : i32
    %2 = arith.cmpi ne, %1, %c0_i32_0 : i32
    scf.if %2 {
      %cst_10 = arith.constant 0.000000e+00 : f32
      %12 = vector.broadcast %cst_10 : f32 to vector<128x32xf32>
      %c0_11 = arith.constant 0 : index
      %c0_12 = arith.constant 0 : index
      %13 = vector.load %arg7[%c0_11, %c0_12] : memref<128x32xf32, #tpu.memory_space<vmem>>, vector<128x32xf32>
      tpu.vector_store %arg7[%c0_11, %c0_12], %12 {strides = array<i32>} : memref<128x32xf32, #tpu.memory_space<vmem>>, vector<128x32xf32>,
    } else {
    }
    %c0 = arith.constant 0 : index
    %c0_1 = arith.constant 0 : index
    %3 = vector.load %arg7[%c0, %c0_1] : memref<128x32xf32, #tpu.memory_space<vmem>>, vector<128x32xf32>
    %c0_2 = arith.constant 0 : index
    %c0_3 = arith.constant 0 : index
    %4 = vector.load %arg3[%c0_2, %c0_3] : memref<128x32xbf16, #tpu.memory_space<vmem>>, vector<128x32xbf16>
    %c0_4 = arith.constant 0 : index
    %c0_5 = arith.constant 0 : index
    %5 = vector.load %arg4[%c0_4, %c0_5] : memref<32x32xbf16, #tpu.memory_space<vmem>>, vector<32x32xbf16>
    %cst = arith.constant dense<0.000000e+00> : vector<128x32xf32>
    %6 = tpu.matmul %4, %5, %cst {dimension_numbers = #tpu.dot_dimension_numbers<[1], [0], [0], [1], [0, 0, 1, 1], [], []>} : vector<128x32xbf16>, vector<32x32xbf16>, vector<128x32xf32> -> vector<128x32xf32>
    %7 = arith.addf %3, %6 : vector<128x32xf32>
    %c0_6 = arith.constant 0 : index
    %c0_7 = arith.constant 0 : index
    %8 = vector.load %arg7[%c0_6, %c0_7] : memref<128x32xf32, #tpu.memory_space<vmem>>, vector<128x32xf32>
    tpu.vector_store %arg7[%c0_6, %c0_7], %7 {strides = array<i32>} : memref<128x32xf32, #tpu.memory_space<vmem>>, vector<128x32xf32>,
    %c0_i32_8 = arith.constant 0 : i32
    %9 = arith.cmpi eq, %arg2, %c0_i32_8 : i32
    %10 = arith.extui %9 : i1 to i32
    %c0_i32_9 = arith.constant 0 : i32
    %11 = arith.cmpi ne, %10, %c0_i32_9 : i32
    scf.if %11 {
      %c0_10 = arith.constant 0 : index
      %c0_11 = arith.constant 0 : index
      %12 = vector.load %arg7[%c0_10, %c0_11] : memref<128x32xf32, #tpu.memory_space<vmem>>, vector<128x32xf32>
      %c0_12 = arith.constant 0 : index
      %c0_13 = arith.constant 0 : index
      %13 = vector.load %arg5[%c0_12, %c0_13] : memref<1x32xf32, #tpu.memory_space<vmem>>, vector<1x32xf32>
      %14 = vector.broadcast %13 : vector<1x32xf32> to vector<128x32xf32>
      %15 = arith.addf %12, %14 : vector<128x32xf32>
      %c0_14 = arith.constant 0 : index
      %c0_15 = arith.constant 0 : index
      %16 = vector.load %arg6[%c0_14, %c0_15] : memref<128x32xf32, #tpu.memory_space<vmem>>, vector<128x32xf32>
      tpu.vector_store %arg6[%c0_14, %c0_15], %15 {strides = array<i32>} : memref<128x32xf32, #tpu.memory_space<vmem>>, vector<128x32xf32>,
    } else {
    }
    return
  }
  func.func @transform_0(%arg0: i32, %arg1: i32, %arg2: i32) -> (i32, i32) {
    %c0_i32 = arith.constant 0 : i32
    return %arg0, %arg2 : i32, i32
  }
  func.func @transform_1(%arg0: i32, %arg1: i32, %arg2: i32) -> (i32, i32) {
    %c0_i32 = arith.constant 0 : i32
    return %arg2, %arg1 : i32, i32
  }
  func.func @transform_2(%arg0: i32, %arg1: i32, %arg2: i32) -> (i32, i32) {
    %c0_i32 = arith.constant 0 : i32
    %c0_i32_0 = arith.constant 0 : i32
    return %c0_i32, %arg1 : i32, i32
  }
  func.func @transform_3(%arg0: i32, %arg1: i32, %arg2: i32) -> (i32, i32) {
    %c0_i32 = arith.constant 0 : i32
    return %arg0, %arg1 : i32, i32
  }
}

</mosaic_0001>

<llo_original>
// kernel: _lambda_.3
$region0: #{_lambda_.3}
  #allocation0 [shape = 'u32[]', space=smem, size = 0x4, offset = 0x4, fixed_abs, tag = 'smem constant byte address 0x4 - core index']
  #allocation1 [shape = 'u32[144,128]{1,0:T(1,128)}', space=vmem, size = 0x12000, scoped, tag = 'internal scratch']
  #allocation2 [shape = 'f32[128,96]{1,0:T(8,128)}', space=vmem, size = 0x10000, scoped, tag = 'scratch operand']
  %s0 = inlined_call_operand.vmem [shape: bf16[128,32], index: 0, kind: input, shape index: {}]
  %s1 = inlined_call_operand.vmem [shape: bf16[32,96], index: 1, kind: input, shape index: {}]
  %s2 = inlined_call_operand.vmem [shape: bf16[128,96], index: 2, kind: output, shape index: {}]
  %s3 = sld [smem:[#allocation0]]
  $region26: #{_lambda_.3} parent=0
    _
  %s5 = ssub.s32 1, %s3
  %s6 = scalar_select 0, %s5, %s3
  // Predicated region
  $region2: #{_lambda_.3} parent=0 // pred_check
    _
  $region3: #{_lambda_.3} parent=0 // pred_check_branch
    %8 = sbr.rel (0) target = $region5
  $region4: #{_lambda_.3} parent=0 // pred_region
    _
  $region5: #{_lambda_.3} parent=0 // pred_fallthru
    _
  // Predicated region
  $region6: #{_lambda_.3} parent=0 // pred_check
    _
  $region7: #{_lambda_.3} parent=0 // pred_check_branch
    %10 = sbr.rel (0) target = $region9
  $region8: #{_lambda_.3} parent=0 // pred_region
    _
  $region9: #{_lambda_.3} parent=0 // pred_fallthru
    _
  %p12 = scmp.eq.s32.totalorder 0, 0
  // Predicated region
  $region10: #{_lambda_.3} parent=0 // pred_check
    %p13 = pneg %p12
  $region11: #{_lambda_.3} parent=0 // pred_check_branch
    %15 = sbr.rel (%p13) target = $region13
  $region12: #{_lambda_.3} parent=0 // pred_region
    %vm16 = vcmask 785408
    %17 = vst.msk [vmem:[#allocation2] sm:$0xff] %vm16, 0.0
    %18 = vst.msk [vmem:[#allocation2 + $0x8] sm:$0xff] %vm16, 0.0
    %19 = vst.msk [vmem:[#allocation2 + $0x10] sm:$0xff] %vm16, 0.0
    %20 = vst.msk [vmem:[#allocation2 + $0x18] sm:$0xff] %vm16, 0.0
    %21 = vst.msk [vmem:[#allocation2 + $0x20] sm:$0xff] %vm16, 0.0
    %22 = vst.msk [vmem:[#allocation2 + $0x28] sm:$0xff] %vm16, 0.0
    %23 = vst.msk [vmem:[#allocation2 + $0x30] sm:$0xff] %vm16, 0.0
    %24 = vst.msk [vmem:[#allocation2 + $0x38] sm:$0xff] %vm16, 0.0
    %25 = vst.msk [vmem:[#allocation2 + $0x40] sm:$0xff] %vm16, 0.0
    %26 = vst.msk [vmem:[#allocation2 + $0x48] sm:$0xff] %vm16, 0.0
    %27 = vst.msk [vmem:[#allocation2 + $0x50] sm:$0xff] %vm16, 0.0
    %28 = vst.msk [vmem:[#allocation2 + $0x58] sm:$0xff] %vm16, 0.0
    %29 = vst.msk [vmem:[#allocation2 + $0x60] sm:$0xff] %vm16, 0.0
    %30 = vst.msk [vmem:[#allocation2 + $0x68] sm:$0xff] %vm16, 0.0
    %31 = vst.msk [vmem:[#allocation2 + $0x70] sm:$0xff] %vm16, 0.0
    %32 = vst.msk [vmem:[#allocation2 + $0x78] sm:$0xff] %vm16, 0.0
  $region13: #{_lambda_.3} parent=0 // pred_fallthru
    _
  %v33 = vld [vmem:[#allocation2] sm:$0xff]
  %v34 = vld [vmem:[#allocation2 + $0x8] sm:$0xff]
  %v35 = vld [vmem:[#allocation2 + $0x10] sm:$0xff]
  %v36 = vld [vmem:[#allocation2 + $0x18] sm:$0xff]
  %v37 = vld [vmem:[#allocation2 + $0x20] sm:$0xff]
  %v38 = vld [vmem:[#allocation2 + $0x28] sm:$0xff]
  %v39 = vld [vmem:[#allocation2 + $0x30] sm:$0xff]
  %v40 = vld [vmem:[#allocation2 + $0x38] sm:$0xff]
  %v41 = vld [vmem:[#allocation2 + $0x40] sm:$0xff]
  %v42 = vld [vmem:[#allocation2 + $0x48] sm:$0xff]
  %v43 = vld [vmem:[#allocation2 + $0x50] sm:$0xff]
  %v44 = vld [vmem:[#allocation2 + $0x58] sm:$0xff]
  %v45 = vld [vmem:[#allocation2 + $0x60] sm:$0xff]
  %v46 = vld [vmem:[#allocation2 + $0x68] sm:$0xff]
  %v47 = vld [vmem:[#allocation2 + $0x70] sm:$0xff]
  %v48 = vld [vmem:[#allocation2 + $0x78] sm:$0xff]
  %v49 = vld [vmem:[%s0] sm:$0xf]
  %v50 = vld [vmem:[%s0 + $0x4] sm:$0xf]
  %v51 = vld [vmem:[%s0 + $0x8] sm:$0xf]
  %v52 = vld [vmem:[%s0 + $0xc] sm:$0xf]
  %v53 = vld [vmem:[%s0 + $0x10] sm:$0xf]
  %v54 = vld [vmem:[%s0 + $0x14] sm:$0xf]
  %v55 = vld [vmem:[%s0 + $0x18] sm:$0xf]
  %v56 = vld [vmem:[%s0 + $0x1c] sm:$0xf]
  %v57 = vld [vmem:[%s0 + $0x20] sm:$0xf]
  %v58 = vld [vmem:[%s0 + $0x24] sm:$0xf]
  %v59 = vld [vmem:[%s0 + $0x28] sm:$0xf]
  %v60 = vld [vmem:[%s0 + $0x2c] sm:$0xf]
  %v61 = vld [vmem:[%s0 + $0x30] sm:$0xf]
  %v62 = vld [vmem:[%s0 + $0x34] sm:$0xf]
  %v63 = vld [vmem:[%s0 + $0x38] sm:$0xf]
  %v64 = vld [vmem:[%s0 + $0x3c] sm:$0xf]
  %v65 = vld [vmem:[%s1] sm:$0xf]
  %v66 = vld [vmem:[%s1 + $0x4] sm:$0xf]
  %v67 = vld [vmem:[%s1 + $0x8] sm:$0xf]
  %v68 = vld [vmem:[%s1 + $0xc] sm:$0xf]
  %v85 = vunpack.c.l.b16 %v49
  %v86 = vunpack.c.l.b16 %v50
  %v87 = vunpack.c.l.b16 %v51
  %v88 = vunpack.c.l.b16 %v52
  %v89 = vunpack.c.l.b16 %v53
  %v90 = vunpack.c.l.b16 %v54
  %v91 = vunpack.c.l.b16 %v55
  %v92 = vunpack.c.l.b16 %v56
  %v93 = vunpack.c.l.b16 %v57
  %v94 = vunpack.c.l.b16 %v58
  %v95 = vunpack.c.l.b16 %v59
  %v96 = vunpack.c.l.b16 %v60
  %v97 = vunpack.c.l.b16 %v61
  %v98 = vunpack.c.l.b16 %v62
  %v99 = vunpack.c.l.b16 %v63
  %v100 = vunpack.c.l.b16 %v64
  %v101 = vpack.c.b16 %v86, %v85
  %v102 = vpack.c.b16 %v88, %v87
  %v103 = vpack.c.b16 %v90, %v89
  %v104 = vpack.c.b16 %v92, %v91
  %v105 = vpack.c.b16 %v94, %v93
  %v106 = vpack.c.b16 %v96, %v95
  %v107 = vpack.c.b16 %v98, %v97
  %v108 = vpack.c.b16 %v100, %v99
  %v113 = vunpack.c.l.b16 %v65
  %v114 = vunpack.c.l.b16 %v66
  %v115 = vunpack.c.l.b16 %v67
  %v116 = vunpack.c.l.b16 %v68
  %v117 = vpack.c.b16 %v114, %v113
  %v118 = vpack.c.b16 %v116, %v115
  %vm121 = vcmask 261120
  %v123 = vsel %vm121, %v101, 0
  %v126 = vsel %vm121, %v102, 0
  %v129 = vsel %vm121, %v103, 0
  %v132 = vsel %vm121, %v104, 0
  %v135 = vsel %vm121, %v105, 0
  %v138 = vsel %vm121, %v106, 0
  %v141 = vsel %vm121, %v107, 0
  %v144 = vsel %vm121, %v108, 0
  %146 = vmatprep.subr.bf16.mxu0 0
  %147 = vmatpush1.bf16.msra.mxu0 %v117
  %148 = vmatprep.subr.bf16.mxu0 0
  %149 = vmatpush1.bf16.msra.mxu0 %v118
  %150 = vmatprep.subr.bf16.mxu0 0
  %151 = vmatpush1.bf16.msra.mxu0 0
  %152 = vmatprep.subr.bf16.mxu0 0
  %153 = vmatpush1.bf16.msra.mxu0 0
  %154 = vmatprep.subr.bf16.mxu0 0
  %155 = vmatpush1.bf16.msra.mxu0 0
  %156 = vmatprep.subr.bf16.mxu0 0
  %157 = vmatpush1.bf16.msra.mxu0 0
  %158 = vmatprep.subr.bf16.mxu0 0
  %159 = vmatpush1.bf16.msra.mxu0 0
  %160 = vmatprep.subr.bf16.mxu0 0
  %161 = vmatpush1.bf16.msra.mxu0 0
  %162 = vmatprep.subr.bf16.mxu0 0
  %163 = vmatpush1.bf16.msra.mxu0 0
  %164 = vmatprep.subr.bf16.mxu0 0
  %165 = vmatpush1.bf16.msra.mxu0 0
  %166 = vmatprep.subr.bf16.mxu0 0
  %167 = vmatpush1.bf16.msra.mxu0 0
  %168 = vmatprep.subr.bf16.mxu0 0
  %169 = vmatpush1.bf16.msra.mxu0 0
  %170 = vmatprep.subr.bf16.mxu0 0
  %171 = vmatpush1.bf16.msra.mxu0 0
  %172 = vmatprep.subr.bf16.mxu0 0
  %173 = vmatpush1.bf16.msra.mxu0 0
  %174 = vmatprep.subr.bf16.mxu0 0
  %175 = vmatpush1.bf16.msra.mxu0 0
  %176 = vmatprep.subr.bf16.mxu0 0
  %177 = vmatpush1.bf16.msra.mxu0 0
  %178 = vmatprep.mubr.bf16.mxu0 0
  %179 = vmatmul.mubr.bf16.gmra.mrb[0].mxu0 %v123
  %v180 = vpop.f32.mrb[0].mxu0
  %v181 = vadd.f32 0.0, %v180
  %v182 = vpop.f32.mrb[0].mxu0
  %v183 = vpop.f32.mrb[0].mxu0
  %v184 = vadd.f32 0.0, %v183
  %v185 = vpop.f32.mrb[0].mxu0
  %186 = vmatprep.mubr.bf16.mxu0 0
  %187 = vmatmul.mubr.bf16.gmra.mrb[0].mxu0 %v126
  %v188 = vpop.f32.mrb[0].mxu0
  %v189 = vadd.f32 0.0, %v188
  %v190 = vpop.f32.mrb[0].mxu0
  %v191 = vpop.f32.mrb[0].mxu0
  %v192 = vadd.f32 0.0, %v191
  %v193 = vpop.f32.mrb[0].mxu0
  %194 = vmatprep.mubr.bf16.mxu0 0
  %195 = vmatmul.mubr.bf16.gmra.mrb[0].mxu0 %v129
  %v196 = vpop.f32.mrb[0].mxu0
  %v197 = vadd.f32 0.0, %v196
  %v198 = vpop.f32.mrb[0].mxu0
  %v199 = vpop.f32.mrb[0].mxu0
  %v200 = vadd.f32 0.0, %v199
  %v201 = vpop.f32.mrb[0].mxu0
  %202 = vmatprep.mubr.bf16.mxu0 0
  %203 = vmatmul.mubr.bf16.gmra.mrb[0].mxu0 %v132
  %v204 = vpop.f32.mrb[0].mxu0
  %v205 = vadd.f32 0.0, %v204
  %v206 = vpop.f32.mrb[0].mxu0
  %v207 = vpop.f32.mrb[0].mxu0
  %v208 = vadd.f32 0.0, %v207
  %v209 = vpop.f32.mrb[0].mxu0
  %210 = vmatprep.mubr.bf16.mxu0 0
  %211 = vmatmul.mubr.bf16.gmra.mrb[0].mxu0 %v135
  %v212 = vpop.f32.mrb[0].mxu0
  %v213 = vadd.f32 0.0, %v212
  %v214 = vpop.f32.mrb[0].mxu0
  %v215 = vpop.f32.mrb[0].mxu0
  %v216 = vadd.f32 0.0, %v215
  %v217 = vpop.f32.mrb[0].mxu0
  %218 = vmatprep.mubr.bf16.mxu0 0
  %219 = vmatmul.mubr.bf16.gmra.mrb[0].mxu0 %v138
  %v220 = vpop.f32.mrb[0].mxu0
  %v221 = vadd.f32 0.0, %v220
  %v222 = vpop.f32.mrb[0].mxu0
  %v223 = vpop.f32.mrb[0].mxu0
  %v224 = vadd.f32 0.0, %v223
  %v225 = vpop.f32.mrb[0].mxu0
  %226 = vmatprep.mubr.bf16.mxu0 0
  %227 = vmatmul.mubr.bf16.gmra.mrb[0].mxu0 %v141
  %v228 = vpop.f32.mrb[0].mxu0
  %v229 = vadd.f32 0.0, %v228
  %v230 = vpop.f32.mrb[0].mxu0
  %v231 = vpop.f32.mrb[0].mxu0
  %v232 = vadd.f32 0.0, %v231
  %v233 = vpop.f32.mrb[0].mxu0
  %234 = vmatprep.mubr.bf16.mxu0 0
  %235 = vmatmul.mubr.bf16.gmra.mrb[0].mxu0 %v144
  %v236 = vpop.f32.mrb[0].mxu0
  %v237 = vadd.f32 0.0, %v236
  %v238 = vpop.f32.mrb[0].mxu0
  %v239 = vpop.f32.mrb[0].mxu0
  %v240 = vadd.f32 0.0, %v239
  %v241 = vpop.f32.mrb[0].mxu0
  %242 = vdwg.mxu0
  %v243 = vadd.f32 %v33, %v181
  %v244 = vadd.f32 %v34, %v184
  %v245 = vadd.f32 %v35, %v189
  %v246 = vadd.f32 %v36, %v192
  %v247 = vadd.f32 %v37, %v197
  %v248 = vadd.f32 %v38, %v200
  %v249 = vadd.f32 %v39, %v205
  %v250 = vadd.f32 %v40, %v208
  %v251 = vadd.f32 %v41, %v213
  %v252 = vadd.f32 %v42, %v216
  %v253 = vadd.f32 %v43, %v221
  %v254 = vadd.f32 %v44, %v224
  %v255 = vadd.f32 %v45, %v229
  %v256 = vadd.f32 %v46, %v232
  %v257 = vadd.f32 %v47, %v237
  %v258 = vadd.f32 %v48, %v240
  %vm259 = vcmask 785408
  %260 = vst.msk [vmem:[#allocation2] sm:$0xff] %vm259, %v243
  %261 = vst.msk [vmem:[#allocation2 + $0x8] sm:$0xff] %vm259, %v244
  %262 = vst.msk [vmem:[#allocation2 + $0x10] sm:$0xff] %vm259, %v245
  %263 = vst.msk [vmem:[#allocation2 + $0x18] sm:$0xff] %vm259, %v246
  %264 = vst.msk [vmem:[#allocation2 + $0x20] sm:$0xff] %vm259, %v247
  %265 = vst.msk [vmem:[#allocation2 + $0x28] sm:$0xff] %vm259, %v248
  %266 = vst.msk [vmem:[#allocation2 + $0x30] sm:$0xff] %vm259, %v249
  %267 = vst.msk [vmem:[#allocation2 + $0x38] sm:$0xff] %vm259, %v250
  %268 = vst.msk [vmem:[#allocation2 + $0x40] sm:$0xff] %vm259, %v251
  %269 = vst.msk [vmem:[#allocation2 + $0x48] sm:$0xff] %vm259, %v252
  %270 = vst.msk [vmem:[#allocation2 + $0x50] sm:$0xff] %vm259, %v253
  %271 = vst.msk [vmem:[#allocation2 + $0x58] sm:$0xff] %vm259, %v254
  %272 = vst.msk [vmem:[#allocation2 + $0x60] sm:$0xff] %vm259, %v255
  %273 = vst.msk [vmem:[#allocation2 + $0x68] sm:$0xff] %vm259, %v256
  %274 = vst.msk [vmem:[#allocation2 + $0x70] sm:$0xff] %vm259, %v257
  %275 = vst.msk [vmem:[#allocation2 + $0x78] sm:$0xff] %vm259, %v258
  // Predicated region
  $region14: #{_lambda_.3} parent=0 // pred_check
    %p276 = pneg %p12
  $region15: #{_lambda_.3} parent=0 // pred_check_branch
    %278 = sbr.rel (%p276) target = $region17
  $region16: #{_lambda_.3} parent=0 // pred_region
    %v279 = vld [vmem:[#allocation2] sm:$0xff]
    %v280 = vld [vmem:[#allocation2 + $0x8] sm:$0xff]
    %v281 = vld [vmem:[#allocation2 + $0x10] sm:$0xff]
    %v282 = vld [vmem:[#allocation2 + $0x18] sm:$0xff]
    %v283 = vld [vmem:[#allocation2 + $0x20] sm:$0xff]
    %v284 = vld [vmem:[#allocation2 + $0x28] sm:$0xff]
    %v285 = vld [vmem:[#allocation2 + $0x30] sm:$0xff]
    %v286 = vld [vmem:[#allocation2 + $0x38] sm:$0xff]
    %v287 = vld [vmem:[#allocation2 + $0x40] sm:$0xff]
    %v288 = vld [vmem:[#allocation2 + $0x48] sm:$0xff]
    %v289 = vld [vmem:[#allocation2 + $0x50] sm:$0xff]
    %v290 = vld [vmem:[#allocation2 + $0x58] sm:$0xff]
    %v291 = vld [vmem:[#allocation2 + $0x60] sm:$0xff]
    %v292 = vld [vmem:[#allocation2 + $0x68] sm:$0xff]
    %v293 = vld [vmem:[#allocation2 + $0x70] sm:$0xff]
    %v294 = vld [vmem:[#allocation2 + $0x78] sm:$0xff]
    %v295 = vpack.c.bf16 %v280, %v279
    %v296 = vpack.c.bf16 %v282, %v281
    %v297 = vpack.c.bf16 %v284, %v283
    %v298 = vpack.c.bf16 %v286, %v285
    %v299 = vpack.c.bf16 %v288, %v287
    %v300 = vpack.c.bf16 %v290, %v289
    %v301 = vpack.c.bf16 %v292, %v291
    %v302 = vpack.c.bf16 %v294, %v293
    %v311 = vunpack.c.l.b16 %v295
    %v312 = vunpack.c.h.b16 %v295
    %v313 = vunpack.c.l.b16 %v296
    %v314 = vunpack.c.h.b16 %v296
    %v315 = vunpack.c.l.b16 %v297
    %v316 = vunpack.c.h.b16 %v297
    %v317 = vunpack.c.l.b16 %v298
    %v318 = vunpack.c.h.b16 %v298
    %v319 = vunpack.c.l.b16 %v299
    %v320 = vunpack.c.h.b16 %v299
    %v321 = vunpack.c.l.b16 %v300
    %v322 = vunpack.c.h.b16 %v300
    %v323 = vunpack.c.l.b16 %v301
    %v324 = vunpack.c.h.b16 %v301
    %v325 = vunpack.c.l.b16 %v302
    %v326 = vunpack.c.h.b16 %v302
    %v327 = vpack.c.b16 %v311, %v311
    %v328 = vpack.c.b16 %v312, %v312
    %v329 = vpack.c.b16 %v313, %v313
    %v330 = vpack.c.b16 %v314, %v314
    %v331 = vpack.c.b16 %v315, %v315
    %v332 = vpack.c.b16 %v316, %v316
    %v333 = vpack.c.b16 %v317, %v317
    %v334 = vpack.c.b16 %v318, %v318
    %v335 = vpack.c.b16 %v319, %v319
    %v336 = vpack.c.b16 %v320, %v320
    %v337 = vpack.c.b16 %v321, %v321
    %v338 = vpack.c.b16 %v322, %v322
    %v339 = vpack.c.b16 %v323, %v323
    %v340 = vpack.c.b16 %v324, %v324
    %v341 = vpack.c.b16 %v325, %v325
    %v342 = vpack.c.b16 %v326, %v326
    %vm359 = vcmask 781312
    %360 = vst.msk [vmem:[%s2] sm:$0xf] %vm359, %v327
    %361 = vst.msk [vmem:[%s2 + $0x4] sm:$0xf] %vm359, %v328
    %362 = vst.msk [vmem:[%s2 + $0x8] sm:$0xf] %vm359, %v329
    %363 = vst.msk [vmem:[%s2 + $0xc] sm:$0xf] %vm359, %v330
    %364 = vst.msk [vmem:[%s2 + $0x10] sm:$0xf] %vm359, %v331
    %365 = vst.msk [vmem:[%s2 + $0x14] sm:$0xf] %vm359, %v332
    %366 = vst.msk [vmem:[%s2 + $0x18] sm:$0xf] %vm359, %v333
    %367 = vst.msk [vmem:[%s2 + $0x1c] sm:$0xf] %vm359, %v334
    %368 = vst.msk [vmem:[%s2 + $0x20] sm:$0xf] %vm359, %v335
    %369 = vst.msk [vmem:[%s2 + $0x24] sm:$0xf] %vm359, %v336
    %370 = vst.msk [vmem:[%s2 + $0x28] sm:$0xf] %vm359, %v337
    %371 = vst.msk [vmem:[%s2 + $0x2c] sm:$0xf] %vm359, %v338
    %372 = vst.msk [vmem:[%s2 + $0x30] sm:$0xf] %vm359, %v339
    %373 = vst.msk [vmem:[%s2 + $0x34] sm:$0xf] %vm359, %v340
    %374 = vst.msk [vmem:[%s2 + $0x38] sm:$0xf] %vm359, %v341
    %375 = vst.msk [vmem:[%s2 + $0x3c] sm:$0xf] %vm359, %v342
  $region17: #{_lambda_.3} parent=0 // pred_fallthru
    _
  // Predicated region
  $region18: #{_lambda_.3} parent=0 // pred_check
    _
  $region19: #{_lambda_.3} parent=0 // pred_check_branch
    %377 = sbr.rel (0) target = $region21
  $region20: #{_lambda_.3} parent=0 // pred_region
    _
  $region21: #{_lambda_.3} parent=0 // pred_fallthru
    _
  // Predicated region
  $region22: #{_lambda_.3} parent=0 // pred_check
    _
  $region23: #{_lambda_.3} parent=0 // pred_check_branch
    %379 = sbr.rel (0) target = $region25
  $region24: #{_lambda_.3} parent=0 // pred_region
    _
  $region25: #{_lambda_.3} parent=0 // pred_fallthru
    _

// kernel: _lambda_.5
$region0: #{_lambda_.5}
  #allocation0 [shape = 'u32[]', space=smem, size = 0x4, offset = 0x4, fixed_abs, tag = 'smem constant byte address 0x4 - core index']
  #allocation1 [shape = 'u32[144,128]{1,0:T(1,128)}', space=vmem, size = 0x12000, scoped, tag = 'internal scratch']
  #allocation2 [shape = 'f32[128,32]{1,0:T(8,128)}', space=vmem, size = 0x10000, scoped, tag = 'scratch operand']
  %s0 = inlined_call_operand.vmem [shape: bf16[128,32], index: 0, kind: input, shape index: {}]
  %s1 = inlined_call_operand.vmem [shape: bf16[32,32], index: 1, kind: input, shape index: {}]
  %s2 = inlined_call_operand.vmem [shape: f32[1,32], index: 2, kind: input, shape index: {}]
  %s3 = inlined_call_operand.vmem [shape: f32[128,32], index: 3, kind: output, shape index: {}]
  %s4 = sld [smem:[#allocation0]]
  $region30: #{_lambda_.5} parent=0
    _
  %s6 = ssub.s32 1, %s4
  %s7 = scalar_select 0, %s6, %s4
  // Predicated region
  $region2: #{_lambda_.5} parent=0 // pred_check
    _
  $region3: #{_lambda_.5} parent=0 // pred_check_branch
    %9 = sbr.rel (0) target = $region5
  $region4: #{_lambda_.5} parent=0 // pred_region
    _
  $region5: #{_lambda_.5} parent=0 // pred_fallthru
    _
  // Predicated region
  $region6: #{_lambda_.5} parent=0 // pred_check
    _
  $region7: #{_lambda_.5} parent=0 // pred_check_branch
    %11 = sbr.rel (0) target = $region9
  $region8: #{_lambda_.5} parent=0 // pred_region
    _
  $region9: #{_lambda_.5} parent=0 // pred_fallthru
    _
  // Predicated region
  $region10: #{_lambda_.5} parent=0 // pred_check
    _
  $region11: #{_lambda_.5} parent=0 // pred_check_branch
    %13 = sbr.rel (0) target = $region13
  $region12: #{_lambda_.5} parent=0 // pred_region
    _
  $region13: #{_lambda_.5} parent=0 // pred_fallthru
    _
  %p15 = scmp.eq.s32.totalorder 0, 0
  // Predicated region
  $region14: #{_lambda_.5} parent=0 // pred_check
    %p16 = pneg %p15
  $region15: #{_lambda_.5} parent=0 // pred_check_branch
    %18 = sbr.rel (%p16) target = $region17
  $region16: #{_lambda_.5} parent=0 // pred_region
    %vm19 = vcmask 261120
    %20 = vst.msk [vmem:[#allocation2] sm:$0xff] %vm19, 0.0
    %21 = vst.msk [vmem:[#allocation2 + $0x8] sm:$0xff] %vm19, 0.0
    %22 = vst.msk [vmem:[#allocation2 + $0x10] sm:$0xff] %vm19, 0.0
    %23 = vst.msk [vmem:[#allocation2 + $0x18] sm:$0xff] %vm19, 0.0
    %24 = vst.msk [vmem:[#allocation2 + $0x20] sm:$0xff] %vm19, 0.0
    %25 = vst.msk [vmem:[#allocation2 + $0x28] sm:$0xff] %vm19, 0.0
    %26 = vst.msk [vmem:[#allocation2 + $0x30] sm:$0xff] %vm19, 0.0
    %27 = vst.msk [vmem:[#allocation2 + $0x38] sm:$0xff] %vm19, 0.0
    %28 = vst.msk [vmem:[#allocation2 + $0x40] sm:$0xff] %vm19, 0.0
    %29 = vst.msk [vmem:[#allocation2 + $0x48] sm:$0xff] %vm19, 0.0
    %30 = vst.msk [vmem:[#allocation2 + $0x50] sm:$0xff] %vm19, 0.0
    %31 = vst.msk [vmem:[#allocation2 + $0x58] sm:$0xff] %vm19, 0.0
    %32 = vst.msk [vmem:[#allocation2 + $0x60] sm:$0xff] %vm19, 0.0
    %33 = vst.msk [vmem:[#allocation2 + $0x68] sm:$0xff] %vm19, 0.0
    %34 = vst.msk [vmem:[#allocation2 + $0x70] sm:$0xff] %vm19, 0.0
    %35 = vst.msk [vmem:[#allocation2 + $0x78] sm:$0xff] %vm19, 0.0
  $region17: #{_lambda_.5} parent=0 // pred_fallthru
    _
  %v36 = vld [vmem:[#allocation2] sm:$0xff]
  %v37 = vld [vmem:[#allocation2 + $0x8] sm:$0xff]
  %v38 = vld [vmem:[#allocation2 + $0x10] sm:$0xff]
  %v39 = vld [vmem:[#allocation2 + $0x18] sm:$0xff]
  %v40 = vld [vmem:[#allocation2 + $0x20] sm:$0xff]
  %v41 = vld [vmem:[#allocation2 + $0x28] sm:$0xff]
  %v42 = vld [vmem:[#allocation2 + $0x30] sm:$0xff]
  %v43 = vld [vmem:[#allocation2 + $0x38] sm:$0xff]
  %v44 = vld [vmem:[#allocation2 + $0x40] sm:$0xff]
  %v45 = vld [vmem:[#allocation2 + $0x48] sm:$0xff]
  %v46 = vld [vmem:[#allocation2 + $0x50] sm:$0xff]
  %v47 = vld [vmem:[#allocation2 + $0x58] sm:$0xff]
  %v48 = vld [vmem:[#allocation2 + $0x60] sm:$0xff]
  %v49 = vld [vmem:[#allocation2 + $0x68] sm:$0xff]
  %v50 = vld [vmem:[#allocation2 + $0x70] sm:$0xff]
  %v51 = vld [vmem:[#allocation2 + $0x78] sm:$0xff]
  %v52 = vld [vmem:[%s0] sm:$0xf]
  %v53 = vld [vmem:[%s0 + $0x4] sm:$0xf]
  %v54 = vld [vmem:[%s0 + $0x8] sm:$0xf]
  %v55 = vld [vmem:[%s0 + $0xc] sm:$0xf]
  %v56 = vld [vmem:[%s0 + $0x10] sm:$0xf]
  %v57 = vld [vmem:[%s0 + $0x14] sm:$0xf]
  %v58 = vld [vmem:[%s0 + $0x18] sm:$0xf]
  %v59 = vld [vmem:[%s0 + $0x1c] sm:$0xf]
  %v60 = vld [vmem:[%s0 + $0x20] sm:$0xf]
  %v61 = vld [vmem:[%s0 + $0x24] sm:$0xf]
  %v62 = vld [vmem:[%s0 + $0x28] sm:$0xf]
  %v63 = vld [vmem:[%s0 + $0x2c] sm:$0xf]
  %v64 = vld [vmem:[%s0 + $0x30] sm:$0xf]
  %v65 = vld [vmem:[%s0 + $0x34] sm:$0xf]
  %v66 = vld [vmem:[%s0 + $0x38] sm:$0xf]
  %v67 = vld [vmem:[%s0 + $0x3c] sm:$0xf]
  %v68 = vld [vmem:[%s1] sm:$0xf]
  %v69 = vld [vmem:[%s1 + $0x4] sm:$0xf]
  %v70 = vld [vmem:[%s1 + $0x8] sm:$0xf]
  %v71 = vld [vmem:[%s1 + $0xc] sm:$0xf]
  %v88 = vunpack.c.l.b16 %v52
  %v89 = vunpack.c.l.b16 %v53
  %v90 = vunpack.c.l.b16 %v54
  %v91 = vunpack.c.l.b16 %v55
  %v92 = vunpack.c.l.b16 %v56
  %v93 = vunpack.c.l.b16 %v57
  %v94 = vunpack.c.l.b16 %v58
  %v95 = vunpack.c.l.b16 %v59
  %v96 = vunpack.c.l.b16 %v60
  %v97 = vunpack.c.l.b16 %v61
  %v98 = vunpack.c.l.b16 %v62
  %v99 = vunpack.c.l.b16 %v63
  %v100 = vunpack.c.l.b16 %v64
  %v101 = vunpack.c.l.b16 %v65
  %v102 = vunpack.c.l.b16 %v66
  %v103 = vunpack.c.l.b16 %v67
  %v104 = vpack.c.b16 %v89, %v88
  %v105 = vpack.c.b16 %v91, %v90
  %v106 = vpack.c.b16 %v93, %v92
  %v107 = vpack.c.b16 %v95, %v94
  %v108 = vpack.c.b16 %v97, %v96
  %v109 = vpack.c.b16 %v99, %v98
  %v110 = vpack.c.b16 %v101, %v100
  %v111 = vpack.c.b16 %v103, %v102
  %v116 = vunpack.c.l.b16 %v68
  %v117 = vunpack.c.l.b16 %v69
  %v118 = vunpack.c.l.b16 %v70
  %v119 = vunpack.c.l.b16 %v71
  %v120 = vpack.c.b16 %v117, %v116
  %v121 = vpack.c.b16 %v119, %v118
  %vm124 = vcmask 261120
  %v126 = vsel %vm124, %v104, 0
  %v129 = vsel %vm124, %v105, 0
  %v132 = vsel %vm124, %v106, 0
  %v135 = vsel %vm124, %v107, 0
  %v138 = vsel %vm124, %v108, 0
  %v141 = vsel %vm124, %v109, 0
  %v144 = vsel %vm124, %v110, 0
  %v147 = vsel %vm124, %v111, 0
  %149 = vmatprep.subr.bf16.mxu0 0
  %150 = vmatpush1.bf16.msra.mxu0 %v120
  %151 = vmatprep.subr.bf16.mxu0 0
  %152 = vmatpush1.bf16.msra.mxu0 %v121
  %153 = vmatprep.subr.bf16.mxu0 0
  %154 = vmatpush1.bf16.msra.mxu0 0
  %155 = vmatprep.subr.bf16.mxu0 0
  %156 = vmatpush1.bf16.msra.mxu0 0
  %157 = vmatprep.subr.bf16.mxu0 0
  %158 = vmatpush1.bf16.msra.mxu0 0
  %159 = vmatprep.subr.bf16.mxu0 0
  %160 = vmatpush1.bf16.msra.mxu0 0
  %161 = vmatprep.subr.bf16.mxu0 0
  %162 = vmatpush1.bf16.msra.mxu0 0
  %163 = vmatprep.subr.bf16.mxu0 0
  %164 = vmatpush1.bf16.msra.mxu0 0
  %165 = vmatprep.subr.bf16.mxu0 0
  %166 = vmatpush1.bf16.msra.mxu0 0
  %167 = vmatprep.subr.bf16.mxu0 0
  %168 = vmatpush1.bf16.msra.mxu0 0
  %169 = vmatprep.subr.bf16.mxu0 0
  %170 = vmatpush1.bf16.msra.mxu0 0
  %171 = vmatprep.subr.bf16.mxu0 0
  %172 = vmatpush1.bf16.msra.mxu0 0
  %173 = vmatprep.subr.bf16.mxu0 0
  %174 = vmatpush1.bf16.msra.mxu0 0
  %175 = vmatprep.subr.bf16.mxu0 0
  %176 = vmatpush1.bf16.msra.mxu0 0
  %177 = vmatprep.subr.bf16.mxu0 0
  %178 = vmatpush1.bf16.msra.mxu0 0
  %179 = vmatprep.subr.bf16.mxu0 0
  %180 = vmatpush1.bf16.msra.mxu0 0
  %181 = vmatprep.mubr.bf16.mxu0 0
  %182 = vmatmul.mubr.bf16.gmra.mrb[0].mxu0 %v126
  %v183 = vpop.f32.mrb[0].mxu0
  %v184 = vadd.f32 0.0, %v183
  %v185 = vpop.f32.mrb[0].mxu0
  %v186 = vpop.f32.mrb[0].mxu0
  %v187 = vadd.f32 0.0, %v186
  %v188 = vpop.f32.mrb[0].mxu0
  %189 = vmatprep.mubr.bf16.mxu0 0
  %190 = vmatmul.mubr.bf16.gmra.mrb[0].mxu0 %v129
  %v191 = vpop.f32.mrb[0].mxu0
  %v192 = vadd.f32 0.0, %v191
  %v193 = vpop.f32.mrb[0].mxu0
  %v194 = vpop.f32.mrb[0].mxu0
  %v195 = vadd.f32 0.0, %v194
  %v196 = vpop.f32.mrb[0].mxu0
  %197 = vmatprep.mubr.bf16.mxu0 0
  %198 = vmatmul.mubr.bf16.gmra.mrb[0].mxu0 %v132
  %v199 = vpop.f32.mrb[0].mxu0
  %v200 = vadd.f32 0.0, %v199
  %v201 = vpop.f32.mrb[0].mxu0
  %v202 = vpop.f32.mrb[0].mxu0
  %v203 = vadd.f32 0.0, %v202
  %v204 = vpop.f32.mrb[0].mxu0
  %205 = vmatprep.mubr.bf16.mxu0 0
  %206 = vmatmul.mubr.bf16.gmra.mrb[0].mxu0 %v135
  %v207 = vpop.f32.mrb[0].mxu0
  %v208 = vadd.f32 0.0, %v207
  %v209 = vpop.f32.mrb[0].mxu0
  %v210 = vpop.f32.mrb[0].mxu0
  %v211 = vadd.f32 0.0, %v210
  %v212 = vpop.f32.mrb[0].mxu0
  %213 = vmatprep.mubr.bf16.mxu0 0
  %214 = vmatmul.mubr.bf16.gmra.mrb[0].mxu0 %v138
  %v215 = vpop.f32.mrb[0].mxu0
  %v216 = vadd.f32 0.0, %v215
  %v217 = vpop.f32.mrb[0].mxu0
  %v218 = vpop.f32.mrb[0].mxu0
  %v219 = vadd.f32 0.0, %v218
  %v220 = vpop.f32.mrb[0].mxu0
  %221 = vmatprep.mubr.bf16.mxu0 0
  %222 = vmatmul.mubr.bf16.gmra.mrb[0].mxu0 %v141
  %v223 = vpop.f32.mrb[0].mxu0
  %v224 = vadd.f32 0.0, %v223
  %v225 = vpop.f32.mrb[0].mxu0
  %v226 = vpop.f32.mrb[0].mxu0
  %v227 = vadd.f32 0.0, %v226
  %v228 = vpop.f32.mrb[0].mxu0
  %229 = vmatprep.mubr.bf16.mxu0 0
  %230 = vmatmul.mubr.bf16.gmra.mrb[0].mxu0 %v144
  %v231 = vpop.f32.mrb[0].mxu0
  %v232 = vadd.f32 0.0, %v231
  %v233 = vpop.f32.mrb[0].mxu0
  %v234 = vpop.f32.mrb[0].mxu0
  %v235 = vadd.f32 0.0, %v234
  %v236 = vpop.f32.mrb[0].mxu0
  %237 = vmatprep.mubr.bf16.mxu0 0
  %238 = vmatmul.mubr.bf16.gmra.mrb[0].mxu0 %v147
  %v239 = vpop.f32.mrb[0].mxu0
  %v240 = vadd.f32 0.0, %v239
  %v241 = vpop.f32.mrb[0].mxu0
  %v242 = vpop.f32.mrb[0].mxu0
  %v243 = vadd.f32 0.0, %v242
  %v244 = vpop.f32.mrb[0].mxu0
  %245 = vdwg.mxu0
  %v246 = vadd.f32 %v36, %v184
  %v247 = vadd.f32 %v37, %v187
  %v248 = vadd.f32 %v38, %v192
  %v249 = vadd.f32 %v39, %v195
  %v250 = vadd.f32 %v40, %v200
  %v251 = vadd.f32 %v41, %v203
  %v252 = vadd.f32 %v42, %v208
  %v253 = vadd.f32 %v43, %v211
  %v254 = vadd.f32 %v44, %v216
  %v255 = vadd.f32 %v45, %v219
  %v256 = vadd.f32 %v46, %v224
  %v257 = vadd.f32 %v47, %v227
  %v258 = vadd.f32 %v48, %v232
  %v259 = vadd.f32 %v49, %v235
  %v260 = vadd.f32 %v50, %v240
  %v261 = vadd.f32 %v51, %v243
  %262 = vst.msk [vmem:[#allocation2] sm:$0xff] %vm124, %v246
  %263 = vst.msk [vmem:[#allocation2 + $0x8] sm:$0xff] %vm124, %v247
  %264 = vst.msk [vmem:[#allocation2 + $0x10] sm:$0xff] %vm124, %v248
  %265 = vst.msk [vmem:[#allocation2 + $0x18] sm:$0xff] %vm124, %v249
  %266 = vst.msk [vmem:[#allocation2 + $0x20] sm:$0xff] %vm124, %v250
  %267 = vst.msk [vmem:[#allocation2 + $0x28] sm:$0xff] %vm124, %v251
  %268 = vst.msk [vmem:[#allocation2 + $0x30] sm:$0xff] %vm124, %v252
  %269 = vst.msk [vmem:[#allocation2 + $0x38] sm:$0xff] %vm124, %v253
  %270 = vst.msk [vmem:[#allocation2 + $0x40] sm:$0xff] %vm124, %v254
  %271 = vst.msk [vmem:[#allocation2 + $0x48] sm:$0xff] %vm124, %v255
  %272 = vst.msk [vmem:[#allocation2 + $0x50] sm:$0xff] %vm124, %v256
  %273 = vst.msk [vmem:[#allocation2 + $0x58] sm:$0xff] %vm124, %v257
  %274 = vst.msk [vmem:[#allocation2 + $0x60] sm:$0xff] %vm124, %v258
  %275 = vst.msk [vmem:[#allocation2 + $0x68] sm:$0xff] %vm124, %v259
  %276 = vst.msk [vmem:[#allocation2 + $0x70] sm:$0xff] %vm124, %v260
  %277 = vst.msk [vmem:[#allocation2 + $0x78] sm:$0xff] %vm124, %v261
  // Predicated region
  $region18: #{_lambda_.5} parent=0 // pred_check
    %p278 = pneg %p15
  $region19: #{_lambda_.5} parent=0 // pred_check_branch
    %280 = sbr.rel (%p278) target = $region21
  $region20: #{_lambda_.5} parent=0 // pred_region
    %v281 = vld [vmem:[#allocation2] sm:$0xff]
    %v282 = vld [vmem:[#allocation2 + $0x8] sm:$0xff]
    %v283 = vld [vmem:[#allocation2 + $0x10] sm:$0xff]
    %v284 = vld [vmem:[#allocation2 + $0x18] sm:$0xff]
    %v285 = vld [vmem:[#allocation2 + $0x20] sm:$0xff]
    %v286 = vld [vmem:[#allocation2 + $0x28] sm:$0xff]
    %v287 = vld [vmem:[#allocation2 + $0x30] sm:$0xff]
    %v288 = vld [vmem:[#allocation2 + $0x38] sm:$0xff]
    %v289 = vld [vmem:[#allocation2 + $0x40] sm:$0xff]
    %v290 = vld [vmem:[#allocation2 + $0x48] sm:$0xff]
    %v291 = vld [vmem:[#allocation2 + $0x50] sm:$0xff]
    %v292 = vld [vmem:[#allocation2 + $0x58] sm:$0xff]
    %v293 = vld [vmem:[#allocation2 + $0x60] sm:$0xff]
    %v294 = vld [vmem:[#allocation2 + $0x68] sm:$0xff]
    %v295 = vld [vmem:[#allocation2 + $0x70] sm:$0xff]
    %v296 = vld [vmem:[#allocation2 + $0x78] sm:$0xff]
    %v297 = vld [vmem:[%s2] sm:$0x1]
    %v299 = vlaneseq
    %v300 = vshrl.u32 %v299, 7
    %v301 = vsub.s32 0, %v300
    %v302 = vrot.slane %v297, %v301
    %v304 = vadd.f32 %v281, %v302
    %v305 = vadd.f32 %v282, %v302
    %v306 = vadd.f32 %v283, %v302
    %v307 = vadd.f32 %v284, %v302
    %v308 = vadd.f32 %v285, %v302
    %v309 = vadd.f32 %v286, %v302
    %v310 = vadd.f32 %v287, %v302
    %v311 = vadd.f32 %v288, %v302
    %v312 = vadd.f32 %v289, %v302
    %v313 = vadd.f32 %v290, %v302
    %v314 = vadd.f32 %v291, %v302
    %v315 = vadd.f32 %v292, %v302
    %v316 = vadd.f32 %v293, %v302
    %v317 = vadd.f32 %v294, %v302
    %v318 = vadd.f32 %v295, %v302
    %v319 = vadd.f32 %v296, %v302
    %320 = vst.msk [vmem:[%s3] sm:$0xff] %vm124, %v304
    %321 = vst.msk [vmem:[%s3 + $0x8] sm:$0xff] %vm124, %v305
    %322 = vst.msk [vmem:[%s3 + $0x10] sm:$0xff] %vm124, %v306
    %323 = vst.msk [vmem:[%s3 + $0x18] sm:$0xff] %vm124, %v307
    %324 = vst.msk [vmem:[%s3 + $0x20] sm:$0xff] %vm124, %v308
    %325 = vst.msk [vmem:[%s3 + $0x28] sm:$0xff] %vm124, %v309
    %326 = vst.msk [vmem:[%s3 + $0x30] sm:$0xff] %vm124, %v310
    %327 = vst.msk [vmem:[%s3 + $0x38] sm:$0xff] %vm124, %v311
    %328 = vst.msk [vmem:[%s3 + $0x40] sm:$0xff] %vm124, %v312
    %329 = vst.msk [vmem:[%s3 + $0x48] sm:$0xff] %vm124, %v313
    %330 = vst.msk [vmem:[%s3 + $0x50] sm:$0xff] %vm124, %v314
    %331 = vst.msk [vmem:[%s3 + $0x58] sm:$0xff] %vm124, %v315
    %332 = vst.msk [vmem:[%s3 + $0x60] sm:$0xff] %vm124, %v316
    %333 = vst.msk [vmem:[%s3 + $0x68] sm:$0xff] %vm124, %v317
    %334 = vst.msk [vmem:[%s3 + $0x70] sm:$0xff] %vm124, %v318
    %335 = vst.msk [vmem:[%s3 + $0x78] sm:$0xff] %vm124, %v319
  $region21: #{_lambda_.5} parent=0 // pred_fallthru
    _
  // Predicated region
  $region22: #{_lambda_.5} parent=0 // pred_check
    _
  $region23: #{_lambda_.5} parent=0 // pred_check_branch
    %337 = sbr.rel (0) target = $region25
  $region24: #{_lambda_.5} parent=0 // pred_region
    _
  $region25: #{_lambda_.5} parent=0 // pred_fallthru
    _
  // Predicated region
  $region26: #{_lambda_.5} parent=0 // pred_check
    _
  $region27: #{_lambda_.5} parent=0 // pred_check_branch
    %339 = sbr.rel (0) target = $region29
  $region28: #{_lambda_.5} parent=0 // pred_region
    _
  $region29: #{_lambda_.5} parent=0 // pred_fallthru
    _

// kernel: _lambda_.4
$region0: #{_lambda_.4}
  #allocation0 [shape = 'u32[]', space=smem, size = 0x4, offset = 0x4, fixed_abs, tag = 'smem constant byte address 0x4 - core index']
  #allocation1 [shape = 'u32[144,128]{1,0:T(1,128)}', space=vmem, size = 0x12000, scoped, tag = 'internal scratch']
  %s0 = inlined_call_operand.vmem [shape: bf16[32,16,8], index: 0, kind: input, shape index: {}]
  %s1 = inlined_call_operand.vmem [shape: bf16[32,16,8], index: 1, kind: input, shape index: {}]
  %s2 = inlined_call_operand.vmem [shape: bf16[32,16,8], index: 2, kind: input, shape index: {}]
  %s3 = inlined_call_operand.vmem [shape: bf16[8,32], index: 3, kind: input, shape index: {}]
  %s4 = inlined_call_operand.vmem [shape: f32[16,32], index: 4, kind: input, shape index: {}]
  %s5 = inlined_call_operand.vmem [shape: bf16[32,16], index: 5, kind: input, shape index: {}]
  %s6 = inlined_call_operand.vmem [shape: bf16[32,16,8], index: 6, kind: output, shape index: {}]
  %s7 = sld [smem:[#allocation0]]
  $region57: #{_lambda_.4} parent=0
    _
  %s9 = ssub.s32 1, %s7
  %s10 = scalar_select 0, %s9, %s7
  loop: start=0, step=1, limit=4
  $region2: #{_lambda_.4} parent=0 // loop_pre_header
    _
  $region3: #{_lambda_.4} parent=0 // loop_header
    %s12 = sphi 0, %s16
    %p13 = scmp.ge.s32.totalorder %s12, 4
    %s22 = sphi 0, %s24
    %s25 = sphi 0, %s22
    %s26 = sphi 0, %s25
    %s42 = sphi 0, %s26
    %s48 = sphi 0, %s50
    %s51 = sphi 0, %s48
    %s52 = sphi 0, %s51
    %s68 = sphi 0, %s52
    %s74 = sphi 0, %s76
    %s77 = sphi 0, %s74
    %s78 = sphi 0, %s77
    %s94 = sphi 0, %s78
    %s98 = sphi 0, %s98
    %s100 = sphi 0, %s98
    %s101 = sphi 0, %s100
    %s115 = sphi 0, %s101
    %s119 = sphi 0, %s119
    %s121 = sphi 0, %s119
    %s122 = sphi 0, %s121
    %s136 = sphi 0, %s122
    %s140 = sphi 0, %s140
    %s142 = sphi 0, %s140
    %s143 = sphi 0, %s142
    %s157 = sphi 0, %s143
    %s163 = sphi 0, %s165
    %s166 = sphi 0, %s163
    %s167 = sphi 0, %s166
    %s183 = sphi 0, %s167
  $region4: #{_lambda_.4} parent=0 // loop_header_branch
    %15 = sbr.rel (%p13) target = $region8
  $region5: #{_lambda_.4} parent=0 // loop_body
    %s17 = ssub.s32 %s12, 1
    %s18 = ssub.s32 %s12, 2
    %s19 = sadd.s32 %s12, 1
    %s20 = ssub.s32 %s12, %s19
    %p21 = scmp.eq.s32.totalorder %s20, 0
    %s23 = sadd.s32 %s22, 1
    %s24 = scalar_select %p21, %s22, %s23
    %p27 = pneg %p21
    %p28 = scmp.eq.s32.totalorder %s12, 1
    %p29 = por %p27, %p28
    %p30 = scmp.ne.s32.totalorder %s22, %s25
    %p31 = scmp.eq.s32.totalorder %s12, 0
    %p32 = por %p30, %p31
    %p33 = scmp.ne.s32.totalorder %s22, %s25
    %p34 = scmp.eq.s32.totalorder %s17, 1
    %p35 = por %p33, %p34
    %p36 = scmp.ne.s32.totalorder %s25, %s26
    %p37 = scmp.eq.s32.totalorder %s17, 0
    %p38 = por %p36, %p37
    %p39 = scmp.ne.s32.totalorder %s25, %s26
    %p40 = scmp.eq.s32.totalorder %s18, 1
    %p41 = por %p39, %p40
    %p43 = scmp.ne.s32.totalorder %s26, %s42
    %p44 = scmp.eq.s32.totalorder %s18, 0
    %p45 = por %p43, %p44
    %s46 = ssub.s32 %s12, %s19
    %p47 = scmp.eq.s32.totalorder %s46, 0
    %s49 = sadd.s32 %s48, 1
    %s50 = scalar_select %p47, %s48, %s49
    %p53 = pneg %p47
    %p54 = scmp.eq.s32.totalorder %s12, 1
    %p55 = por %p53, %p54
    %p56 = scmp.ne.s32.totalorder %s48, %s51
    %p57 = scmp.eq.s32.totalorder %s12, 0
    %p58 = por %p56, %p57
    %p59 = scmp.ne.s32.totalorder %s48, %s51
    %p60 = scmp.eq.s32.totalorder %s17, 1
    %p61 = por %p59, %p60
    %p62 = scmp.ne.s32.totalorder %s51, %s52
    %p63 = scmp.eq.s32.totalorder %s17, 0
    %p64 = por %p62, %p63
    %p65 = scmp.ne.s32.totalorder %s51, %s52
    %p66 = scmp.eq.s32.totalorder %s18, 1
    %p67 = por %p65, %p66
    %p69 = scmp.ne.s32.totalorder %s52, %s68
    %p70 = scmp.eq.s32.totalorder %s18, 0
    %p71 = por %p69, %p70
    %s72 = ssub.s32 %s12, %s19
    %p73 = scmp.eq.s32.totalorder %s72, 0
    %s75 = sadd.s32 %s74, 1
    %s76 = scalar_select %p73, %s74, %s75
    %p79 = pneg %p73
    %p80 = scmp.eq.s32.totalorder %s12, 1
    %p81 = por %p79, %p80
    %p82 = scmp.ne.s32.totalorder %s74, %s77
    %p83 = scmp.eq.s32.totalorder %s12, 0
    %p84 = por %p82, %p83
    %p85 = scmp.ne.s32.totalorder %s74, %s77
    %p86 = scmp.eq.s32.totalorder %s17, 1
    %p87 = por %p85, %p86
    %p88 = scmp.ne.s32.totalorder %s77, %s78
    %p89 = scmp.eq.s32.totalorder %s17, 0
    %p90 = por %p88, %p89
    %p91 = scmp.ne.s32.totalorder %s77, %s78
    %p92 = scmp.eq.s32.totalorder %s18, 1
    %p93 = por %p91, %p92
    %p95 = scmp.ne.s32.totalorder %s78, %s94
    %p96 = scmp.eq.s32.totalorder %s18, 0
    %p97 = por %p95, %p96
    %s99 = sadd.s32 %s98, 1
    %p102 = scmp.eq.s32.totalorder %s12, 1
    %p103 = scmp.ne.s32.totalorder %s98, %s100
    %p104 = scmp.eq.s32.totalorder %s12, 0
    %p105 = por %p103, %p104
    %p106 = scmp.ne.s32.totalorder %s98, %s100
    %p107 = scmp.eq.s32.totalorder %s17, 1
    %p108 = por %p106, %p107
    %p109 = scmp.ne.s32.totalorder %s100, %s101
    %p110 = scmp.eq.s32.totalorder %s17, 0
    %p111 = por %p109, %p110
    %p112 = scmp.ne.s32.totalorder %s100, %s101
    %p113 = scmp.eq.s32.totalorder %s18, 1
    %p114 = por %p112, %p113
    %p116 = scmp.ne.s32.totalorder %s101, %s115
    %p117 = scmp.eq.s32.totalorder %s18, 0
    %p118 = por %p116, %p117
    %s120 = sadd.s32 %s119, 1
    %p123 = scmp.eq.s32.totalorder %s12, 1
    %p124 = scmp.ne.s32.totalorder %s119, %s121
    %p125 = scmp.eq.s32.totalorder %s12, 0
    %p126 = por %p124, %p125
    %p127 = scmp.ne.s32.totalorder %s119, %s121
    %p128 = scmp.eq.s32.totalorder %s17, 1
    %p129 = por %p127, %p128
    %p130 = scmp.ne.s32.totalorder %s121, %s122
    %p131 = scmp.eq.s32.totalorder %s17, 0
    %p132 = por %p130, %p131
    %p133 = scmp.ne.s32.totalorder %s121, %s122
    %p134 = scmp.eq.s32.totalorder %s18, 1
    %p135 = por %p133, %p134
    %p137 = scmp.ne.s32.totalorder %s122, %s136
    %p138 = scmp.eq.s32.totalorder %s18, 0
    %p139 = por %p137, %p138
    %s141 = sadd.s32 %s140, 1
    %p144 = scmp.eq.s32.totalorder %s12, 1
    %p145 = scmp.ne.s32.totalorder %s140, %s142
    %p146 = scmp.eq.s32.totalorder %s12, 0
    %p147 = por %p145, %p146
    %p148 = scmp.ne.s32.totalorder %s140, %s142
    %p149 = scmp.eq.s32.totalorder %s17, 1
    %p150 = por %p148, %p149
    %p151 = scmp.ne.s32.totalorder %s142, %s143
    %p152 = scmp.eq.s32.totalorder %s17, 0
    %p153 = por %p151, %p152
    %p154 = scmp.ne.s32.totalorder %s142, %s143
    %p155 = scmp.eq.s32.totalorder %s18, 1
    %p156 = por %p154, %p155
    %p158 = scmp.ne.s32.totalorder %s143, %s157
    %p159 = scmp.eq.s32.totalorder %s18, 0
    %p160 = por %p158, %p159
    %s161 = ssub.s32 %s12, %s19
    %p162 = scmp.eq.s32.totalorder %s161, 0
    %s164 = sadd.s32 %s163, 1
    %s165 = scalar_select %p162, %s163, %s164
    %p168 = pneg %p162
    %p169 = scmp.eq.s32.totalorder %s12, 1
    %p170 = por %p168, %p169
    %p171 = scmp.ne.s32.totalorder %s163, %s166
    %p172 = scmp.eq.s32.totalorder %s12, 0
    %p173 = por %p171, %p172
    %p174 = scmp.ne.s32.totalorder %s163, %s166
    %p175 = scmp.eq.s32.totalorder %s17, 1
    %p176 = por %p174, %p175
    %p177 = scmp.ne.s32.totalorder %s166, %s167
    %p178 = scmp.eq.s32.totalorder %s17, 0
    %p179 = por %p177, %p178
    %p180 = scmp.ne.s32.totalorder %s166, %s167
    %p181 = scmp.eq.s32.totalorder %s18, 1
    %p182 = por %p180, %p181
    %p184 = scmp.ne.s32.totalorder %s167, %s183
    %p185 = scmp.eq.s32.totalorder %s18, 0
    %p186 = por %p184, %p185
    %p187 = scmp.le.s32.totalorder 1, %s12
    %p188 = scmp.lt.s32.totalorder %s12, 3
    %p189 = pnand %p187, %p188
    %p190 = pneg %p189
    // Predicated region
    $region9: #{_lambda_.4} parent=5 // pred_check
      _
    $region10: #{_lambda_.4} parent=5 // pred_check_branch
      %192 = sbr.rel (%p189) target = $region12
    $region11: #{_lambda_.4} parent=5 // pred_region
      %s193 = ssub.s32 %s12, 1
      // Predicated region
      $region13: #{_lambda_.4} parent=11 // pred_check
        %p194 = pneg %p111
      $region14: #{_lambda_.4} parent=11 // pred_check_branch
        %196 = sbr.rel (%p194) target = $region16
      $region15: #{_lambda_.4} parent=11 // pred_region
        _
      $region16: #{_lambda_.4} parent=11 // pred_fallthru
        _
      // Predicated region
      $region17: #{_lambda_.4} parent=11 // pred_check
        %p197 = pneg %p132
      $region18: #{_lambda_.4} parent=11 // pred_check_branch
        %199 = sbr.rel (%p197) target = $region20
      $region19: #{_lambda_.4} parent=11 // pred_region
        _
      $region20: #{_lambda_.4} parent=11 // pred_fallthru
        _
      // Predicated region
      $region21: #{_lambda_.4} parent=11 // pred_check
        %p200 = pneg %p153
      $region22: #{_lambda_.4} parent=11 // pred_check_branch
        %202 = sbr.rel (%p200) target = $region24
      $region23: #{_lambda_.4} parent=11 // pred_region
        _
      $region24: #{_lambda_.4} parent=11 // pred_fallthru
        _
    $region12: #{_lambda_.4} parent=5 // pred_fallthru
      _
    %p203 = scmp.lt.s32.totalorder %s12, 2
    // Predicated region
    $region25: #{_lambda_.4} parent=5 // pred_check
      %p204 = pneg %p203
    $region26: #{_lambda_.4} parent=5 // pred_check_branch
      %206 = sbr.rel (%p204) target = $region28
    $region27: #{_lambda_.4} parent=5 // pred_region
      // Predicated region
      $region29: #{_lambda_.4} parent=27 // pred_check
        %p207 = pneg %p32
      $region30: #{_lambda_.4} parent=27 // pred_check_branch
        %209 = sbr.rel (%p207) target = $region32
      $region31: #{_lambda_.4} parent=27 // pred_region
        %s210 = smul.u32 16, %s12
        %p211 = scmp.lt.s32.totalorder %s210, 31
        %s212 = scalar_select %p211, %s210, 31
        %s213 = smul.addr %s212, 2
        %s214 = smul.addr %s213, 4
        %s215 = scalar_lea.vmem %s0, %s214
        %s216 = smul.u32 16, %s12
      $region32: #{_lambda_.4} parent=27 // pred_fallthru
        _
      // Predicated region
      $region33: #{_lambda_.4} parent=27 // pred_check
        %p217 = pneg %p58
      $region34: #{_lambda_.4} parent=27 // pred_check_branch
        %219 = sbr.rel (%p217) target = $region36
      $region35: #{_lambda_.4} parent=27 // pred_region
        %s220 = smul.u32 16, %s12
        %p221 = scmp.lt.s32.totalorder %s220, 31
        %s222 = scalar_select %p221, %s220, 31
        %s223 = smul.addr %s222, 2
        %s224 = smul.addr %s223, 4
        %s225 = scalar_lea.vmem %s1, %s224
        %s226 = smul.u32 16, %s12
      $region36: #{_lambda_.4} parent=27 // pred_fallthru
        _
      // Predicated region
      $region37: #{_lambda_.4} parent=27 // pred_check
        %p227 = pneg %p84
      $region38: #{_lambda_.4} parent=27 // pred_check_branch
        %229 = sbr.rel (%p227) target = $region40
      $region39: #{_lambda_.4} parent=27 // pred_region
        %s230 = smul.u32 16, %s12
        %p231 = scmp.lt.s32.totalorder %s230, 31
        %s232 = scalar_select %p231, %s230, 31
        %s233 = smul.addr %s232, 2
        %s234 = smul.addr %s233, 4
        %s235 = scalar_lea.vmem %s2, %s234
        %s236 = smul.u32 16, %s12
      $region40: #{_lambda_.4} parent=27 // pred_fallthru
        _
    $region28: #{_lambda_.4} parent=5 // pred_fallthru
      _
    %p237 = scmp.le.s32.totalorder 1, %s12
    %p238 = scmp.lt.s32.totalorder %s12, 3
    %p239 = pnand %p237, %p238
    %p240 = pneg %p239
    // Predicated region
    $region41: #{_lambda_.4} parent=5 // pred_check
      _
    $region42: #{_lambda_.4} parent=5 // pred_check_branch
      %242 = sbr.rel (%p239) target = $region44
    $region43: #{_lambda_.4} parent=5 // pred_region
      %s243 = ssub.s32 %s12, 1
      %s244 = smul.u32 16, %s17
      %p245 = scmp.lt.s32.totalorder %s244, 31
      %s246 = scalar_select %p245, %s244, 31
      %s247 = smul.addr %s246, 2
      %s248 = smul.addr %s247, 4
      %s249 = scalar_lea.vmem %s0, %s248
      %p250 = pneg %p38
      %p251 = pneg %p35
      %s252 = smul.u32 16, %s17
      %p253 = scmp.lt.s32.totalorder %s252, 31
      %s254 = scalar_select %p253, %s252, 31
      %s255 = smul.addr %s254, 2
      %s256 = smul.addr %s255, 4
      %s257 = scalar_lea.vmem %s1, %s256
      %p258 = pneg %p64
      %p259 = pneg %p61
      %s260 = smul.u32 16, %s17
      %p261 = scmp.lt.s32.totalorder %s260, 31
      %s262 = scalar_select %p261, %s260, 31
      %s263 = smul.addr %s262, 2
      %s264 = smul.addr %s263, 4
      %s265 = scalar_lea.vmem %s2, %s264
      %p266 = pneg %p90
      %p267 = pneg %p87
      %p268 = pneg %p111
      %p269 = pneg %p108
      %p270 = pneg %p132
      %p271 = pneg %p129
      %p272 = pneg %p153
      %p273 = pneg %p150
      %p274 = pneg %p179
      %p275 = pneg %p176
      %s276 = smul.u32 16, %s17
      %p277 = scmp.lt.s32.totalorder %s276, 31
      %s278 = scalar_select %p277, %s276, 31
      %s279 = smul.addr %s278, 2
      %s280 = smul.addr %s279, 4
      %s281 = scalar_lea.vmem %s6, %s280
      %s282 = smul.u32 16, %s17
      %p283 = scmp.lt.s32.totalorder %s282, 31
      %s284 = scalar_select %p283, %s282, 31
      %s285 = smul.addr %s284, 2
      %s286 = smul.addr %s285, 4
      %s287 = scalar_lea.vmem %s0, %s286
      %s288 = smul.u32 16, %s17
      %s289 = smul.u32 16, %s17
      %p290 = scmp.lt.s32.totalorder %s289, 31
      %s291 = scalar_select %p290, %s289, 31
      %s292 = smul.addr %s291, 2
      %s293 = smul.addr %s292, 4
      %s294 = scalar_lea.vmem %s1, %s293
      %s295 = smul.u32 16, %s17
      %s296 = smul.u32 16, %s17
      %p297 = scmp.lt.s32.totalorder %s296, 31
      %s298 = scalar_select %p297, %s296, 31
      %s299 = smul.addr %s298, 2
      %s300 = smul.addr %s299, 4
      %s301 = scalar_lea.vmem %s2, %s300
      %s302 = smul.u32 16, %s17
      %s303 = smul.u32 16, %s17
      %p304 = scmp.lt.s32.totalorder %s303, 31
      %s305 = scalar_select %p304, %s303, 31
      %s306 = smul.addr %s305, 2
      %s307 = smul.addr %s306, 4
      %s308 = scalar_lea.vmem %s6, %s307
      %s309 = smul.u32 16, %s17
      %v311 = vld [vmem:[%s287] sm:$0xf]
      %v312 = vld [vmem:[%s287 + $0x4] sm:$0xf]
      %v313 = vld [vmem:[%s287 + $0x8] sm:$0xf]
      %v314 = vld [vmem:[%s287 + $0xc] sm:$0xf]
      %v315 = vld [vmem:[%s287 + $0x10] sm:$0xf]
      %v316 = vld [vmem:[%s287 + $0x14] sm:$0xf]
      %v317 = vld [vmem:[%s287 + $0x18] sm:$0xf]
      %v318 = vld [vmem:[%s287 + $0x1c] sm:$0xf]
      %v319 = vld [vmem:[%s287 + $0x20] sm:$0xf]
      %v320 = vld [vmem:[%s287 + $0x24] sm:$0xf]
      %v321 = vld [vmem:[%s287 + $0x28] sm:$0xf]
      %v322 = vld [vmem:[%s287 + $0x2c] sm:$0xf]
      %v323 = vld [vmem:[%s287 + $0x30] sm:$0xf]
      %v324 = vld [vmem:[%s287 + $0x34] sm:$0xf]
      %v325 = vld [vmem:[%s287 + $0x38] sm:$0xf]
      %v326 = vld [vmem:[%s287 + $0x3c] sm:$0xf]
      %v327 = vld [vmem:[%s287 + $0x40] sm:$0xf]
      %v328 = vld [vmem:[%s287 + $0x44] sm:$0xf]
      %v329 = vld [vmem:[%s287 + $0x48] sm:$0xf]
      %v330 = vld [vmem:[%s287 + $0x4c] sm:$0xf]
      %v331 = vld [vmem:[%s287 + $0x50] sm:$0xf]
      %v332 = vld [vmem:[%s287 + $0x54] sm:$0xf]
      %v333 = vld [vmem:[%s287 + $0x58] sm:$0xf]
      %v334 = vld [vmem:[%s287 + $0x5c] sm:$0xf]
      %v335 = vld [vmem:[%s287 + $0x60] sm:$0xf]
      %v336 = vld [vmem:[%s287 + $0x64] sm:$0xf]
      %v337 = vld [vmem:[%s287 + $0x68] sm:$0xf]
      %v338 = vld [vmem:[%s287 + $0x6c] sm:$0xf]
      %v339 = vld [vmem:[%s287 + $0x70] sm:$0xf]
      %v340 = vld [vmem:[%s287 + $0x74] sm:$0xf]
      %v341 = vld [vmem:[%s287 + $0x78] sm:$0xf]
      %v342 = vld [vmem:[%s287 + $0x7c] sm:$0xf]
      %v343 = vld [vmem:[%s294] sm:$0xf]
      %v344 = vld [vmem:[%s294 + $0x4] sm:$0xf]
      %v345 = vld [vmem:[%s294 + $0x8] sm:$0xf]
      %v346 = vld [vmem:[%s294 + $0xc] sm:$0xf]
      %v347 = vld [vmem:[%s294 + $0x10] sm:$0xf]
      %v348 = vld [vmem:[%s294 + $0x14] sm:$0xf]
      %v349 = vld [vmem:[%s294 + $0x18] sm:$0xf]
      %v350 = vld [vmem:[%s294 + $0x1c] sm:$0xf]
      %v351 = vld [vmem:[%s294 + $0x20] sm:$0xf]
      %v352 = vld [vmem:[%s294 + $0x24] sm:$0xf]
      %v353 = vld [vmem:[%s294 + $0x28] sm:$0xf]
      %v354 = vld [vmem:[%s294 + $0x2c] sm:$0xf]
      %v355 = vld [vmem:[%s294 + $0x30] sm:$0xf]
      %v356 = vld [vmem:[%s294 + $0x34] sm:$0xf]
      %v357 = vld [vmem:[%s294 + $0x38] sm:$0xf]
      %v358 = vld [vmem:[%s294 + $0x3c] sm:$0xf]
      %v359 = vld [vmem:[%s294 + $0x40] sm:$0xf]
      %v360 = vld [vmem:[%s294 + $0x44] sm:$0xf]
      %v361 = vld [vmem:[%s294 + $0x48] sm:$0xf]
      %v362 = vld [vmem:[%s294 + $0x4c] sm:$0xf]
      %v363 = vld [vmem:[%s294 + $0x50] sm:$0xf]
      %v364 = vld [vmem:[%s294 + $0x54] sm:$0xf]
      %v365 = vld [vmem:[%s294 + $0x58] sm:$0xf]
      %v366 = vld [vmem:[%s294 + $0x5c] sm:$0xf]
      %v367 = vld [vmem:[%s294 + $0x60] sm:$0xf]
      %v368 = vld [vmem:[%s294 + $0x64] sm:$0xf]
      %v369 = vld [vmem:[%s294 + $0x68] sm:$0xf]
      %v370 = vld [vmem:[%s294 + $0x6c] sm:$0xf]
      %v371 = vld [vmem:[%s294 + $0x70] sm:$0xf]
      %v372 = vld [vmem:[%s294 + $0x74] sm:$0xf]
      %v373 = vld [vmem:[%s294 + $0x78] sm:$0xf]
      %v374 = vld [vmem:[%s294 + $0x7c] sm:$0xf]
      %v375 = vld [vmem:[%s301] sm:$0xf]
      %v376 = vld [vmem:[%s301 + $0x4] sm:$0xf]
      %v377 = vld [vmem:[%s301 + $0x8] sm:$0xf]
      %v378 = vld [vmem:[%s301 + $0xc] sm:$0xf]
      %v379 = vld [vmem:[%s301 + $0x10] sm:$0xf]
      %v380 = vld [vmem:[%s301 + $0x14] sm:$0xf]
      %v381 = vld [vmem:[%s301 + $0x18] sm:$0xf]
      %v382 = vld [vmem:[%s301 + $0x1c] sm:$0xf]
      %v383 = vld [vmem:[%s301 + $0x20] sm:$0xf]
      %v384 = vld [vmem:[%s301 + $0x24] sm:$0xf]
      %v385 = vld [vmem:[%s301 + $0x28] sm:$0xf]
      %v386 = vld [vmem:[%s301 + $0x2c] sm:$0xf]
      %v387 = vld [vmem:[%s301 + $0x30] sm:$0xf]
      %v388 = vld [vmem:[%s301 + $0x34] sm:$0xf]
      %v389 = vld [vmem:[%s301 + $0x38] sm:$0xf]
      %v390 = vld [vmem:[%s301 + $0x3c] sm:$0xf]
      %v391 = vld [vmem:[%s301 + $0x40] sm:$0xf]
      %v392 = vld [vmem:[%s301 + $0x44] sm:$0xf]
      %v393 = vld [vmem:[%s301 + $0x48] sm:$0xf]
      %v394 = vld [vmem:[%s301 + $0x4c] sm:$0xf]
      %v395 = vld [vmem:[%s301 + $0x50] sm:$0xf]
      %v396 = vld [vmem:[%s301 + $0x54] sm:$0xf]
      %v397 = vld [vmem:[%s301 + $0x58] sm:$0xf]
      %v398 = vld [vmem:[%s301 + $0x5c] sm:$0xf]
      %v399 = vld [vmem:[%s301 + $0x60] sm:$0xf]
      %v400 = vld [vmem:[%s301 + $0x64] sm:$0xf]
      %v401 = vld [vmem:[%s301 + $0x68] sm:$0xf]
      %v402 = vld [vmem:[%s301 + $0x6c] sm:$0xf]
      %v403 = vld [vmem:[%s301 + $0x70] sm:$0xf]
      %v404 = vld [vmem:[%s301 + $0x74] sm:$0xf]
      %v405 = vld [vmem:[%s301 + $0x78] sm:$0xf]
      %v406 = vld [vmem:[%s301 + $0x7c] sm:$0xf]
      %v409 = vunpack.c.l.b16 %v311
      %v410 = vunpack.c.l.b16 %v312
      %v411 = vpack.c.b16 %v410, %v409
      %v414 = vunpack.c.l.b16 %v343
      %v415 = vunpack.c.l.b16 %v344
      %v416 = vpack.c.b16 %v415, %v414
      %vm417 = vcmask 64512
      %v419 = vsel %vm417, %v411, 0
      %v422 = vsel %vm417, %v416, 0
      %424 = vmatprep.subr.bf16.mxu0 0
      %425 = vmatpush1.bf16.xpose.msra.mxu0 %v422
      %426 = vmatprep.subr.bf16.mxu0 0
      %427 = vmatpush1.bf16.xpose.msra.mxu0 0
      %428 = vmatprep.subr.bf16.mxu0 0
      %429 = vmatpush1.bf16.xpose.msra.mxu0 0
      %430 = vmatprep.subr.bf16.mxu0 0
      %431 = vmatpush1.bf16.xpose.msra.mxu0 0
      %432 = vmatprep.subr.bf16.mxu0 0
      %433 = vmatpush1.bf16.xpose.msra.mxu0 0
      %434 = vmatprep.subr.bf16.mxu0 0
      %435 = vmatpush1.bf16.xpose.msra.mxu0 0
      %436 = vmatprep.subr.bf16.mxu0 0
      %437 = vmatpush1.bf16.xpose.msra.mxu0 0
      %438 = vmatprep.subr.bf16.mxu0 0
      %439 = vmatpush1.bf16.xpose.msra.mxu0 0
      %440 = vmatprep.subr.bf16.mxu0 0
      %441 = vmatpush1.bf16.xpose.msra.mxu0 0
      %442 = vmatprep.subr.bf16.mxu0 0
      %443 = vmatpush1.bf16.xpose.msra.mxu0 0
      %444 = vmatprep.subr.bf16.mxu0 0
      %445 = vmatpush1.bf16.xpose.msra.mxu0 0
      %446 = vmatprep.subr.bf16.mxu0 0
      %447 = vmatpush1.bf16.xpose.msra.mxu0 0
      %448 = vmatprep.subr.bf16.mxu0 0
      %449 = vmatpush1.bf16.xpose.msra.mxu0 0
      %450 = vmatprep.subr.bf16.mxu0 0
      %451 = vmatpush1.bf16.xpose.msra.mxu0 0
      %452 = vmatprep.subr.bf16.mxu0 0
      %453 = vmatpush1.bf16.xpose.msra.mxu0 0
      %454 = vmatprep.subr.bf16.mxu0 0
      %455 = vmatpush1.bf16.xpose.msra.mxu0 0
      %456 = vmatprep.mubr.bf16.mxu0 0
      %457 = vmatmul.mubr.bf16.gmra.mrb[0].mxu0 %v419
      %v458 = vpop.f32.mrb[0].mxu0
      %v459 = vadd.f32 0.0, %v458
      %v460 = vpop.f32.mrb[0].mxu0
      %v461 = vpop.f32.mrb[0].mxu0
      %v462 = vadd.f32 0.0, %v461
      %v463 = vpop.f32.mrb[0].mxu0
      %464 = vdwg.mxu0
      %v467 = vunpack.c.l.b16 %v313
      %v468 = vunpack.c.l.b16 %v314
      %v469 = vpack.c.b16 %v468, %v467
      %v472 = vunpack.c.l.b16 %v345
      %v473 = vunpack.c.l.b16 %v346
      %v474 = vpack.c.b16 %v473, %v472
      %v476 = vsel %vm417, %v469, 0
      %v479 = vsel %vm417, %v474, 0
      %481 = vmatprep.subr.bf16.mxu0 0
      %482 = vmatpush1.bf16.xpose.msra.mxu0 %v479
      %483 = vmatprep.subr.bf16.mxu0 0
      %484 = vmatpush1.bf16.xpose.msra.mxu0 0
      %485 = vmatprep.subr.bf16.mxu0 0
      %486 = vmatpush1.bf16.xpose.msra.mxu0 0
      %487 = vmatprep.subr.bf16.mxu0 0
      %488 = vmatpush1.bf16.xpose.msra.mxu0 0
      %489 = vmatprep.subr.bf16.mxu0 0
      %490 = vmatpush1.bf16.xpose.msra.mxu0 0
      %491 = vmatprep.subr.bf16.mxu0 0
      %492 = vmatpush1.bf16.xpose.msra.mxu0 0
      %493 = vmatprep.subr.bf16.mxu0 0
      %494 = vmatpush1.bf16.xpose.msra.mxu0 0
      %495 = vmatprep.subr.bf16.mxu0 0
      %496 = vmatpush1.bf16.xpose.msra.mxu0 0
      %497 = vmatprep.subr.bf16.mxu0 0
      %498 = vmatpush1.bf16.xpose.msra.mxu0 0
      %499 = vmatprep.subr.bf16.mxu0 0
      %500 = vmatpush1.bf16.xpose.msra.mxu0 0
      %501 = vmatprep.subr.bf16.mxu0 0
      %502 = vmatpush1.bf16.xpose.msra.mxu0 0
      %503 = vmatprep.subr.bf16.mxu0 0
      %504 = vmatpush1.bf16.xpose.msra.mxu0 0
      %505 = vmatprep.subr.bf16.mxu0 0
      %506 = vmatpush1.bf16.xpose.msra.mxu0 0
      %507 = vmatprep.subr.bf16.mxu0 0
      %508 = vmatpush1.bf16.xpose.msra.mxu0 0
      %509 = vmatprep.subr.bf16.mxu0 0
      %510 = vmatpush1.bf16.xpose.msra.mxu0 0
      %511 = vmatprep.subr.bf16.mxu0 0
      %512 = vmatpush1.bf16.xpose.msra.mxu0 0
      %513 = vmatprep.mubr.bf16.mxu0 0
      %514 = vmatmul.mubr.bf16.gmra.mrb[0].mxu0 %v476
      %v515 = vpop.f32.mrb[0].mxu0
      %v516 = vadd.f32 0.0, %v515
      %v517 = vpop.f32.mrb[0].mxu0
      %v518 = vpop.f32.mrb[0].mxu0
      %v519 = vadd.f32 0.0, %v518
      %v520 = vpop.f32.mrb[0].mxu0
      %521 = vdwg.mxu0
      %v524 = vunpack.c.l.b16 %v315
      %v525 = vunpack.c.l.b16 %v316
      %v526 = vpack.c.b16 %v525, %v524
      %v529 = vunpack.c.l.b16 %v347
      %v530 = vunpack.c.l.b16 %v348
      %v531 = vpack.c.b16 %v530, %v529
      %v533 = vsel %vm417, %v526, 0
      %v536 = vsel %vm417, %v531, 0
      %538 = vmatprep.subr.bf16.mxu0 0
      %539 = vmatpush1.bf16.xpose.msra.mxu0 %v536
      %540 = vmatprep.subr.bf16.mxu0 0
      %541 = vmatpush1.bf16.xpose.msra.mxu0 0
      %542 = vmatprep.subr.bf16.mxu0 0
      %543 = vmatpush1.bf16.xpose.msra.mxu0 0
      %544 = vmatprep.subr.bf16.mxu0 0
      %545 = vmatpush1.bf16.xpose.msra.mxu0 0
      %546 = vmatprep.subr.bf16.mxu0 0
      %547 = vmatpush1.bf16.xpose.msra.mxu0 0
      %548 = vmatprep.subr.bf16.mxu0 0
      %549 = vmatpush1.bf16.xpose.msra.mxu0 0
      %550 = vmatprep.subr.bf16.mxu0 0
      %551 = vmatpush1.bf16.xpose.msra.mxu0 0
      %552 = vmatprep.subr.bf16.mxu0 0
      %553 = vmatpush1.bf16.xpose.msra.mxu0 0
      %554 = vmatprep.subr.bf16.mxu0 0
      %555 = vmatpush1.bf16.xpose.msra.mxu0 0
      %556 = vmatprep.subr.bf16.mxu0 0
      %557 = vmatpush1.bf16.xpose.msra.mxu0 0
      %558 = vmatprep.subr.bf16.mxu0 0
      %559 = vmatpush1.bf16.xpose.msra.mxu0 0
      %560 = vmatprep.subr.bf16.mxu0 0
      %561 = vmatpush1.bf16.xpose.msra.mxu0 0
      %562 = vmatprep.subr.bf16.mxu0 0
      %563 = vmatpush1.bf16.xpose.msra.mxu0 0
      %564 = vmatprep.subr.bf16.mxu0 0
      %565 = vmatpush1.bf16.xpose.msra.mxu0 0
      %566 = vmatprep.subr.bf16.mxu0 0
      %567 = vmatpush1.bf16.xpose.msra.mxu0 0
      %568 = vmatprep.subr.bf16.mxu0 0
      %569 = vmatpush1.bf16.xpose.msra.mxu0 0
      %570 = vmatprep.mubr.bf16.mxu0 0
      %571 = vmatmul.mubr.bf16.gmra.mrb[0].mxu0 %v533
      %v572 = vpop.f32.mrb[0].mxu0
      %v573 = vadd.f32 0.0, %v572
      %v574 = vpop.f32.mrb[0].mxu0
      %v575 = vpop.f32.mrb[0].mxu0
      %v576 = vadd.f32 0.0, %v575
      %v577 = vpop.f32.mrb[0].mxu0
      %578 = vdwg.mxu0
      %v581 = vunpack.c.l.b16 %v317
      %v582 = vunpack.c.l.b16 %v318
      %v583 = vpack.c.b16 %v582, %v581
      %v586 = vunpack.c.l.b16 %v349
      %v587 = vunpack.c.l.b16 %v350
      %v588 = vpack.c.b16 %v587, %v586
      %v590 = vsel %vm417, %v583, 0
      %v593 = vsel %vm417, %v588, 0
      %595 = vmatprep.subr.bf16.mxu0 0
      %596 = vmatpush1.bf16.xpose.msra.mxu0 %v593
      %597 = vmatprep.subr.bf16.mxu0 0
      %598 = vmatpush1.bf16.xpose.msra.mxu0 0
      %599 = vmatprep.subr.bf16.mxu0 0
      %600 = vmatpush1.bf16.xpose.msra.mxu0 0
      %601 = vmatprep.subr.bf16.mxu0 0
      %602 = vmatpush1.bf16.xpose.msra.mxu0 0
      %603 = vmatprep.subr.bf16.mxu0 0
      %604 = vmatpush1.bf16.xpose.msra.mxu0 0
      %605 = vmatprep.subr.bf16.mxu0 0
      %606 = vmatpush1.bf16.xpose.msra.mxu0 0
      %607 = vmatprep.subr.bf16.mxu0 0
      %608 = vmatpush1.bf16.xpose.msra.mxu0 0
      %609 = vmatprep.subr.bf16.mxu0 0
      %610 = vmatpush1.bf16.xpose.msra.mxu0 0
      %611 = vmatprep.subr.bf16.mxu0 0
      %612 = vmatpush1.bf16.xpose.msra.mxu0 0
      %613 = vmatprep.subr.bf16.mxu0 0
      %614 = vmatpush1.bf16.xpose.msra.mxu0 0
      %615 = vmatprep.subr.bf16.mxu0 0
      %616 = vmatpush1.bf16.xpose.msra.mxu0 0
      %617 = vmatprep.subr.bf16.mxu0 0
      %618 = vmatpush1.bf16.xpose.msra.mxu0 0
      %619 = vmatprep.subr.bf16.mxu0 0
      %620 = vmatpush1.bf16.xpose.msra.mxu0 0
      %621 = vmatprep.subr.bf16.mxu0 0
      %622 = vmatpush1.bf16.xpose.msra.mxu0 0
      %623 = vmatprep.subr.bf16.mxu0 0
      %624 = vmatpush1.bf16.xpose.msra.mxu0 0
      %625 = vmatprep.subr.bf16.mxu0 0
      %626 = vmatpush1.bf16.xpose.msra.mxu0 0
      %627 = vmatprep.mubr.bf16.mxu0 0
      %628 = vmatmul.mubr.bf16.gmra.mrb[0].mxu0 %v590
      %v629 = vpop.f32.mrb[0].mxu0
      %v630 = vadd.f32 0.0, %v629
      %v631 = vpop.f32.mrb[0].mxu0
      %v632 = vpop.f32.mrb[0].mxu0
      %v633 = vadd.f32 0.0, %v632
      %v634 = vpop.f32.mrb[0].mxu0
      %635 = vdwg.mxu0
      %v638 = vunpack.c.l.b16 %v319
      %v639 = vunpack.c.l.b16 %v320
      %v640 = vpack.c.b16 %v639, %v638
      %v643 = vunpack.c.l.b16 %v351
      %v644 = vunpack.c.l.b16 %v352
      %v645 = vpack.c.b16 %v644, %v643
      %v647 = vsel %vm417, %v640, 0
      %v650 = vsel %vm417, %v645, 0
      %652 = vmatprep.subr.bf16.mxu0 0
      %653 = vmatpush1.bf16.xpose.msra.mxu0 %v650
      %654 = vmatprep.subr.bf16.mxu0 0
      %655 = vmatpush1.bf16.xpose.msra.mxu0 0
      %656 = vmatprep.subr.bf16.mxu0 0
      %657 = vmatpush1.bf16.xpose.msra.mxu0 0
      %658 = vmatprep.subr.bf16.mxu0 0
      %659 = vmatpush1.bf16.xpose.msra.mxu0 0
      %660 = vmatprep.subr.bf16.mxu0 0
      %661 = vmatpush1.bf16.xpose.msra.mxu0 0
      %662 = vmatprep.subr.bf16.mxu0 0
      %663 = vmatpush1.bf16.xpose.msra.mxu0 0
      %664 = vmatprep.subr.bf16.mxu0 0
      %665 = vmatpush1.bf16.xpose.msra.mxu0 0
      %666 = vmatprep.subr.bf16.mxu0 0
      %667 = vmatpush1.bf16.xpose.msra.mxu0 0
      %668 = vmatprep.subr.bf16.mxu0 0
      %669 = vmatpush1.bf16.xpose.msra.mxu0 0
      %670 = vmatprep.subr.bf16.mxu0 0
      %671 = vmatpush1.bf16.xpose.msra.mxu0 0
      %672 = vmatprep.subr.bf16.mxu0 0
      %673 = vmatpush1.bf16.xpose.msra.mxu0 0
      %674 = vmatprep.subr.bf16.mxu0 0
      %675 = vmatpush1.bf16.xpose.msra.mxu0 0
      %676 = vmatprep.subr.bf16.mxu0 0
      %677 = vmatpush1.bf16.xpose.msra.mxu0 0
      %678 = vmatprep.subr.bf16.mxu0 0
      %679 = vmatpush1.bf16.xpose.msra.mxu0 0
      %680 = vmatprep.subr.bf16.mxu0 0
      %681 = vmatpush1.bf16.xpose.msra.mxu0 0
      %682 = vmatprep.subr.bf16.mxu0 0
      %683 = vmatpush1.bf16.xpose.msra.mxu0 0
      %684 = vmatprep.mubr.bf16.mxu0 0
      %685 = vmatmul.mubr.bf16.gmra.mrb[0].mxu0 %v647
      %v686 = vpop.f32.mrb[0].mxu0
      %v687 = vadd.f32 0.0, %v686
      %v688 = vpop.f32.mrb[0].mxu0
      %v689 = vpop.f32.mrb[0].mxu0
      %v690 = vadd.f32 0.0, %v689
      %v691 = vpop.f32.mrb[0].mxu0
      %692 = vdwg.mxu0
      %v695 = vunpack.c.l.b16 %v321
      %v696 = vunpack.c.l.b16 %v322
      %v697 = vpack.c.b16 %v696, %v695
      %v700 = vunpack.c.l.b16 %v353
      %v701 = vunpack.c.l.b16 %v354
      %v702 = vpack.c.b16 %v701, %v700
      %v704 = vsel %vm417, %v697, 0
      %v707 = vsel %vm417, %v702, 0
      %709 = vmatprep.subr.bf16.mxu0 0
      %710 = vmatpush1.bf16.xpose.msra.mxu0 %v707
      %711 = vmatprep.subr.bf16.mxu0 0
      %712 = vmatpush1.bf16.xpose.msra.mxu0 0
      %713 = vmatprep.subr.bf16.mxu0 0
      %714 = vmatpush1.bf16.xpose.msra.mxu0 0
      %715 = vmatprep.subr.bf16.mxu0 0
      %716 = vmatpush1.bf16.xpose.msra.mxu0 0
      %717 = vmatprep.subr.bf16.mxu0 0
      %718 = vmatpush1.bf16.xpose.msra.mxu0 0
      %719 = vmatprep.subr.bf16.mxu0 0
      %720 = vmatpush1.bf16.xpose.msra.mxu0 0
      %721 = vmatprep.subr.bf16.mxu0 0
      %722 = vmatpush1.bf16.xpose.msra.mxu0 0
      %723 = vmatprep.subr.bf16.mxu0 0
      %724 = vmatpush1.bf16.xpose.msra.mxu0 0
      %725 = vmatprep.subr.bf16.mxu0 0
      %726 = vmatpush1.bf16.xpose.msra.mxu0 0
      %727 = vmatprep.subr.bf16.mxu0 0
      %728 = vmatpush1.bf16.xpose.msra.mxu0 0
      %729 = vmatprep.subr.bf16.mxu0 0
      %730 = vmatpush1.bf16.xpose.msra.mxu0 0
      %731 = vmatprep.subr.bf16.mxu0 0
      %732 = vmatpush1.bf16.xpose.msra.mxu0 0
      %733 = vmatprep.subr.bf16.mxu0 0
      %734 = vmatpush1.bf16.xpose.msra.mxu0 0
      %735 = vmatprep.subr.bf16.mxu0 0
      %736 = vmatpush1.bf16.xpose.msra.mxu0 0
      %737 = vmatprep.subr.bf16.mxu0 0
      %738 = vmatpush1.bf16.xpose.msra.mxu0 0
      %739 = vmatprep.subr.bf16.mxu0 0
      %740 = vmatpush1.bf16.xpose.msra.mxu0 0
      %741 = vmatprep.mubr.bf16.mxu0 0
      %742 = vmatmul.mubr.bf16.gmra.mrb[0].mxu0 %v704
      %v743 = vpop.f32.mrb[0].mxu0
      %v744 = vadd.f32 0.0, %v743
      %v745 = vpop.f32.mrb[0].mxu0
      %v746 = vpop.f32.mrb[0].mxu0
      %v747 = vadd.f32 0.0, %v746
      %v748 = vpop.f32.mrb[0].mxu0
      %749 = vdwg.mxu0
      %v752 = vunpack.c.l.b16 %v323
      %v753 = vunpack.c.l.b16 %v324
      %v754 = vpack.c.b16 %v753, %v752
      %v757 = vunpack.c.l.b16 %v355
      %v758 = vunpack.c.l.b16 %v356
      %v759 = vpack.c.b16 %v758, %v757
      %v761 = vsel %vm417, %v754, 0
      %v764 = vsel %vm417, %v759, 0
      %766 = vmatprep.subr.bf16.mxu0 0
      %767 = vmatpush1.bf16.xpose.msra.mxu0 %v764
      %768 = vmatprep.subr.bf16.mxu0 0
      %769 = vmatpush1.bf16.xpose.msra.mxu0 0
      %770 = vmatprep.subr.bf16.mxu0 0
      %771 = vmatpush1.bf16.xpose.msra.mxu0 0
      %772 = vmatprep.subr.bf16.mxu0 0
      %773 = vmatpush1.bf16.xpose.msra.mxu0 0
      %774 = vmatprep.subr.bf16.mxu0 0
      %775 = vmatpush1.bf16.xpose.msra.mxu0 0
      %776 = vmatprep.subr.bf16.mxu0 0
      %777 = vmatpush1.bf16.xpose.msra.mxu0 0
      %778 = vmatprep.subr.bf16.mxu0 0
      %779 = vmatpush1.bf16.xpose.msra.mxu0 0
      %780 = vmatprep.subr.bf16.mxu0 0
      %781 = vmatpush1.bf16.xpose.msra.mxu0 0
      %782 = vmatprep.subr.bf16.mxu0 0
      %783 = vmatpush1.bf16.xpose.msra.mxu0 0
      %784 = vmatprep.subr.bf16.mxu0 0
      %785 = vmatpush1.bf16.xpose.msra.mxu0 0
      %786 = vmatprep.subr.bf16.mxu0 0
      %787 = vmatpush1.bf16.xpose.msra.mxu0 0
      %788 = vmatprep.subr.bf16.mxu0 0
      %789 = vmatpush1.bf16.xpose.msra.mxu0 0
      %790 = vmatprep.subr.bf16.mxu0 0
      %791 = vmatpush1.bf16.xpose.msra.mxu0 0
      %792 = vmatprep.subr.bf16.mxu0 0
      %793 = vmatpush1.bf16.xpose.msra.mxu0 0
      %794 = vmatprep.subr.bf16.mxu0 0
      %795 = vmatpush1.bf16.xpose.msra.mxu0 0
      %796 = vmatprep.subr.bf16.mxu0 0
      %797 = vmatpush1.bf16.xpose.msra.mxu0 0
      %798 = vmatprep.mubr.bf16.mxu0 0
      %799 = vmatmul.mubr.bf16.gmra.mrb[0].mxu0 %v761
      %v800 = vpop.f32.mrb[0].mxu0
      %v801 = vadd.f32 0.0, %v800
      %v802 = vpop.f32.mrb[0].mxu0
      %v803 = vpop.f32.mrb[0].mxu0
      %v804 = vadd.f32 0.0, %v803
      %v805 = vpop.f32.mrb[0].mxu0
      %806 = vdwg.mxu0
      %v809 = vunpack.c.l.b16 %v325
      %v810 = vunpack.c.l.b16 %v326
      %v811 = vpack.c.b16 %v810, %v809
      %v814 = vunpack.c.l.b16 %v357
      %v815 = vunpack.c.l.b16 %v358
      %v816 = vpack.c.b16 %v815, %v814
      %v818 = vsel %vm417, %v811, 0
      %v821 = vsel %vm417, %v816, 0
      %823 = vmatprep.subr.bf16.mxu0 0
      %824 = vmatpush1.bf16.xpose.msra.mxu0 %v821
      %825 = vmatprep.subr.bf16.mxu0 0
      %826 = vmatpush1.bf16.xpose.msra.mxu0 0
      %827 = vmatprep.subr.bf16.mxu0 0
      %828 = vmatpush1.bf16.xpose.msra.mxu0 0
      %829 = vmatprep.subr.bf16.mxu0 0
      %830 = vmatpush1.bf16.xpose.msra.mxu0 0
      %831 = vmatprep.subr.bf16.mxu0 0
      %832 = vmatpush1.bf16.xpose.msra.mxu0 0
      %833 = vmatprep.subr.bf16.mxu0 0
      %834 = vmatpush1.bf16.xpose.msra.mxu0 0
      %835 = vmatprep.subr.bf16.mxu0 0
      %836 = vmatpush1.bf16.xpose.msra.mxu0 0
      %837 = vmatprep.subr.bf16.mxu0 0
      %838 = vmatpush1.bf16.xpose.msra.mxu0 0
      %839 = vmatprep.subr.bf16.mxu0 0
      %840 = vmatpush1.bf16.xpose.msra.mxu0 0
      %841 = vmatprep.subr.bf16.mxu0 0
      %842 = vmatpush1.bf16.xpose.msra.mxu0 0
      %843 = vmatprep.subr.bf16.mxu0 0
      %844 = vmatpush1.bf16.xpose.msra.mxu0 0
      %845 = vmatprep.subr.bf16.mxu0 0
      %846 = vmatpush1.bf16.xpose.msra.mxu0 0
      %847 = vmatprep.subr.bf16.mxu0 0
      %848 = vmatpush1.bf16.xpose.msra.mxu0 0
      %849 = vmatprep.subr.bf16.mxu0 0
      %850 = vmatpush1.bf16.xpose.msra.mxu0 0
      %851 = vmatprep.subr.bf16.mxu0 0
      %852 = vmatpush1.bf16.xpose.msra.mxu0 0
      %853 = vmatprep.subr.bf16.mxu0 0
      %854 = vmatpush1.bf16.xpose.msra.mxu0 0
      %855 = vmatprep.mubr.bf16.mxu0 0
      %856 = vmatmul.mubr.bf16.gmra.mrb[0].mxu0 %v818
      %v857 = vpop.f32.mrb[0].mxu0
      %v858 = vadd.f32 0.0, %v857
      %v859 = vpop.f32.mrb[0].mxu0
      %v860 = vpop.f32.mrb[0].mxu0
      %v861 = vadd.f32 0.0, %v860
      %v862 = vpop.f32.mrb[0].mxu0
      %863 = vdwg.mxu0
      %v866 = vunpack.c.l.b16 %v327
      %v867 = vunpack.c.l.b16 %v328
      %v868 = vpack.c.b16 %v867, %v866
      %v871 = vunpack.c.l.b16 %v359
      %v872 = vunpack.c.l.b16 %v360
      %v873 = vpack.c.b16 %v872, %v871
      %v875 = vsel %vm417, %v868, 0
      %v878 = vsel %vm417, %v873, 0
      %880 = vmatprep.subr.bf16.mxu0 0
      %881 = vmatpush1.bf16.xpose.msra.mxu0 %v878
      %882 = vmatprep.subr.bf16.mxu0 0
      %883 = vmatpush1.bf16.xpose.msra.mxu0 0
      %884 = vmatprep.subr.bf16.mxu0 0
      %885 = vmatpush1.bf16.xpose.msra.mxu0 0
      %886 = vmatprep.subr.bf16.mxu0 0
      %887 = vmatpush1.bf16.xpose.msra.mxu0 0
      %888 = vmatprep.subr.bf16.mxu0 0
      %889 = vmatpush1.bf16.xpose.msra.mxu0 0
      %890 = vmatprep.subr.bf16.mxu0 0
      %891 = vmatpush1.bf16.xpose.msra.mxu0 0
      %892 = vmatprep.subr.bf16.mxu0 0
      %893 = vmatpush1.bf16.xpose.msra.mxu0 0
      %894 = vmatprep.subr.bf16.mxu0 0
      %895 = vmatpush1.bf16.xpose.msra.mxu0 0
      %896 = vmatprep.subr.bf16.mxu0 0
      %897 = vmatpush1.bf16.xpose.msra.mxu0 0
      %898 = vmatprep.subr.bf16.mxu0 0
      %899 = vmatpush1.bf16.xpose.msra.mxu0 0
      %900 = vmatprep.subr.bf16.mxu0 0
      %901 = vmatpush1.bf16.xpose.msra.mxu0 0
      %902 = vmatprep.subr.bf16.mxu0 0
      %903 = vmatpush1.bf16.xpose.msra.mxu0 0
      %904 = vmatprep.subr.bf16.mxu0 0
      %905 = vmatpush1.bf16.xpose.msra.mxu0 0
      %906 = vmatprep.subr.bf16.mxu0 0
      %907 = vmatpush1.bf16.xpose.msra.mxu0 0
      %908 = vmatprep.subr.bf16.mxu0 0
      %909 = vmatpush1.bf16.xpose.msra.mxu0 0
      %910 = vmatprep.subr.bf16.mxu0 0
      %911 = vmatpush1.bf16.xpose.msra.mxu0 0
      %912 = vmatprep.mubr.bf16.mxu0 0
      %913 = vmatmul.mubr.bf16.gmra.mrb[0].mxu0 %v875
      %v914 = vpop.f32.mrb[0].mxu0
      %v915 = vadd.f32 0.0, %v914
      %v916 = vpop.f32.mrb[0].mxu0
      %v917 = vpop.f32.mrb[0].mxu0
      %v918 = vadd.f32 0.0, %v917
      %v919 = vpop.f32.mrb[0].mxu0
      %920 = vdwg.mxu0
      %v923 = vunpack.c.l.b16 %v329
      %v924 = vunpack.c.l.b16 %v330
      %v925 = vpack.c.b16 %v924, %v923
      %v928 = vunpack.c.l.b16 %v361
      %v929 = vunpack.c.l.b16 %v362
      %v930 = vpack.c.b16 %v929, %v928
      %v932 = vsel %vm417, %v925, 0
      %v935 = vsel %vm417, %v930, 0
      %937 = vmatprep.subr.bf16.mxu0 0
      %938 = vmatpush1.bf16.xpose.msra.mxu0 %v935
      %939 = vmatprep.subr.bf16.mxu0 0
      %940 = vmatpush1.bf16.xpose.msra.mxu0 0
      %941 = vmatprep.subr.bf16.mxu0 0
      %942 = vmatpush1.bf16.xpose.msra.mxu0 0
      %943 = vmatprep.subr.bf16.mxu0 0
      %944 = vmatpush1.bf16.xpose.msra.mxu0 0
      %945 = vmatprep.subr.bf16.mxu0 0
      %946 = vmatpush1.bf16.xpose.msra.mxu0 0
      %947 = vmatprep.subr.bf16.mxu0 0
      %948 = vmatpush1.bf16.xpose.msra.mxu0 0
      %949 = vmatprep.subr.bf16.mxu0 0
      %950 = vmatpush1.bf16.xpose.msra.mxu0 0
      %951 = vmatprep.subr.bf16.mxu0 0
      %952 = vmatpush1.bf16.xpose.msra.mxu0 0
      %953 = vmatprep.subr.bf16.mxu0 0
      %954 = vmatpush1.bf16.xpose.msra.mxu0 0
      %955 = vmatprep.subr.bf16.mxu0 0
      %956 = vmatpush1.bf16.xpose.msra.mxu0 0
      %957 = vmatprep.subr.bf16.mxu0 0
      %958 = vmatpush1.bf16.xpose.msra.mxu0 0
      %959 = vmatprep.subr.bf16.mxu0 0
      %960 = vmatpush1.bf16.xpose.msra.mxu0 0
      %961 = vmatprep.subr.bf16.mxu0 0
      %962 = vmatpush1.bf16.xpose.msra.mxu0 0
      %963 = vmatprep.subr.bf16.mxu0 0
      %964 = vmatpush1.bf16.xpose.msra.mxu0 0
      %965 = vmatprep.subr.bf16.mxu0 0
      %966 = vmatpush1.bf16.xpose.msra.mxu0 0
      %967 = vmatprep.subr.bf16.mxu0 0
      %968 = vmatpush1.bf16.xpose.msra.mxu0 0
      %969 = vmatprep.mubr.bf16.mxu0 0
      %970 = vmatmul.mubr.bf16.gmra.mrb[0].mxu0 %v932
      %v971 = vpop.f32.mrb[0].mxu0
      %v972 = vadd.f32 0.0, %v971
      %v973 = vpop.f32.mrb[0].mxu0
      %v974 = vpop.f32.mrb[0].mxu0
      %v975 = vadd.f32 0.0, %v974
      %v976 = vpop.f32.mrb[0].mxu0
      %977 = vdwg.mxu0
      %v980 = vunpack.c.l.b16 %v331
      %v981 = vunpack.c.l.b16 %v332
      %v982 = vpack.c.b16 %v981, %v980
      %v985 = vunpack.c.l.b16 %v363
      %v986 = vunpack.c.l.b16 %v364
      %v987 = vpack.c.b16 %v986, %v985
      %v989 = vsel %vm417, %v982, 0
      %v992 = vsel %vm417, %v987, 0
      %994 = vmatprep.subr.bf16.mxu0 0
      %995 = vmatpush1.bf16.xpose.msra.mxu0 %v992
      %996 = vmatprep.subr.bf16.mxu0 0
      %997 = vmatpush1.bf16.xpose.msra.mxu0 0
      %998 = vmatprep.subr.bf16.mxu0 0
      %999 = vmatpush1.bf16.xpose.msra.mxu0 0
      %1000 = vmatprep.subr.bf16.mxu0 0
      %1001 = vmatpush1.bf16.xpose.msra.mxu0 0
      %1002 = vmatprep.subr.bf16.mxu0 0
      %1003 = vmatpush1.bf16.xpose.msra.mxu0 0
      %1004 = vmatprep.subr.bf16.mxu0 0
      %1005 = vmatpush1.bf16.xpose.msra.mxu0 0
      %1006 = vmatprep.subr.bf16.mxu0 0
      %1007 = vmatpush1.bf16.xpose.msra.mxu0 0
      %1008 = vmatprep.subr.bf16.mxu0 0
      %1009 = vmatpush1.bf16.xpose.msra.mxu0 0
      %1010 = vmatprep.subr.bf16.mxu0 0
      %1011 = vmatpush1.bf16.xpose.msra.mxu0 0
      %1012 = vmatprep.subr.bf16.mxu0 0
      %1013 = vmatpush1.bf16.xpose.msra.mxu0 0
      %1014 = vmatprep.subr.bf16.mxu0 0
      %1015 = vmatpush1.bf16.xpose.msra.mxu0 0
      %1016 = vmatprep.subr.bf16.mxu0 0
      %1017 = vmatpush1.bf16.xpose.msra.mxu0 0
      %1018 = vmatprep.subr.bf16.mxu0 0
      %1019 = vmatpush1.bf16.xpose.msra.mxu0 0
      %1020 = vmatprep.subr.bf16.mxu0 0
      %1021 = vmatpush1.bf16.xpose.msra.mxu0 0
      %1022 = vmatprep.subr.bf16.mxu0 0
      %1023 = vmatpush1.bf16.xpose.msra.mxu0 0
      %1024 = vmatprep.subr.bf16.mxu0 0
      %1025 = vmatpush1.bf16.xpose.msra.mxu0 0
      %1026 = vmatprep.mubr.bf16.mxu0 0
      %1027 = vmatmul.mubr.bf16.gmra.mrb[0].mxu0 %v989
      %v1028 = vpop.f32.mrb[0].mxu0
      %v1029 = vadd.f32 0.0, %v1028
      %v1030 = vpop.f32.mrb[0].mxu0
      %v1031 = vpop.f32.mrb[0].mxu0
      %v1032 = vadd.f32 0.0, %v1031
      %v1033 = vpop.f32.mrb[0].mxu0
      %1034 = vdwg.mxu0
      %v1037 = vunpack.c.l.b16 %v333
      %v1038 = vunpack.c.l.b16 %v334
      %v1039 = vpack.c.b16 %v1038, %v1037
      %v1042 = vunpack.c.l.b16 %v365
      %v1043 = vunpack.c.l.b16 %v366
      %v1044 = vpack.c.b16 %v1043, %v1042
      %v1046 = vsel %vm417, %v1039, 0
      %v1049 = vsel %vm417, %v1044, 0
      %1051 = vmatprep.subr.bf16.mxu0 0
      %1052 = vmatpush1.bf16.xpose.msra.mxu0 %v1049
      %1053 = vmatprep.subr.bf16.mxu0 0
      %1054 = vmatpush1.bf16.xpose.msra.mxu0 0
      %1055 = vmatprep.subr.bf16.mxu0 0
      %1056 = vmatpush1.bf16.xpose.msra.mxu0 0
      %1057 = vmatprep.subr.bf16.mxu0 0
      %1058 = vmatpush1.bf16.xpose.msra.mxu0 0
      %1059 = vmatprep.subr.bf16.mxu0 0
      %1060 = vmatpush1.bf16.xpose.msra.mxu0 0
      %1061 = vmatprep.subr.bf16.mxu0 0
      %1062 = vmatpush1.bf16.xpose.msra.mxu0 0
      %1063 = vmatprep.subr.bf16.mxu0 0
      %1064 = vmatpush1.bf16.xpose.msra.mxu0 0
      %1065 = vmatprep.subr.bf16.mxu0 0
      %1066 = vmatpush1.bf16.xpose.msra.mxu0 0
      %1067 = vmatprep.subr.bf16.mxu0 0
      %1068 = vmatpush1.bf16.xpose.msra.mxu0 0
      %1069 = vmatprep.subr.bf16.mxu0 0
      %1070 = vmatpush1.bf16.xpose.msra.mxu0 0
      %1071 = vmatprep.subr.bf16.mxu0 0
      %1072 = vmatpush1.bf16.xpose.msra.mxu0 0
      %1073 = vmatprep.subr.bf16.mxu0 0
      %1074 = vmatpush1.bf16.xpose.msra.mxu0 0
      %1075 = vmatprep.subr.bf16.mxu0 0
      %1076 = vmatpush1.bf16.xpose.msra.mxu0 0
      %1077 = vmatprep.subr.bf16.mxu0 0
      %1078 = vmatpush1.bf16.xpose.msra.mxu0 0
      %1079 = vmatprep.subr.bf16.mxu0 0
      %1080 = vmatpush1.bf16.xpose.msra.mxu0 0
      %1081 = vmatprep.subr.bf16.mxu0 0
      %1082 = vmatpush1.bf16.xpose.msra.mxu0 0
      %1083 = vmatprep.mubr.bf16.mxu0 0
      %1084 = vmatmul.mubr.bf16.gmra.mrb[0].mxu0 %v1046
      %v1085 = vpop.f32.mrb[0].mxu0
      %v1086 = vadd.f32 0.0, %v1085
      %v1087 = vpop.f32.mrb[0].mxu0
      %v1088 = vpop.f32.mrb[0].mxu0
      %v1089 = vadd.f32 0.0, %v1088
      %v1090 = vpop.f32.mrb[0].mxu0
      %1091 = vdwg.mxu0
      %v1094 = vunpack.c.l.b16 %v335
      %v1095 = vunpack.c.l.b16 %v336
      %v1096 = vpack.c.b16 %v1095, %v1094
      %v1099 = vunpack.c.l.b16 %v367
      %v1100 = vunpack.c.l.b16 %v368
      %v1101 = vpack.c.b16 %v1100, %v1099
      %v1103 = vsel %vm417, %v1096, 0
      %v1106 = vsel %vm417, %v1101, 0
      %1108 = vmatprep.subr.bf16.mxu0 0
      %1109 = vmatpush1.bf16.xpose.msra.mxu0 %v1106
      %1110 = vmatprep.subr.bf16.mxu0 0
      %1111 = vmatpush1.bf16.xpose.msra.mxu0 0
      %1112 = vmatprep.subr.bf16.mxu0 0
      %1113 = vmatpush1.bf16.xpose.msra.mxu0 0
      %1114 = vmatprep.subr.bf16.mxu0 0
      %1115 = vmatpush1.bf16.xpose.msra.mxu0 0
      %1116 = vmatprep.subr.bf16.mxu0 0
      %1117 = vmatpush1.bf16.xpose.msra.mxu0 0
      %1118 = vmatprep.subr.bf16.mxu0 0
      %1119 = vmatpush1.bf16.xpose.msra.mxu0 0
      %1120 = vmatprep.subr.bf16.mxu0 0
      %1121 = vmatpush1.bf16.xpose.msra.mxu0 0
      %1122 = vmatprep.subr.bf16.mxu0 0
      %1123 = vmatpush1.bf16.xpose.msra.mxu0 0
      %1124 = vmatprep.subr.bf16.mxu0 0
      %1125 = vmatpush1.bf16.xpose.msra.mxu0 0
      %1126 = vmatprep.subr.bf16.mxu0 0
      %1127 = vmatpush1.bf16.xpose.msra.mxu0 0
      %1128 = vmatprep.subr.bf16.mxu0 0
      %1129 = vmatpush1.bf16.xpose.msra.mxu0 0
      %1130 = vmatprep.subr.bf16.mxu0 0
      %1131 = vmatpush1.bf16.xpose.msra.mxu0 0
      %1132 = vmatprep.subr.bf16.mxu0 0
      %1133 = vmatpush1.bf16.xpose.msra.mxu0 0
      %1134 = vmatprep.subr.bf16.mxu0 0
      %1135 = vmatpush1.bf16.xpose.msra.mxu0 0
      %1136 = vmatprep.subr.bf16.mxu0 0
      %1137 = vmatpush1.bf16.xpose.msra.mxu0 0
      %1138 = vmatprep.subr.bf16.mxu0 0
      %1139 = vmatpush1.bf16.xpose.msra.mxu0 0
      %1140 = vmatprep.mubr.bf16.mxu0 0
      %1141 = vmatmul.mubr.bf16.gmra.mrb[0].mxu0 %v1103
      %v1142 = vpop.f32.mrb[0].mxu0
      %v1143 = vadd.f32 0.0, %v1142
      %v1144 = vpop.f32.mrb[0].mxu0
      %v1145 = vpop.f32.mrb[0].mxu0
      %v1146 = vadd.f32 0.0, %v1145
      %v1147 = vpop.f32.mrb[0].mxu0
      %1148 = vdwg.mxu0
      %v1151 = vunpack.c.l.b16 %v337
      %v1152 = vunpack.c.l.b16 %v338
      %v1153 = vpack.c.b16 %v1152, %v1151
      %v1156 = vunpack.c.l.b16 %v369
      %v1157 = vunpack.c.l.b16 %v370
      %v1158 = vpack.c.b16 %v1157, %v1156
      %v1160 = vsel %vm417, %v1153, 0
      %v1163 = vsel %vm417, %v1158, 0
      %1165 = vmatprep.subr.bf16.mxu0 0
      %1166 = vmatpush1.bf16.xpose.msra.mxu0 %v1163
      %1167 = vmatprep.subr.bf16.mxu0 0
      %1168 = vmatpush1.bf16.xpose.msra.mxu0 0
      %1169 = vmatprep.subr.bf16.mxu0 0
      %1170 = vmatpush1.bf16.xpose.msra.mxu0 0
      %1171 = vmatprep.subr.bf16.mxu0 0
      %1172 = vmatpush1.bf16.xpose.msra.mxu0 0
      %1173 = vmatprep.subr.bf16.mxu0 0
      %1174 = vmatpush1.bf16.xpose.msra.mxu0 0
      %1175 = vmatprep.subr.bf16.mxu0 0
      %1176 = vmatpush1.bf16.xpose.msra.mxu0 0
      %1177 = vmatprep.subr.bf16.mxu0 0
      %1178 = vmatpush1.bf16.xpose.msra.mxu0 0
      %1179 = vmatprep.subr.bf16.mxu0 0
      %1180 = vmatpush1.bf16.xpose.msra.mxu0 0
      %1181 = vmatprep.subr.bf16.mxu0 0
      %1182 = vmatpush1.bf16.xpose.msra.mxu0 0
      %1183 = vmatprep.subr.bf16.mxu0 0
      %1184 = vmatpush1.bf16.xpose.msra.mxu0 0
      %1185 = vmatprep.subr.bf16.mxu0 0
      %1186 = vmatpush1.bf16.xpose.msra.mxu0 0
      %1187 = vmatprep.subr.bf16.mxu0 0
      %1188 = vmatpush1.bf16.xpose.msra.mxu0 0
      %1189 = vmatprep.subr.bf16.mxu0 0
      %1190 = vmatpush1.bf16.xpose.msra.mxu0 0
      %1191 = vmatprep.subr.bf16.mxu0 0
      %1192 = vmatpush1.bf16.xpose.msra.mxu0 0
      %1193 = vmatprep.subr.bf16.mxu0 0
      %1194 = vmatpush1.bf16.xpose.msra.mxu0 0
      %1195 = vmatprep.subr.bf16.mxu0 0
      %1196 = vmatpush1.bf16.xpose.msra.mxu0 0
      %1197 = vmatprep.mubr.bf16.mxu0 0
      %1198 = vmatmul.mubr.bf16.gmra.mrb[0].mxu0 %v1160
      %v1199 = vpop.f32.mrb[0].mxu0
      %v1200 = vadd.f32 0.0, %v1199
      %v1201 = vpop.f32.mrb[0].mxu0
      %v1202 = vpop.f32.mrb[0].mxu0
      %v1203 = vadd.f32 0.0, %v1202
      %v1204 = vpop.f32.mrb[0].mxu0
      %1205 = vdwg.mxu0
      %v1208 = vunpack.c.l.b16 %v339
      %v1209 = vunpack.c.l.b16 %v340
      %v1210 = vpack.c.b16 %v1209, %v1208
      %v1213 = vunpack.c.l.b16 %v371
      %v1214 = vunpack.c.l.b16 %v372
      %v1215 = vpack.c.b16 %v1214, %v1213
      %v1217 = vsel %vm417, %v1210, 0
      %v1220 = vsel %vm417, %v1215, 0
      %1222 = vmatprep.subr.bf16.mxu0 0
      %1223 = vmatpush1.bf16.xpose.msra.mxu0 %v1220
      %1224 = vmatprep.subr.bf16.mxu0 0
      %1225 = vmatpush1.bf16.xpose.msra.mxu0 0
      %1226 = vmatprep.subr.bf16.mxu0 0
      %1227 = vmatpush1.bf16.xpose.msra.mxu0 0
      %1228 = vmatprep.subr.bf16.mxu0 0
      %1229 = vmatpush1.bf16.xpose.msra.mxu0 0
      %1230 = vmatprep.subr.bf16.mxu0 0
      %1231 = vmatpush1.bf16.xpose.msra.mxu0 0
      %1232 = vmatprep.subr.bf16.mxu0 0
      %1233 = vmatpush1.bf16.xpose.msra.mxu0 0
      %1234 = vmatprep.subr.bf16.mxu0 0
      %1235 = vmatpush1.bf16.xpose.msra.mxu0 0
      %1236 = vmatprep.subr.bf16.mxu0 0
      %1237 = vmatpush1.bf16.xpose.msra.mxu0 0
      %1238 = vmatprep.subr.bf16.mxu0 0
      %1239 = vmatpush1.bf16.xpose.msra.mxu0 0
      %1240 = vmatprep.subr.bf16.mxu0 0
      %1241 = vmatpush1.bf16.xpose.msra.mxu0 0
      %1242 = vmatprep.subr.bf16.mxu0 0
      %1243 = vmatpush1.bf16.xpose.msra.mxu0 0
      %1244 = vmatprep.subr.bf16.mxu0 0
      %1245 = vmatpush1.bf16.xpose.msra.mxu0 0
      %1246 = vmatprep.subr.bf16.mxu0 0
      %1247 = vmatpush1.bf16.xpose.msra.mxu0 0
      %1248 = vmatprep.subr.bf16.mxu0 0
      %1249 = vmatpush1.bf16.xpose.msra.mxu0 0
      %1250 = vmatprep.subr.bf16.mxu0 0
      %1251 = vmatpush1.bf16.xpose.msra.mxu0 0
      %1252 = vmatprep.subr.bf16.mxu0 0
      %1253 = vmatpush1.bf16.xpose.msra.mxu0 0
      %1254 = vmatprep.mubr.bf16.mxu0 0
      %1255 = vmatmul.mubr.bf16.gmra.mrb[0].mxu0 %v1217
      %v1256 = vpop.f32.mrb[0].mxu0
      %v1257 = vadd.f32 0.0, %v1256
      %v1258 = vpop.f32.mrb[0].mxu0
      %v1259 = vpop.f32.mrb[0].mxu0
      %v1260 = vadd.f32 0.0, %v1259
      %v1261 = vpop.f32.mrb[0].mxu0
      %1262 = vdwg.mxu0
      %v1265 = vunpack.c.l.b16 %v341
      %v1266 = vunpack.c.l.b16 %v342
      %v1267 = vpack.c.b16 %v1266, %v1265
      %v1270 = vunpack.c.l.b16 %v373
      %v1271 = vunpack.c.l.b16 %v374
      %v1272 = vpack.c.b16 %v1271, %v1270
      %v1274 = vsel %vm417, %v1267, 0
      %v1277 = vsel %vm417, %v1272, 0
      %1279 = vmatprep.subr.bf16.mxu0 0
      %1280 = vmatpush1.bf16.xpose.msra.mxu0 %v1277
      %1281 = vmatprep.subr.bf16.mxu0 0
      %1282 = vmatpush1.bf16.xpose.msra.mxu0 0
      %1283 = vmatprep.subr.bf16.mxu0 0
      %1284 = vmatpush1.bf16.xpose.msra.mxu0 0
      %1285 = vmatprep.subr.bf16.mxu0 0
      %1286 = vmatpush1.bf16.xpose.msra.mxu0 0
      %1287 = vmatprep.subr.bf16.mxu0 0
      %1288 = vmatpush1.bf16.xpose.msra.mxu0 0
      %1289 = vmatprep.subr.bf16.mxu0 0
      %1290 = vmatpush1.bf16.xpose.msra.mxu0 0
      %1291 = vmatprep.subr.bf16.mxu0 0
      %1292 = vmatpush1.bf16.xpose.msra.mxu0 0
      %1293 = vmatprep.subr.bf16.mxu0 0
      %1294 = vmatpush1.bf16.xpose.msra.mxu0 0
      %1295 = vmatprep.subr.bf16.mxu0 0
      %1296 = vmatpush1.bf16.xpose.msra.mxu0 0
      %1297 = vmatprep.subr.bf16.mxu0 0
      %1298 = vmatpush1.bf16.xpose.msra.mxu0 0
      %1299 = vmatprep.subr.bf16.mxu0 0
      %1300 = vmatpush1.bf16.xpose.msra.mxu0 0
      %1301 = vmatprep.subr.bf16.mxu0 0
      %1302 = vmatpush1.bf16.xpose.msra.mxu0 0
      %1303 = vmatprep.subr.bf16.mxu0 0
      %1304 = vmatpush1.bf16.xpose.msra.mxu0 0
      %1305 = vmatprep.subr.bf16.mxu0 0
      %1306 = vmatpush1.bf16.xpose.msra.mxu0 0
      %1307 = vmatprep.subr.bf16.mxu0 0
      %1308 = vmatpush1.bf16.xpose.msra.mxu0 0
      %1309 = vmatprep.subr.bf16.mxu0 0
      %1310 = vmatpush1.bf16.xpose.msra.mxu0 0
      %1311 = vmatprep.mubr.bf16.mxu0 0
      %1312 = vmatmul.mubr.bf16.gmra.mrb[0].mxu0 %v1274
      %v1313 = vpop.f32.mrb[0].mxu0
      %v1314 = vadd.f32 0.0, %v1313
      %v1315 = vpop.f32.mrb[0].mxu0
      %v1316 = vpop.f32.mrb[0].mxu0
      %v1317 = vadd.f32 0.0, %v1316
      %v1318 = vpop.f32.mrb[0].mxu0
      %1319 = vdwg.mxu0
      %v1320 = vmul.f32 %v459, 0.35355338
      %v1321 = vmul.f32 %v462, 0.35355338
      %v1322 = vmul.f32 %v516, 0.35355338
      %v1323 = vmul.f32 %v519, 0.35355338
      %v1324 = vmul.f32 %v573, 0.35355338
      %v1325 = vmul.f32 %v576, 0.35355338
      %v1326 = vmul.f32 %v630, 0.35355338
      %v1327 = vmul.f32 %v633, 0.35355338
      %v1328 = vmul.f32 %v687, 0.35355338
      %v1329 = vmul.f32 %v690, 0.35355338
      %v1330 = vmul.f32 %v744, 0.35355338
      %v1331 = vmul.f32 %v747, 0.35355338
      %v1332 = vmul.f32 %v801, 0.35355338
      %v1333 = vmul.f32 %v804, 0.35355338
      %v1334 = vmul.f32 %v858, 0.35355338
      %v1335 = vmul.f32 %v861, 0.35355338
      %v1336 = vmul.f32 %v915, 0.35355338
      %v1337 = vmul.f32 %v918, 0.35355338
      %v1338 = vmul.f32 %v972, 0.35355338
      %v1339 = vmul.f32 %v975, 0.35355338
      %v1340 = vmul.f32 %v1029, 0.35355338
      %v1341 = vmul.f32 %v1032, 0.35355338
      %v1342 = vmul.f32 %v1086, 0.35355338
      %v1343 = vmul.f32 %v1089, 0.35355338
      %v1344 = vmul.f32 %v1143, 0.35355338
      %v1345 = vmul.f32 %v1146, 0.35355338
      %v1346 = vmul.f32 %v1200, 0.35355338
      %v1347 = vmul.f32 %v1203, 0.35355338
      %v1348 = vmul.f32 %v1257, 0.35355338
      %v1349 = vmul.f32 %v1260, 0.35355338
      %v1350 = vmul.f32 %v1314, 0.35355338
      %v1351 = vmul.f32 %v1317, 0.35355338
      %v1352 = vld [vmem:[%s3] sm:$0xf]
      %v1353 = vld [vmem:[%s5] sm:$0xf]
      %v1354 = vld [vmem:[%s5 + $0x4] sm:$0xf]
      %v1355 = vld [vmem:[%s5 + $0x8] sm:$0xf]
      %v1356 = vld [vmem:[%s5 + $0xc] sm:$0xf]
      %vm1357 = vcmask 1043456
      %v1359 = vsel %vm1357, %v1352, 0
      %1361 = vmatprep.subr.bf16.mxu0 0
      %1362 = vmatpush1.bf16.msra.mxu0 %v1359
      %1363 = vmatprep.subr.bf16.mxu0 0
      %1364 = vmatpush1.bf16.msra.mxu0 0
      %1365 = vmatprep.subr.bf16.mxu0 0
      %1366 = vmatpush1.bf16.msra.mxu0 0
      %1367 = vmatprep.subr.bf16.mxu0 0
      %1368 = vmatpush1.bf16.msra.mxu0 0
      %1369 = vmatprep.subr.bf16.mxu0 0
      %1370 = vmatpush1.bf16.msra.mxu0 0
      %1371 = vmatprep.subr.bf16.mxu0 0
      %1372 = vmatpush1.bf16.msra.mxu0 0
      %1373 = vmatprep.subr.bf16.mxu0 0
      %1374 = vmatpush1.bf16.msra.mxu0 0
      %1375 = vmatprep.subr.bf16.mxu0 0
      %1376 = vmatpush1.bf16.msra.mxu0 0
      %1377 = vmatprep.subr.bf16.mxu0 0
      %1378 = vmatpush1.bf16.msra.mxu0 0
      %1379 = vmatprep.subr.bf16.mxu0 0
      %1380 = vmatpush1.bf16.msra.mxu0 0
      %1381 = vmatprep.subr.bf16.mxu0 0
      %1382 = vmatpush1.bf16.msra.mxu0 0
      %1383 = vmatprep.subr.bf16.mxu0 0
      %1384 = vmatpush1.bf16.msra.mxu0 0
      %1385 = vmatprep.subr.bf16.mxu0 0
      %1386 = vmatpush1.bf16.msra.mxu0 0
      %1387 = vmatprep.subr.bf16.mxu0 0
      %1388 = vmatpush1.bf16.msra.mxu0 0
      %1389 = vmatprep.subr.bf16.mxu0 0
      %1390 = vmatpush1.bf16.msra.mxu0 0
      %1391 = vmatprep.subr.bf16.mxu0 0
      %1392 = vmatpush1.bf16.msra.mxu0 0
      %1393 = vmatprep.mubr.bf16.mxu0 0
      %1394 = vmatmul.mubr.bf16.gmra.mrb[0].mxu0 %v419
      %v1395 = vpop.f32.mrb[0].mxu0
      %v1396 = vadd.f32 0.0, %v1395
      %v1397 = vpop.f32.mrb[0].mxu0
      %v1398 = vpop.f32.mrb[0].mxu0
      %v1399 = vadd.f32 0.0, %v1398
      %v1400 = vpop.f32.mrb[0].mxu0
      %1401 = vdwg.mxu0
      %1402 = vmatprep.subr.bf16.mxu0 0
      %1403 = vmatpush1.bf16.msra.mxu0 %v1359
      %1404 = vmatprep.subr.bf16.mxu0 0
      %1405 = vmatpush1.bf16.msra.mxu0 0
      %1406 = vmatprep.subr.bf16.mxu0 0
      %1407 = vmatpush1.bf16.msra.mxu0 0
      %1408 = vmatprep.subr.bf16.mxu0 0
      %1409 = vmatpush1.bf16.msra.mxu0 0
      %1410 = vmatprep.subr.bf16.mxu0 0
      %1411 = vmatpush1.bf16.msra.mxu0 0
      %1412 = vmatprep.subr.bf16.mxu0 0
      %1413 = vmatpush1.bf16.msra.mxu0 0
      %1414 = vmatprep.subr.bf16.mxu0 0
      %1415 = vmatpush1.bf16.msra.mxu0 0
      %1416 = vmatprep.subr.bf16.mxu0 0
      %1417 = vmatpush1.bf16.msra.mxu0 0
      %1418 = vmatprep.subr.bf16.mxu0 0
      %1419 = vmatpush1.bf16.msra.mxu0 0
      %1420 = vmatprep.subr.bf16.mxu0 0
      %1421 = vmatpush1.bf16.msra.mxu0 0
      %1422 = vmatprep.subr.bf16.mxu0 0
      %1423 = vmatpush1.bf16.msra.mxu0 0
      %1424 = vmatprep.subr.bf16.mxu0 0
      %1425 = vmatpush1.bf16.msra.mxu0 0
      %1426 = vmatprep.subr.bf16.mxu0 0
      %1427 = vmatpush1.bf16.msra.mxu0 0
      %1428 = vmatprep.subr.bf16.mxu0 0
      %1429 = vmatpush1.bf16.msra.mxu0 0
      %1430 = vmatprep.subr.bf16.mxu0 0
      %1431 = vmatpush1.bf16.msra.mxu0 0
      %1432 = vmatprep.subr.bf16.mxu0 0
      %1433 = vmatpush1.bf16.msra.mxu0 0
      %1434 = vmatprep.mubr.bf16.mxu0 0
      %1435 = vmatmul.mubr.bf16.gmra.mrb[0].mxu0 %v476
      %v1436 = vpop.f32.mrb[0].mxu0
      %v1437 = vadd.f32 0.0, %v1436
      %v1438 = vpop.f32.mrb[0].mxu0
      %v1439 = vpop.f32.mrb[0].mxu0
      %v1440 = vadd.f32 0.0, %v1439
      %v1441 = vpop.f32.mrb[0].mxu0
      %1442 = vdwg.mxu0
      %1443 = vmatprep.subr.bf16.mxu0 0
      %1444 = vmatpush1.bf16.msra.mxu0 %v1359
      %1445 = vmatprep.subr.bf16.mxu0 0
      %1446 = vmatpush1.bf16.msra.mxu0 0
      %1447 = vmatprep.subr.bf16.mxu0 0
      %1448 = vmatpush1.bf16.msra.mxu0 0
      %1449 = vmatprep.subr.bf16.mxu0 0
      %1450 = vmatpush1.bf16.msra.mxu0 0
      %1451 = vmatprep.subr.bf16.mxu0 0
      %1452 = vmatpush1.bf16.msra.mxu0 0
      %1453 = vmatprep.subr.bf16.mxu0 0
      %1454 = vmatpush1.bf16.msra.mxu0 0
      %1455 = vmatprep.subr.bf16.mxu0 0
      %1456 = vmatpush1.bf16.msra.mxu0 0
      %1457 = vmatprep.subr.bf16.mxu0 0
      %1458 = vmatpush1.bf16.msra.mxu0 0
      %1459 = vmatprep.subr.bf16.mxu0 0
      %1460 = vmatpush1.bf16.msra.mxu0 0
      %1461 = vmatprep.subr.bf16.mxu0 0
      %1462 = vmatpush1.bf16.msra.mxu0 0
      %1463 = vmatprep.subr.bf16.mxu0 0
      %1464 = vmatpush1.bf16.msra.mxu0 0
      %1465 = vmatprep.subr.bf16.mxu0 0
      %1466 = vmatpush1.bf16.msra.mxu0 0
      %1467 = vmatprep.subr.bf16.mxu0 0
      %1468 = vmatpush1.bf16.msra.mxu0 0
      %1469 = vmatprep.subr.bf16.mxu0 0
      %1470 = vmatpush1.bf16.msra.mxu0 0
      %1471 = vmatprep.subr.bf16.mxu0 0
      %1472 = vmatpush1.bf16.msra.mxu0 0
      %1473 = vmatprep.subr.bf16.mxu0 0
      %1474 = vmatpush1.bf16.msra.mxu0 0
      %1475 = vmatprep.mubr.bf16.mxu0 0
      %1476 = vmatmul.mubr.bf16.gmra.mrb[0].mxu0 %v533
      %v1477 = vpop.f32.mrb[0].mxu0
      %v1478 = vadd.f32 0.0, %v1477
      %v1479 = vpop.f32.mrb[0].mxu0
      %v1480 = vpop.f32.mrb[0].mxu0
      %v1481 = vadd.f32 0.0, %v1480
      %v1482 = vpop.f32.mrb[0].mxu0
      %1483 = vdwg.mxu0
      %1484 = vmatprep.subr.bf16.mxu0 0
      %1485 = vmatpush1.bf16.msra.mxu0 %v1359
      %1486 = vmatprep.subr.bf16.mxu0 0
      %1487 = vmatpush1.bf16.msra.mxu0 0
      %1488 = vmatprep.subr.bf16.mxu0 0
      %1489 = vmatpush1.bf16.msra.mxu0 0
      %1490 = vmatprep.subr.bf16.mxu0 0
      %1491 = vmatpush1.bf16.msra.mxu0 0
      %1492 = vmatprep.subr.bf16.mxu0 0
      %1493 = vmatpush1.bf16.msra.mxu0 0
      %1494 = vmatprep.subr.bf16.mxu0 0
      %1495 = vmatpush1.bf16.msra.mxu0 0
      %1496 = vmatprep.subr.bf16.mxu0 0
      %1497 = vmatpush1.bf16.msra.mxu0 0
      %1498 = vmatprep.subr.bf16.mxu0 0
      %1499 = vmatpush1.bf16.msra.mxu0 0
      %1500 = vmatprep.subr.bf16.mxu0 0
      %1501 = vmatpush1.bf16.msra.mxu0 0
      %1502 = vmatprep.subr.bf16.mxu0 0
      %1503 = vmatpush1.bf16.msra.mxu0 0
      %1504 = vmatprep.subr.bf16.mxu0 0
      %1505 = vmatpush1.bf16.msra.mxu0 0
      %1506 = vmatprep.subr.bf16.mxu0 0
      %1507 = vmatpush1.bf16.msra.mxu0 0
      %1508 = vmatprep.subr.bf16.mxu0 0
      %1509 = vmatpush1.bf16.msra.mxu0 0
      %1510 = vmatprep.subr.bf16.mxu0 0
      %1511 = vmatpush1.bf16.msra.mxu0 0
      %1512 = vmatprep.subr.bf16.mxu0 0
      %1513 = vmatpush1.bf16.msra.mxu0 0
      %1514 = vmatprep.subr.bf16.mxu0 0
      %1515 = vmatpush1.bf16.msra.mxu0 0
      %1516 = vmatprep.mubr.bf16.mxu0 0
      %1517 = vmatmul.mubr.bf16.gmra.mrb[0].mxu0 %v590
      %v1518 = vpop.f32.mrb[0].mxu0
      %v1519 = vadd.f32 0.0, %v1518
      %v1520 = vpop.f32.mrb[0].mxu0
      %v1521 = vpop.f32.mrb[0].mxu0
      %v1522 = vadd.f32 0.0, %v1521
      %v1523 = vpop.f32.mrb[0].mxu0
      %1524 = vdwg.mxu0
      %1525 = vmatprep.subr.bf16.mxu0 0
      %1526 = vmatpush1.bf16.msra.mxu0 %v1359
      %1527 = vmatprep.subr.bf16.mxu0 0
      %1528 = vmatpush1.bf16.msra.mxu0 0
      %1529 = vmatprep.subr.bf16.mxu0 0
      %1530 = vmatpush1.bf16.msra.mxu0 0
      %1531 = vmatprep.subr.bf16.mxu0 0
      %1532 = vmatpush1.bf16.msra.mxu0 0
      %1533 = vmatprep.subr.bf16.mxu0 0
      %1534 = vmatpush1.bf16.msra.mxu0 0
      %1535 = vmatprep.subr.bf16.mxu0 0
      %1536 = vmatpush1.bf16.msra.mxu0 0
      %1537 = vmatprep.subr.bf16.mxu0 0
      %1538 = vmatpush1.bf16.msra.mxu0 0
      %1539 = vmatprep.subr.bf16.mxu0 0
      %1540 = vmatpush1.bf16.msra.mxu0 0
      %1541 = vmatprep.subr.bf16.mxu0 0
      %1542 = vmatpush1.bf16.msra.mxu0 0
      %1543 = vmatprep.subr.bf16.mxu0 0
      %1544 = vmatpush1.bf16.msra.mxu0 0
      %1545 = vmatprep.subr.bf16.mxu0 0
      %1546 = vmatpush1.bf16.msra.mxu0 0
      %1547 = vmatprep.subr.bf16.mxu0 0
      %1548 = vmatpush1.bf16.msra.mxu0 0
      %1549 = vmatprep.subr.bf16.mxu0 0
      %1550 = vmatpush1.bf16.msra.mxu0 0
      %1551 = vmatprep.subr.bf16.mxu0 0
      %1552 = vmatpush1.bf16.msra.mxu0 0
      %1553 = vmatprep.subr.bf16.mxu0 0
      %1554 = vmatpush1.bf16.msra.mxu0 0
      %1555 = vmatprep.subr.bf16.mxu0 0
      %1556 = vmatpush1.bf16.msra.mxu0 0
      %1557 = vmatprep.mubr.bf16.mxu0 0
      %1558 = vmatmul.mubr.bf16.gmra.mrb[0].mxu0 %v647
      %v1559 = vpop.f32.mrb[0].mxu0
      %v1560 = vadd.f32 0.0, %v1559
      %v1561 = vpop.f32.mrb[0].mxu0
      %v1562 = vpop.f32.mrb[0].mxu0
      %v1563 = vadd.f32 0.0, %v1562
      %v1564 = vpop.f32.mrb[0].mxu0
      %1565 = vdwg.mxu0
      %1566 = vmatprep.subr.bf16.mxu0 0
      %1567 = vmatpush1.bf16.msra.mxu0 %v1359
      %1568 = vmatprep.subr.bf16.mxu0 0
      %1569 = vmatpush1.bf16.msra.mxu0 0
      %1570 = vmatprep.subr.bf16.mxu0 0
      %1571 = vmatpush1.bf16.msra.mxu0 0
      %1572 = vmatprep.subr.bf16.mxu0 0
      %1573 = vmatpush1.bf16.msra.mxu0 0
      %1574 = vmatprep.subr.bf16.mxu0 0
      %1575 = vmatpush1.bf16.msra.mxu0 0
      %1576 = vmatprep.subr.bf16.mxu0 0
      %1577 = vmatpush1.bf16.msra.mxu0 0
      %1578 = vmatprep.subr.bf16.mxu0 0
      %1579 = vmatpush1.bf16.msra.mxu0 0
      %1580 = vmatprep.subr.bf16.mxu0 0
      %1581 = vmatpush1.bf16.msra.mxu0 0
      %1582 = vmatprep.subr.bf16.mxu0 0
      %1583 = vmatpush1.bf16.msra.mxu0 0
      %1584 = vmatprep.subr.bf16.mxu0 0
      %1585 = vmatpush1.bf16.msra.mxu0 0
      %1586 = vmatprep.subr.bf16.mxu0 0
      %1587 = vmatpush1.bf16.msra.mxu0 0
      %1588 = vmatprep.subr.bf16.mxu0 0
      %1589 = vmatpush1.bf16.msra.mxu0 0
      %1590 = vmatprep.subr.bf16.mxu0 0
      %1591 = vmatpush1.bf16.msra.mxu0 0
      %1592 = vmatprep.subr.bf16.mxu0 0
      %1593 = vmatpush1.bf16.msra.mxu0 0
      %1594 = vmatprep.subr.bf16.mxu0 0
      %1595 = vmatpush1.bf16.msra.mxu0 0
      %1596 = vmatprep.subr.bf16.mxu0 0
      %1597 = vmatpush1.bf16.msra.mxu0 0
      %1598 = vmatprep.mubr.bf16.mxu0 0
      %1599 = vmatmul.mubr.bf16.gmra.mrb[0].mxu0 %v704
      %v1600 = vpop.f32.mrb[0].mxu0
      %v1601 = vadd.f32 0.0, %v1600
      %v1602 = vpop.f32.mrb[0].mxu0
      %v1603 = vpop.f32.mrb[0].mxu0
      %v1604 = vadd.f32 0.0, %v1603
      %v1605 = vpop.f32.mrb[0].mxu0
      %1606 = vdwg.mxu0
      %1607 = vmatprep.subr.bf16.mxu0 0
      %1608 = vmatpush1.bf16.msra.mxu0 %v1359
      %1609 = vmatprep.subr.bf16.mxu0 0
      %1610 = vmatpush1.bf16.msra.mxu0 0
      %1611 = vmatprep.subr.bf16.mxu0 0
      %1612 = vmatpush1.bf16.msra.mxu0 0
      %1613 = vmatprep.subr.bf16.mxu0 0
      %1614 = vmatpush1.bf16.msra.mxu0 0
      %1615 = vmatprep.subr.bf16.mxu0 0
      %1616 = vmatpush1.bf16.msra.mxu0 0
      %1617 = vmatprep.subr.bf16.mxu0 0
      %1618 = vmatpush1.bf16.msra.mxu0 0
      %1619 = vmatprep.subr.bf16.mxu0 0
      %1620 = vmatpush1.bf16.msra.mxu0 0
      %1621 = vmatprep.subr.bf16.mxu0 0
      %1622 = vmatpush1.bf16.msra.mxu0 0
      %1623 = vmatprep.subr.bf16.mxu0 0
      %1624 = vmatpush1.bf16.msra.mxu0 0
      %1625 = vmatprep.subr.bf16.mxu0 0
      %1626 = vmatpush1.bf16.msra.mxu0 0
      %1627 = vmatprep.subr.bf16.mxu0 0
      %1628 = vmatpush1.bf16.msra.mxu0 0
      %1629 = vmatprep.subr.bf16.mxu0 0
      %1630 = vmatpush1.bf16.msra.mxu0 0
      %1631 = vmatprep.subr.bf16.mxu0 0
      %1632 = vmatpush1.bf16.msra.mxu0 0
      %1633 = vmatprep.subr.bf16.mxu0 0
      %1634 = vmatpush1.bf16.msra.mxu0 0
      %1635 = vmatprep.subr.bf16.mxu0 0
      %1636 = vmatpush1.bf16.msra.mxu0 0
      %1637 = vmatprep.subr.bf16.mxu0 0
      %1638 = vmatpush1.bf16.msra.mxu0 0
      %1639 = vmatprep.mubr.bf16.mxu0 0
      %1640 = vmatmul.mubr.bf16.gmra.mrb[0].mxu0 %v761
      %v1641 = vpop.f32.mrb[0].mxu0
      %v1642 = vadd.f32 0.0, %v1641
      %v1643 = vpop.f32.mrb[0].mxu0
      %v1644 = vpop.f32.mrb[0].mxu0
      %v1645 = vadd.f32 0.0, %v1644
      %v1646 = vpop.f32.mrb[0].mxu0
      %1647 = vdwg.mxu0
      %1648 = vmatprep.subr.bf16.mxu0 0
      %1649 = vmatpush1.bf16.msra.mxu0 %v1359
      %1650 = vmatprep.subr.bf16.mxu0 0
      %1651 = vmatpush1.bf16.msra.mxu0 0
      %1652 = vmatprep.subr.bf16.mxu0 0
      %1653 = vmatpush1.bf16.msra.mxu0 0
      %1654 = vmatprep.subr.bf16.mxu0 0
      %1655 = vmatpush1.bf16.msra.mxu0 0
      %1656 = vmatprep.subr.bf16.mxu0 0
      %1657 = vmatpush1.bf16.msra.mxu0 0
      %1658 = vmatprep.subr.bf16.mxu0 0
      %1659 = vmatpush1.bf16.msra.mxu0 0
      %1660 = vmatprep.subr.bf16.mxu0 0
      %1661 = vmatpush1.bf16.msra.mxu0 0
      %1662 = vmatprep.subr.bf16.mxu0 0
      %1663 = vmatpush1.bf16.msra.mxu0 0
      %1664 = vmatprep.subr.bf16.mxu0 0
      %1665 = vmatpush1.bf16.msra.mxu0 0
      %1666 = vmatprep.subr.bf16.mxu0 0
      %1667 = vmatpush1.bf16.msra.mxu0 0
      %1668 = vmatprep.subr.bf16.mxu0 0
      %1669 = vmatpush1.bf16.msra.mxu0 0
      %1670 = vmatprep.subr.bf16.mxu0 0
      %1671 = vmatpush1.bf16.msra.mxu0 0
      %1672 = vmatprep.subr.bf16.mxu0 0
      %1673 = vmatpush1.bf16.msra.mxu0 0
      %1674 = vmatprep.subr.bf16.mxu0 0
      %1675 = vmatpush1.bf16.msra.mxu0 0
      %1676 = vmatprep.subr.bf16.mxu0 0
      %1677 = vmatpush1.bf16.msra.mxu0 0
      %1678 = vmatprep.subr.bf16.mxu0 0
      %1679 = vmatpush1.bf16.msra.mxu0 0
      %1680 = vmatprep.mubr.bf16.mxu0 0
      %1681 = vmatmul.mubr.bf16.gmra.mrb[0].mxu0 %v818
      %v1682 = vpop.f32.mrb[0].mxu0
      %v1683 = vadd.f32 0.0, %v1682
      %v1684 = vpop.f32.mrb[0].mxu0
      %v1685 = vpop.f32.mrb[0].mxu0
      %v1686 = vadd.f32 0.0, %v1685
      %v1687 = vpop.f32.mrb[0].mxu0
      %1688 = vdwg.mxu0
      %1689 = vmatprep.subr.bf16.mxu0 0
      %1690 = vmatpush1.bf16.msra.mxu0 %v1359
      %1691 = vmatprep.subr.bf16.mxu0 0
      %1692 = vmatpush1.bf16.msra.mxu0 0
      %1693 = vmatprep.subr.bf16.mxu0 0
      %1694 = vmatpush1.bf16.msra.mxu0 0
      %1695 = vmatprep.subr.bf16.mxu0 0
      %1696 = vmatpush1.bf16.msra.mxu0 0
      %1697 = vmatprep.subr.bf16.mxu0 0
      %1698 = vmatpush1.bf16.msra.mxu0 0
      %1699 = vmatprep.subr.bf16.mxu0 0
      %1700 = vmatpush1.bf16.msra.mxu0 0
      %1701 = vmatprep.subr.bf16.mxu0 0
      %1702 = vmatpush1.bf16.msra.mxu0 0
      %1703 = vmatprep.subr.bf16.mxu0 0
      %1704 = vmatpush1.bf16.msra.mxu0 0
      %1705 = vmatprep.subr.bf16.mxu0 0
      %1706 = vmatpush1.bf16.msra.mxu0 0
      %1707 = vmatprep.subr.bf16.mxu0 0
      %1708 = vmatpush1.bf16.msra.mxu0 0
      %1709 = vmatprep.subr.bf16.mxu0 0
      %1710 = vmatpush1.bf16.msra.mxu0 0
      %1711 = vmatprep.subr.bf16.mxu0 0
      %1712 = vmatpush1.bf16.msra.mxu0 0
      %1713 = vmatprep.subr.bf16.mxu0 0
      %1714 = vmatpush1.bf16.msra.mxu0 0
      %1715 = vmatprep.subr.bf16.mxu0 0
      %1716 = vmatpush1.bf16.msra.mxu0 0
      %1717 = vmatprep.subr.bf16.mxu0 0
      %1718 = vmatpush1.bf16.msra.mxu0 0
      %1719 = vmatprep.subr.bf16.mxu0 0
      %1720 = vmatpush1.bf16.msra.mxu0 0
      %1721 = vmatprep.mubr.bf16.mxu0 0
      %1722 = vmatmul.mubr.bf16.gmra.mrb[0].mxu0 %v875
      %v1723 = vpop.f32.mrb[0].mxu0
      %v1724 = vadd.f32 0.0, %v1723
      %v1725 = vpop.f32.mrb[0].mxu0
      %v1726 = vpop.f32.mrb[0].mxu0
      %v1727 = vadd.f32 0.0, %v1726
      %v1728 = vpop.f32.mrb[0].mxu0
      %1729 = vdwg.mxu0
      %1730 = vmatprep.subr.bf16.mxu0 0
      %1731 = vmatpush1.bf16.msra.mxu0 %v1359
      %1732 = vmatprep.subr.bf16.mxu0 0
      %1733 = vmatpush1.bf16.msra.mxu0 0
      %1734 = vmatprep.subr.bf16.mxu0 0
      %1735 = vmatpush1.bf16.msra.mxu0 0
      %1736 = vmatprep.subr.bf16.mxu0 0
      %1737 = vmatpush1.bf16.msra.mxu0 0
      %1738 = vmatprep.subr.bf16.mxu0 0
      %1739 = vmatpush1.bf16.msra.mxu0 0
      %1740 = vmatprep.subr.bf16.mxu0 0
      %1741 = vmatpush1.bf16.msra.mxu0 0
      %1742 = vmatprep.subr.bf16.mxu0 0
      %1743 = vmatpush1.bf16.msra.mxu0 0
      %1744 = vmatprep.subr.bf16.mxu0 0
      %1745 = vmatpush1.bf16.msra.mxu0 0
      %1746 = vmatprep.subr.bf16.mxu0 0
      %1747 = vmatpush1.bf16.msra.mxu0 0
      %1748 = vmatprep.subr.bf16.mxu0 0
      %1749 = vmatpush1.bf16.msra.mxu0 0
      %1750 = vmatprep.subr.bf16.mxu0 0
      %1751 = vmatpush1.bf16.msra.mxu0 0
      %1752 = vmatprep.subr.bf16.mxu0 0
      %1753 = vmatpush1.bf16.msra.mxu0 0
      %1754 = vmatprep.subr.bf16.mxu0 0
      %1755 = vmatpush1.bf16.msra.mxu0 0
      %1756 = vmatprep.subr.bf16.mxu0 0
      %1757 = vmatpush1.bf16.msra.mxu0 0
      %1758 = vmatprep.subr.bf16.mxu0 0
      %1759 = vmatpush1.bf16.msra.mxu0 0
      %1760 = vmatprep.subr.bf16.mxu0 0
      %1761 = vmatpush1.bf16.msra.mxu0 0
      %1762 = vmatprep.mubr.bf16.mxu0 0
      %1763 = vmatmul.mubr.bf16.gmra.mrb[0].mxu0 %v932
      %v1764 = vpop.f32.mrb[0].mxu0
      %v1765 = vadd.f32 0.0, %v1764
      %v1766 = vpop.f32.mrb[0].mxu0
      %v1767 = vpop.f32.mrb[0].mxu0
      %v1768 = vadd.f32 0.0, %v1767
      %v1769 = vpop.f32.mrb[0].mxu0
      %1770 = vdwg.mxu0
      %1771 = vmatprep.subr.bf16.mxu0 0
      %1772 = vmatpush1.bf16.msra.mxu0 %v1359
      %1773 = vmatprep.subr.bf16.mxu0 0
      %1774 = vmatpush1.bf16.msra.mxu0 0
      %1775 = vmatprep.subr.bf16.mxu0 0
      %1776 = vmatpush1.bf16.msra.mxu0 0
      %1777 = vmatprep.subr.bf16.mxu0 0
      %1778 = vmatpush1.bf16.msra.mxu0 0
      %1779 = vmatprep.subr.bf16.mxu0 0
      %1780 = vmatpush1.bf16.msra.mxu0 0
      %1781 = vmatprep.subr.bf16.mxu0 0
      %1782 = vmatpush1.bf16.msra.mxu0 0
      %1783 = vmatprep.subr.bf16.mxu0 0
      %1784 = vmatpush1.bf16.msra.mxu0 0
      %1785 = vmatprep.subr.bf16.mxu0 0
      %1786 = vmatpush1.bf16.msra.mxu0 0
      %1787 = vmatprep.subr.bf16.mxu0 0
      %1788 = vmatpush1.bf16.msra.mxu0 0
      %1789 = vmatprep.subr.bf16.mxu0 0
      %1790 = vmatpush1.bf16.msra.mxu0 0
      %1791 = vmatprep.subr.bf16.mxu0 0
      %1792 = vmatpush1.bf16.msra.mxu0 0
      %1793 = vmatprep.subr.bf16.mxu0 0
      %1794 = vmatpush1.bf16.msra.mxu0 0
      %1795 = vmatprep.subr.bf16.mxu0 0
      %1796 = vmatpush1.bf16.msra.mxu0 0
      %1797 = vmatprep.subr.bf16.mxu0 0
      %1798 = vmatpush1.bf16.msra.mxu0 0
      %1799 = vmatprep.subr.bf16.mxu0 0
      %1800 = vmatpush1.bf16.msra.mxu0 0
      %1801 = vmatprep.subr.bf16.mxu0 0
      %1802 = vmatpush1.bf16.msra.mxu0 0
      %1803 = vmatprep.mubr.bf16.mxu0 0
      %1804 = vmatmul.mubr.bf16.gmra.mrb[0].mxu0 %v989
      %v1805 = vpop.f32.mrb[0].mxu0
      %v1806 = vadd.f32 0.0, %v1805
      %v1807 = vpop.f32.mrb[0].mxu0
      %v1808 = vpop.f32.mrb[0].mxu0
      %v1809 = vadd.f32 0.0, %v1808
      %v1810 = vpop.f32.mrb[0].mxu0
      %1811 = vdwg.mxu0
      %1812 = vmatprep.subr.bf16.mxu0 0
      %1813 = vmatpush1.bf16.msra.mxu0 %v1359
      %1814 = vmatprep.subr.bf16.mxu0 0
      %1815 = vmatpush1.bf16.msra.mxu0 0
      %1816 = vmatprep.subr.bf16.mxu0 0
      %1817 = vmatpush1.bf16.msra.mxu0 0
      %1818 = vmatprep.subr.bf16.mxu0 0
      %1819 = vmatpush1.bf16.msra.mxu0 0
      %1820 = vmatprep.subr.bf16.mxu0 0
      %1821 = vmatpush1.bf16.msra.mxu0 0
      %1822 = vmatprep.subr.bf16.mxu0 0
      %1823 = vmatpush1.bf16.msra.mxu0 0
      %1824 = vmatprep.subr.bf16.mxu0 0
      %1825 = vmatpush1.bf16.msra.mxu0 0
      %1826 = vmatprep.subr.bf16.mxu0 0
      %1827 = vmatpush1.bf16.msra.mxu0 0
      %1828 = vmatprep.subr.bf16.mxu0 0
      %1829 = vmatpush1.bf16.msra.mxu0 0
      %1830 = vmatprep.subr.bf16.mxu0 0
      %1831 = vmatpush1.bf16.msra.mxu0 0
      %1832 = vmatprep.subr.bf16.mxu0 0
      %1833 = vmatpush1.bf16.msra.mxu0 0
      %1834 = vmatprep.subr.bf16.mxu0 0
      %1835 = vmatpush1.bf16.msra.mxu0 0
      %1836 = vmatprep.subr.bf16.mxu0 0
      %1837 = vmatpush1.bf16.msra.mxu0 0
      %1838 = vmatprep.subr.bf16.mxu0 0
      %1839 = vmatpush1.bf16.msra.mxu0 0
      %1840 = vmatprep.subr.bf16.mxu0 0
      %1841 = vmatpush1.bf16.msra.mxu0 0
      %1842 = vmatprep.subr.bf16.mxu0 0
      %1843 = vmatpush1.bf16.msra.mxu0 0
      %1844 = vmatprep.mubr.bf16.mxu0 0
      %1845 = vmatmul.mubr.bf16.gmra.mrb[0].mxu0 %v1046
      %v1846 = vpop.f32.mrb[0].mxu0
      %v1847 = vadd.f32 0.0, %v1846
      %v1848 = vpop.f32.mrb[0].mxu0
      %v1849 = vpop.f32.mrb[0].mxu0
      %v1850 = vadd.f32 0.0, %v1849
      %v1851 = vpop.f32.mrb[0].mxu0
      %1852 = vdwg.mxu0
      %1853 = vmatprep.subr.bf16.mxu0 0
      %1854 = vmatpush1.bf16.msra.mxu0 %v1359
      %1855 = vmatprep.subr.bf16.mxu0 0
      %1856 = vmatpush1.bf16.msra.mxu0 0
      %1857 = vmatprep.subr.bf16.mxu0 0
      %1858 = vmatpush1.bf16.msra.mxu0 0
      %1859 = vmatprep.subr.bf16.mxu0 0
      %1860 = vmatpush1.bf16.msra.mxu0 0
      %1861 = vmatprep.subr.bf16.mxu0 0
      %1862 = vmatpush1.bf16.msra.mxu0 0
      %1863 = vmatprep.subr.bf16.mxu0 0
      %1864 = vmatpush1.bf16.msra.mxu0 0
      %1865 = vmatprep.subr.bf16.mxu0 0
      %1866 = vmatpush1.bf16.msra.mxu0 0
      %1867 = vmatprep.subr.bf16.mxu0 0
      %1868 = vmatpush1.bf16.msra.mxu0 0
      %1869 = vmatprep.subr.bf16.mxu0 0
      %1870 = vmatpush1.bf16.msra.mxu0 0
      %1871 = vmatprep.subr.bf16.mxu0 0
      %1872 = vmatpush1.bf16.msra.mxu0 0
      %1873 = vmatprep.subr.bf16.mxu0 0
      %1874 = vmatpush1.bf16.msra.mxu0 0
      %1875 = vmatprep.subr.bf16.mxu0 0
      %1876 = vmatpush1.bf16.msra.mxu0 0
      %1877 = vmatprep.subr.bf16.mxu0 0
      %1878 = vmatpush1.bf16.msra.mxu0 0
      %1879 = vmatprep.subr.bf16.mxu0 0
      %1880 = vmatpush1.bf16.msra.mxu0 0
      %1881 = vmatprep.subr.bf16.mxu0 0
      %1882 = vmatpush1.bf16.msra.mxu0 0
      %1883 = vmatprep.subr.bf16.mxu0 0
      %1884 = vmatpush1.bf16.msra.mxu0 0
      %1885 = vmatprep.mubr.bf16.mxu0 0
      %1886 = vmatmul.mubr.bf16.gmra.mrb[0].mxu0 %v1103
      %v1887 = vpop.f32.mrb[0].mxu0
      %v1888 = vadd.f32 0.0, %v1887
      %v1889 = vpop.f32.mrb[0].mxu0
      %v1890 = vpop.f32.mrb[0].mxu0
      %v1891 = vadd.f32 0.0, %v1890
      %v1892 = vpop.f32.mrb[0].mxu0
      %1893 = vdwg.mxu0
      %1894 = vmatprep.subr.bf16.mxu0 0
      %1895 = vmatpush1.bf16.msra.mxu0 %v1359
      %1896 = vmatprep.subr.bf16.mxu0 0
      %1897 = vmatpush1.bf16.msra.mxu0 0
      %1898 = vmatprep.subr.bf16.mxu0 0
      %1899 = vmatpush1.bf16.msra.mxu0 0
      %1900 = vmatprep.subr.bf16.mxu0 0
      %1901 = vmatpush1.bf16.msra.mxu0 0
      %1902 = vmatprep.subr.bf16.mxu0 0
      %1903 = vmatpush1.bf16.msra.mxu0 0
      %1904 = vmatprep.subr.bf16.mxu0 0
      %1905 = vmatpush1.bf16.msra.mxu0 0
      %1906 = vmatprep.subr.bf16.mxu0 0
      %1907 = vmatpush1.bf16.msra.mxu0 0
      %1908 = vmatprep.subr.bf16.mxu0 0
      %1909 = vmatpush1.bf16.msra.mxu0 0
      %1910 = vmatprep.subr.bf16.mxu0 0
      %1911 = vmatpush1.bf16.msra.mxu0 0
      %1912 = vmatprep.subr.bf16.mxu0 0
      %1913 = vmatpush1.bf16.msra.mxu0 0
      %1914 = vmatprep.subr.bf16.mxu0 0
      %1915 = vmatpush1.bf16.msra.mxu0 0
      %1916 = vmatprep.subr.bf16.mxu0 0
      %1917 = vmatpush1.bf16.msra.mxu0 0
      %1918 = vmatprep.subr.bf16.mxu0 0
      %1919 = vmatpush1.bf16.msra.mxu0 0
      %1920 = vmatprep.subr.bf16.mxu0 0
      %1921 = vmatpush1.bf16.msra.mxu0 0
      %1922 = vmatprep.subr.bf16.mxu0 0
      %1923 = vmatpush1.bf16.msra.mxu0 0
      %1924 = vmatprep.subr.bf16.mxu0 0
      %1925 = vmatpush1.bf16.msra.mxu0 0
      %1926 = vmatprep.mubr.bf16.mxu0 0
      %1927 = vmatmul.mubr.bf16.gmra.mrb[0].mxu0 %v1160
      %v1928 = vpop.f32.mrb[0].mxu0
      %v1929 = vadd.f32 0.0, %v1928
      %v1930 = vpop.f32.mrb[0].mxu0
      %v1931 = vpop.f32.mrb[0].mxu0
      %v1932 = vadd.f32 0.0, %v1931
      %v1933 = vpop.f32.mrb[0].mxu0
      %1934 = vdwg.mxu0
      %1935 = vmatprep.subr.bf16.mxu0 0
      %1936 = vmatpush1.bf16.msra.mxu0 %v1359
      %1937 = vmatprep.subr.bf16.mxu0 0
      %1938 = vmatpush1.bf16.msra.mxu0 0
      %1939 = vmatprep.subr.bf16.mxu0 0
      %1940 = vmatpush1.bf16.msra.mxu0 0
      %1941 = vmatprep.subr.bf16.mxu0 0
      %1942 = vmatpush1.bf16.msra.mxu0 0
      %1943 = vmatprep.subr.bf16.mxu0 0
      %1944 = vmatpush1.bf16.msra.mxu0 0
      %1945 = vmatprep.subr.bf16.mxu0 0
      %1946 = vmatpush1.bf16.msra.mxu0 0
      %1947 = vmatprep.subr.bf16.mxu0 0
      %1948 = vmatpush1.bf16.msra.mxu0 0
      %1949 = vmatprep.subr.bf16.mxu0 0
      %1950 = vmatpush1.bf16.msra.mxu0 0
      %1951 = vmatprep.subr.bf16.mxu0 0
      %1952 = vmatpush1.bf16.msra.mxu0 0
      %1953 = vmatprep.subr.bf16.mxu0 0
      %1954 = vmatpush1.bf16.msra.mxu0 0
      %1955 = vmatprep.subr.bf16.mxu0 0
      %1956 = vmatpush1.bf16.msra.mxu0 0
      %1957 = vmatprep.subr.bf16.mxu0 0
      %1958 = vmatpush1.bf16.msra.mxu0 0
      %1959 = vmatprep.subr.bf16.mxu0 0
      %1960 = vmatpush1.bf16.msra.mxu0 0
      %1961 = vmatprep.subr.bf16.mxu0 0
      %1962 = vmatpush1.bf16.msra.mxu0 0
      %1963 = vmatprep.subr.bf16.mxu0 0
      %1964 = vmatpush1.bf16.msra.mxu0 0
      %1965 = vmatprep.subr.bf16.mxu0 0
      %1966 = vmatpush1.bf16.msra.mxu0 0
      %1967 = vmatprep.mubr.bf16.mxu0 0
      %1968 = vmatmul.mubr.bf16.gmra.mrb[0].mxu0 %v1217
      %v1969 = vpop.f32.mrb[0].mxu0
      %v1970 = vadd.f32 0.0, %v1969
      %v1971 = vpop.f32.mrb[0].mxu0
      %v1972 = vpop.f32.mrb[0].mxu0
      %v1973 = vadd.f32 0.0, %v1972
      %v1974 = vpop.f32.mrb[0].mxu0
      %1975 = vdwg.mxu0
      %1976 = vmatprep.subr.bf16.mxu0 0
      %1977 = vmatpush1.bf16.msra.mxu0 %v1359
      %1978 = vmatprep.subr.bf16.mxu0 0
      %1979 = vmatpush1.bf16.msra.mxu0 0
      %1980 = vmatprep.subr.bf16.mxu0 0
      %1981 = vmatpush1.bf16.msra.mxu0 0
      %1982 = vmatprep.subr.bf16.mxu0 0
      %1983 = vmatpush1.bf16.msra.mxu0 0
      %1984 = vmatprep.subr.bf16.mxu0 0
      %1985 = vmatpush1.bf16.msra.mxu0 0
      %1986 = vmatprep.subr.bf16.mxu0 0
      %1987 = vmatpush1.bf16.msra.mxu0 0
      %1988 = vmatprep.subr.bf16.mxu0 0
      %1989 = vmatpush1.bf16.msra.mxu0 0
      %1990 = vmatprep.subr.bf16.mxu0 0
      %1991 = vmatpush1.bf16.msra.mxu0 0
      %1992 = vmatprep.subr.bf16.mxu0 0
      %1993 = vmatpush1.bf16.msra.mxu0 0
      %1994 = vmatprep.subr.bf16.mxu0 0
      %1995 = vmatpush1.bf16.msra.mxu0 0
      %1996 = vmatprep.subr.bf16.mxu0 0
      %1997 = vmatpush1.bf16.msra.mxu0 0
      %1998 = vmatprep.subr.bf16.mxu0 0
      %1999 = vmatpush1.bf16.msra.mxu0 0
      %2000 = vmatprep.subr.bf16.mxu0 0
      %2001 = vmatpush1.bf16.msra.mxu0 0
      %2002 = vmatprep.subr.bf16.mxu0 0
      %2003 = vmatpush1.bf16.msra.mxu0 0
      %2004 = vmatprep.subr.bf16.mxu0 0
      %2005 = vmatpush1.bf16.msra.mxu0 0
      %2006 = vmatprep.subr.bf16.mxu0 0
      %2007 = vmatpush1.bf16.msra.mxu0 0
      %2008 = vmatprep.mubr.bf16.mxu0 0
      %2009 = vmatmul.mubr.bf16.gmra.mrb[0].mxu0 %v1274
      %v2010 = vpop.f32.mrb[0].mxu0
      %v2011 = vadd.f32 0.0, %v2010
      %v2012 = vpop.f32.mrb[0].mxu0
      %v2013 = vpop.f32.mrb[0].mxu0
      %v2014 = vadd.f32 0.0, %v2013
      %v2015 = vpop.f32.mrb[0].mxu0
      %2016 = vdwg.mxu0
      %v2017 = vld [vmem:[%s4] sm:$0xff]
      %v2018 = vld [vmem:[%s4 + $0x8] sm:$0xff]
      %v2019 = vmul.f32 %v1396, %v2017
      %v2020 = vmul.f32 %v1399, %v2018
      %v2021 = vmul.f32 %v1437, %v2017
      %v2022 = vmul.f32 %v1440, %v2018
      %v2023 = vmul.f32 %v1478, %v2017
      %v2024 = vmul.f32 %v1481, %v2018
      %v2025 = vmul.f32 %v1519, %v2017
      %v2026 = vmul.f32 %v1522, %v2018
      %v2027 = vmul.f32 %v1560, %v2017
      %v2028 = vmul.f32 %v1563, %v2018
      %v2029 = vmul.f32 %v1601, %v2017
      %v2030 = vmul.f32 %v1604, %v2018
      %v2031 = vmul.f32 %v1642, %v2017
      %v2032 = vmul.f32 %v1645, %v2018
      %v2033 = vmul.f32 %v1683, %v2017
      %v2034 = vmul.f32 %v1686, %v2018
      %v2035 = vmul.f32 %v1724, %v2017
      %v2036 = vmul.f32 %v1727, %v2018
      %v2037 = vmul.f32 %v1765, %v2017
      %v2038 = vmul.f32 %v1768, %v2018
      %v2039 = vmul.f32 %v1806, %v2017
      %v2040 = vmul.f32 %v1809, %v2018
      %v2041 = vmul.f32 %v1847, %v2017
      %v2042 = vmul.f32 %v1850, %v2018
      %v2043 = vmul.f32 %v1888, %v2017
      %v2044 = vmul.f32 %v1891, %v2018
      %v2045 = vmul.f32 %v1929, %v2017
      %v2046 = vmul.f32 %v1932, %v2018
      %v2047 = vmul.f32 %v1970, %v2017
      %v2048 = vmul.f32 %v1973, %v2018
      %v2049 = vmul.f32 %v2011, %v2017
      %v2050 = vmul.f32 %v2014, %v2018
      %v2051 = vpack.c.bf16 %v2020, %v2019
      %v2052 = vpack.c.bf16 %v2022, %v2021
      %v2053 = vpack.c.bf16 %v2024, %v2023
      %v2054 = vpack.c.bf16 %v2026, %v2025
      %v2055 = vpack.c.bf16 %v2028, %v2027
      %v2056 = vpack.c.bf16 %v2030, %v2029
      %v2057 = vpack.c.bf16 %v2032, %v2031
      %v2058 = vpack.c.bf16 %v2034, %v2033
      %v2059 = vpack.c.bf16 %v2036, %v2035
      %v2060 = vpack.c.bf16 %v2038, %v2037
      %v2061 = vpack.c.bf16 %v2040, %v2039
      %v2062 = vpack.c.bf16 %v2042, %v2041
      %v2063 = vpack.c.bf16 %v2044, %v2043
      %v2064 = vpack.c.bf16 %v2046, %v2045
      %v2065 = vpack.c.bf16 %v2048, %v2047
      %v2066 = vpack.c.bf16 %v2050, %v2049
      %v2071 = vunpack.c.l.b16 %v1353
      %v2072 = vunpack.c.l.b16 %v1354
      %v2073 = vunpack.c.l.b16 %v1355
      %v2074 = vunpack.c.l.b16 %v1356
      %v2075 = vpack.c.b16 %v2072, %v2071
      %v2076 = vpack.c.b16 %v2074, %v2073
      %vm2079 = vcmask 261120
      %v2081 = vsel %vm2079, %v2051, 0
      %2083 = vmatprep.subr.bf16.mxu0 0
      %2084 = vmatpush1.bf16.msra.mxu0 %v2075
      %2085 = vmatprep.subr.bf16.mxu0 0
      %2086 = vmatpush1.bf16.msra.mxu0 %v2076
      %2087 = vmatprep.subr.bf16.mxu0 0
      %2088 = vmatpush1.bf16.msra.mxu0 0
      %2089 = vmatprep.subr.bf16.mxu0 0
      %2090 = vmatpush1.bf16.msra.mxu0 0
      %2091 = vmatprep.subr.bf16.mxu0 0
      %2092 = vmatpush1.bf16.msra.mxu0 0
      %2093 = vmatprep.subr.bf16.mxu0 0
      %2094 = vmatpush1.bf16.msra.mxu0 0
      %2095 = vmatprep.subr.bf16.mxu0 0
      %2096 = vmatpush1.bf16.msra.mxu0 0
      %2097 = vmatprep.subr.bf16.mxu0 0
      %2098 = vmatpush1.bf16.msra.mxu0 0
      %2099 = vmatprep.subr.bf16.mxu0 0
      %2100 = vmatpush1.bf16.msra.mxu0 0
      %2101 = vmatprep.subr.bf16.mxu0 0
      %2102 = vmatpush1.bf16.msra.mxu0 0
      %2103 = vmatprep.subr.bf16.mxu0 0
      %2104 = vmatpush1.bf16.msra.mxu0 0
      %2105 = vmatprep.subr.bf16.mxu0 0
      %2106 = vmatpush1.bf16.msra.mxu0 0
      %2107 = vmatprep.subr.bf16.mxu0 0
      %2108 = vmatpush1.bf16.msra.mxu0 0
      %2109 = vmatprep.subr.bf16.mxu0 0
      %2110 = vmatpush1.bf16.msra.mxu0 0
      %2111 = vmatprep.subr.bf16.mxu0 0
      %2112 = vmatpush1.bf16.msra.mxu0 0
      %2113 = vmatprep.subr.bf16.mxu0 0
      %2114 = vmatpush1.bf16.msra.mxu0 0
      %2115 = vmatprep.mubr.bf16.mxu0 0
      %2116 = vmatmul.mubr.bf16.gmra.mrb[0].mxu0 %v2081
      %v2117 = vpop.f32.mrb[0].mxu0
      %v2118 = vadd.f32 0.0, %v2117
      %v2119 = vpop.f32.mrb[0].mxu0
      %v2120 = vpop.f32.mrb[0].mxu0
      %v2121 = vadd.f32 0.0, %v2120
      %v2122 = vpop.f32.mrb[0].mxu0
      %2123 = vdwg.mxu0
      %v2125 = vsel %vm2079, %v2052, 0
      %2127 = vmatprep.subr.bf16.mxu0 0
      %2128 = vmatpush1.bf16.msra.mxu0 %v2075
      %2129 = vmatprep.subr.bf16.mxu0 0
      %2130 = vmatpush1.bf16.msra.mxu0 %v2076
      %2131 = vmatprep.subr.bf16.mxu0 0
      %2132 = vmatpush1.bf16.msra.mxu0 0
      %2133 = vmatprep.subr.bf16.mxu0 0
      %2134 = vmatpush1.bf16.msra.mxu0 0
      %2135 = vmatprep.subr.bf16.mxu0 0
      %2136 = vmatpush1.bf16.msra.mxu0 0
      %2137 = vmatprep.subr.bf16.mxu0 0
      %2138 = vmatpush1.bf16.msra.mxu0 0
      %2139 = vmatprep.subr.bf16.mxu0 0
      %2140 = vmatpush1.bf16.msra.mxu0 0
      %2141 = vmatprep.subr.bf16.mxu0 0
      %2142 = vmatpush1.bf16.msra.mxu0 0
      %2143 = vmatprep.subr.bf16.mxu0 0
      %2144 = vmatpush1.bf16.msra.mxu0 0
      %2145 = vmatprep.subr.bf16.mxu0 0
      %2146 = vmatpush1.bf16.msra.mxu0 0
      %2147 = vmatprep.subr.bf16.mxu0 0
      %2148 = vmatpush1.bf16.msra.mxu0 0
      %2149 = vmatprep.subr.bf16.mxu0 0
      %2150 = vmatpush1.bf16.msra.mxu0 0
      %2151 = vmatprep.subr.bf16.mxu0 0
      %2152 = vmatpush1.bf16.msra.mxu0 0
      %2153 = vmatprep.subr.bf16.mxu0 0
      %2154 = vmatpush1.bf16.msra.mxu0 0
      %2155 = vmatprep.subr.bf16.mxu0 0
      %2156 = vmatpush1.bf16.msra.mxu0 0
      %2157 = vmatprep.subr.bf16.mxu0 0
      %2158 = vmatpush1.bf16.msra.mxu0 0
      %2159 = vmatprep.mubr.bf16.mxu0 0
      %2160 = vmatmul.mubr.bf16.gmra.mrb[0].mxu0 %v2125
      %v2161 = vpop.f32.mrb[0].mxu0
      %v2162 = vadd.f32 0.0, %v2161
      %v2163 = vpop.f32.mrb[0].mxu0
      %v2164 = vpop.f32.mrb[0].mxu0
      %v2165 = vadd.f32 0.0, %v2164
      %v2166 = vpop.f32.mrb[0].mxu0
      %2167 = vdwg.mxu0
      %v2169 = vsel %vm2079, %v2053, 0
      %2171 = vmatprep.subr.bf16.mxu0 0
      %2172 = vmatpush1.bf16.msra.mxu0 %v2075
      %2173 = vmatprep.subr.bf16.mxu0 0
      %2174 = vmatpush1.bf16.msra.mxu0 %v2076
      %2175 = vmatprep.subr.bf16.mxu0 0
      %2176 = vmatpush1.bf16.msra.mxu0 0
      %2177 = vmatprep.subr.bf16.mxu0 0
      %2178 = vmatpush1.bf16.msra.mxu0 0
      %2179 = vmatprep.subr.bf16.mxu0 0
      %2180 = vmatpush1.bf16.msra.mxu0 0
      %2181 = vmatprep.subr.bf16.mxu0 0
      %2182 = vmatpush1.bf16.msra.mxu0 0
      %2183 = vmatprep.subr.bf16.mxu0 0
      %2184 = vmatpush1.bf16.msra.mxu0 0
      %2185 = vmatprep.subr.bf16.mxu0 0
      %2186 = vmatpush1.bf16.msra.mxu0 0
      %2187 = vmatprep.subr.bf16.mxu0 0
      %2188 = vmatpush1.bf16.msra.mxu0 0
      %2189 = vmatprep.subr.bf16.mxu0 0
      %2190 = vmatpush1.bf16.msra.mxu0 0
      %2191 = vmatprep.subr.bf16.mxu0 0
      %2192 = vmatpush1.bf16.msra.mxu0 0
      %2193 = vmatprep.subr.bf16.mxu0 0
      %2194 = vmatpush1.bf16.msra.mxu0 0
      %2195 = vmatprep.subr.bf16.mxu0 0
      %2196 = vmatpush1.bf16.msra.mxu0 0
      %2197 = vmatprep.subr.bf16.mxu0 0
      %2198 = vmatpush1.bf16.msra.mxu0 0
      %2199 = vmatprep.subr.bf16.mxu0 0
      %2200 = vmatpush1.bf16.msra.mxu0 0
      %2201 = vmatprep.subr.bf16.mxu0 0
      %2202 = vmatpush1.bf16.msra.mxu0 0
      %2203 = vmatprep.mubr.bf16.mxu0 0
      %2204 = vmatmul.mubr.bf16.gmra.mrb[0].mxu0 %v2169
      %v2205 = vpop.f32.mrb[0].mxu0
      %v2206 = vadd.f32 0.0, %v2205
      %v2207 = vpop.f32.mrb[0].mxu0
      %v2208 = vpop.f32.mrb[0].mxu0
      %v2209 = vadd.f32 0.0, %v2208
      %v2210 = vpop.f32.mrb[0].mxu0
      %2211 = vdwg.mxu0
      %v2213 = vsel %vm2079, %v2054, 0
      %2215 = vmatprep.subr.bf16.mxu0 0
      %2216 = vmatpush1.bf16.msra.mxu0 %v2075
      %2217 = vmatprep.subr.bf16.mxu0 0
      %2218 = vmatpush1.bf16.msra.mxu0 %v2076
      %2219 = vmatprep.subr.bf16.mxu0 0
      %2220 = vmatpush1.bf16.msra.mxu0 0
      %2221 = vmatprep.subr.bf16.mxu0 0
      %2222 = vmatpush1.bf16.msra.mxu0 0
      %2223 = vmatprep.subr.bf16.mxu0 0
      %2224 = vmatpush1.bf16.msra.mxu0 0
      %2225 = vmatprep.subr.bf16.mxu0 0
      %2226 = vmatpush1.bf16.msra.mxu0 0
      %2227 = vmatprep.subr.bf16.mxu0 0
      %2228 = vmatpush1.bf16.msra.mxu0 0
      %2229 = vmatprep.subr.bf16.mxu0 0
      %2230 = vmatpush1.bf16.msra.mxu0 0
      %2231 = vmatprep.subr.bf16.mxu0 0
      %2232 = vmatpush1.bf16.msra.mxu0 0
      %2233 = vmatprep.subr.bf16.mxu0 0
      %2234 = vmatpush1.bf16.msra.mxu0 0
      %2235 = vmatprep.subr.bf16.mxu0 0
      %2236 = vmatpush1.bf16.msra.mxu0 0
      %2237 = vmatprep.subr.bf16.mxu0 0
      %2238 = vmatpush1.bf16.msra.mxu0 0
      %2239 = vmatprep.subr.bf16.mxu0 0
      %2240 = vmatpush1.bf16.msra.mxu0 0
      %2241 = vmatprep.subr.bf16.mxu0 0
      %2242 = vmatpush1.bf16.msra.mxu0 0
      %2243 = vmatprep.subr.bf16.mxu0 0
      %2244 = vmatpush1.bf16.msra.mxu0 0
      %2245 = vmatprep.subr.bf16.mxu0 0
      %2246 = vmatpush1.bf16.msra.mxu0 0
      %2247 = vmatprep.mubr.bf16.mxu0 0
      %2248 = vmatmul.mubr.bf16.gmra.mrb[0].mxu0 %v2213
      %v2249 = vpop.f32.mrb[0].mxu0
      %v2250 = vadd.f32 0.0, %v2249
      %v2251 = vpop.f32.mrb[0].mxu0
      %v2252 = vpop.f32.mrb[0].mxu0
      %v2253 = vadd.f32 0.0, %v2252
      %v2254 = vpop.f32.mrb[0].mxu0
      %2255 = vdwg.mxu0
      %v2257 = vsel %vm2079, %v2055, 0
      %2259 = vmatprep.subr.bf16.mxu0 0
      %2260 = vmatpush1.bf16.msra.mxu0 %v2075
      %2261 = vmatprep.subr.bf16.mxu0 0
      %2262 = vmatpush1.bf16.msra.mxu0 %v2076
      %2263 = vmatprep.subr.bf16.mxu0 0
      %2264 = vmatpush1.bf16.msra.mxu0 0
      %2265 = vmatprep.subr.bf16.mxu0 0
      %2266 = vmatpush1.bf16.msra.mxu0 0
      %2267 = vmatprep.subr.bf16.mxu0 0
      %2268 = vmatpush1.bf16.msra.mxu0 0
      %2269 = vmatprep.subr.bf16.mxu0 0
      %2270 = vmatpush1.bf16.msra.mxu0 0
      %2271 = vmatprep.subr.bf16.mxu0 0
      %2272 = vmatpush1.bf16.msra.mxu0 0
      %2273 = vmatprep.subr.bf16.mxu0 0
      %2274 = vmatpush1.bf16.msra.mxu0 0
      %2275 = vmatprep.subr.bf16.mxu0 0
      %2276 = vmatpush1.bf16.msra.mxu0 0
      %2277 = vmatprep.subr.bf16.mxu0 0
      %2278 = vmatpush1.bf16.msra.mxu0 0
      %2279 = vmatprep.subr.bf16.mxu0 0
      %2280 = vmatpush1.bf16.msra.mxu0 0
      %2281 = vmatprep.subr.bf16.mxu0 0
      %2282 = vmatpush1.bf16.msra.mxu0 0
      %2283 = vmatprep.subr.bf16.mxu0 0
      %2284 = vmatpush1.bf16.msra.mxu0 0
      %2285 = vmatprep.subr.bf16.mxu0 0
      %2286 = vmatpush1.bf16.msra.mxu0 0
      %2287 = vmatprep.subr.bf16.mxu0 0
      %2288 = vmatpush1.bf16.msra.mxu0 0
      %2289 = vmatprep.subr.bf16.mxu0 0
      %2290 = vmatpush1.bf16.msra.mxu0 0
      %2291 = vmatprep.mubr.bf16.mxu0 0
      %2292 = vmatmul.mubr.bf16.gmra.mrb[0].mxu0 %v2257
      %v2293 = vpop.f32.mrb[0].mxu0
      %v2294 = vadd.f32 0.0, %v2293
      %v2295 = vpop.f32.mrb[0].mxu0
      %v2296 = vpop.f32.mrb[0].mxu0
      %v2297 = vadd.f32 0.0, %v2296
      %v2298 = vpop.f32.mrb[0].mxu0
      %2299 = vdwg.mxu0
      %v2301 = vsel %vm2079, %v2056, 0
      %2303 = vmatprep.subr.bf16.mxu0 0
      %2304 = vmatpush1.bf16.msra.mxu0 %v2075
      %2305 = vmatprep.subr.bf16.mxu0 0
      %2306 = vmatpush1.bf16.msra.mxu0 %v2076
      %2307 = vmatprep.subr.bf16.mxu0 0
      %2308 = vmatpush1.bf16.msra.mxu0 0
      %2309 = vmatprep.subr.bf16.mxu0 0
      %2310 = vmatpush1.bf16.msra.mxu0 0
      %2311 = vmatprep.subr.bf16.mxu0 0
      %2312 = vmatpush1.bf16.msra.mxu0 0
      %2313 = vmatprep.subr.bf16.mxu0 0
      %2314 = vmatpush1.bf16.msra.mxu0 0
      %2315 = vmatprep.subr.bf16.mxu0 0
      %2316 = vmatpush1.bf16.msra.mxu0 0
      %2317 = vmatprep.subr.bf16.mxu0 0
      %2318 = vmatpush1.bf16.msra.mxu0 0
      %2319 = vmatprep.subr.bf16.mxu0 0
      %2320 = vmatpush1.bf16.msra.mxu0 0
      %2321 = vmatprep.subr.bf16.mxu0 0
      %2322 = vmatpush1.bf16.msra.mxu0 0
      %2323 = vmatprep.subr.bf16.mxu0 0
      %2324 = vmatpush1.bf16.msra.mxu0 0
      %2325 = vmatprep.subr.bf16.mxu0 0
      %2326 = vmatpush1.bf16.msra.mxu0 0
      %2327 = vmatprep.subr.bf16.mxu0 0
      %2328 = vmatpush1.bf16.msra.mxu0 0
      %2329 = vmatprep.subr.bf16.mxu0 0
      %2330 = vmatpush1.bf16.msra.mxu0 0
      %2331 = vmatprep.subr.bf16.mxu0 0
      %2332 = vmatpush1.bf16.msra.mxu0 0
      %2333 = vmatprep.subr.bf16.mxu0 0
      %2334 = vmatpush1.bf16.msra.mxu0 0
      %2335 = vmatprep.mubr.bf16.mxu0 0
      %2336 = vmatmul.mubr.bf16.gmra.mrb[0].mxu0 %v2301
      %v2337 = vpop.f32.mrb[0].mxu0
      %v2338 = vadd.f32 0.0, %v2337
      %v2339 = vpop.f32.mrb[0].mxu0
      %v2340 = vpop.f32.mrb[0].mxu0
      %v2341 = vadd.f32 0.0, %v2340
      %v2342 = vpop.f32.mrb[0].mxu0
      %2343 = vdwg.mxu0
      %v2345 = vsel %vm2079, %v2057, 0
      %2347 = vmatprep.subr.bf16.mxu0 0
      %2348 = vmatpush1.bf16.msra.mxu0 %v2075
      %2349 = vmatprep.subr.bf16.mxu0 0
      %2350 = vmatpush1.bf16.msra.mxu0 %v2076
      %2351 = vmatprep.subr.bf16.mxu0 0
      %2352 = vmatpush1.bf16.msra.mxu0 0
      %2353 = vmatprep.subr.bf16.mxu0 0
      %2354 = vmatpush1.bf16.msra.mxu0 0
      %2355 = vmatprep.subr.bf16.mxu0 0
      %2356 = vmatpush1.bf16.msra.mxu0 0
      %2357 = vmatprep.subr.bf16.mxu0 0
      %2358 = vmatpush1.bf16.msra.mxu0 0
      %2359 = vmatprep.subr.bf16.mxu0 0
      %2360 = vmatpush1.bf16.msra.mxu0 0
      %2361 = vmatprep.subr.bf16.mxu0 0
      %2362 = vmatpush1.bf16.msra.mxu0 0
      %2363 = vmatprep.subr.bf16.mxu0 0
      %2364 = vmatpush1.bf16.msra.mxu0 0
      %2365 = vmatprep.subr.bf16.mxu0 0
      %2366 = vmatpush1.bf16.msra.mxu0 0
      %2367 = vmatprep.subr.bf16.mxu0 0
      %2368 = vmatpush1.bf16.msra.mxu0 0
      %2369 = vmatprep.subr.bf16.mxu0 0
      %2370 = vmatpush1.bf16.msra.mxu0 0
      %2371 = vmatprep.subr.bf16.mxu0 0
      %2372 = vmatpush1.bf16.msra.mxu0 0
      %2373 = vmatprep.subr.bf16.mxu0 0
      %2374 = vmatpush1.bf16.msra.mxu0 0
      %2375 = vmatprep.subr.bf16.mxu0 0
      %2376 = vmatpush1.bf16.msra.mxu0 0
      %2377 = vmatprep.subr.bf16.mxu0 0
      %2378 = vmatpush1.bf16.msra.mxu0 0
      %2379 = vmatprep.mubr.bf16.mxu0 0
      %2380 = vmatmul.mubr.bf16.gmra.mrb[0].mxu0 %v2345
      %v2381 = vpop.f32.mrb[0].mxu0
      %v2382 = vadd.f32 0.0, %v2381
      %v2383 = vpop.f32.mrb[0].mxu0
      %v2384 = vpop.f32.mrb[0].mxu0
      %v2385 = vadd.f32 0.0, %v2384
      %v2386 = vpop.f32.mrb[0].mxu0
      %2387 = vdwg.mxu0
      %v2389 = vsel %vm2079, %v2058, 0
      %2391 = vmatprep.subr.bf16.mxu0 0
      %2392 = vmatpush1.bf16.msra.mxu0 %v2075
      %2393 = vmatprep.subr.bf16.mxu0 0
      %2394 = vmatpush1.bf16.msra.mxu0 %v2076
      %2395 = vmatprep.subr.bf16.mxu0 0
      %2396 = vmatpush1.bf16.msra.mxu0 0
      %2397 = vmatprep.subr.bf16.mxu0 0
      %2398 = vmatpush1.bf16.msra.mxu0 0
      %2399 = vmatprep.subr.bf16.mxu0 0
      %2400 = vmatpush1.bf16.msra.mxu0 0
      %2401 = vmatprep.subr.bf16.mxu0 0
      %2402 = vmatpush1.bf16.msra.mxu0 0
      %2403 = vmatprep.subr.bf16.mxu0 0
      %2404 = vmatpush1.bf16.msra.mxu0 0
      %2405 = vmatprep.subr.bf16.mxu0 0
      %2406 = vmatpush1.bf16.msra.mxu0 0
      %2407 = vmatprep.subr.bf16.mxu0 0
      %2408 = vmatpush1.bf16.msra.mxu0 0
      %2409 = vmatprep.subr.bf16.mxu0 0
      %2410 = vmatpush1.bf16.msra.mxu0 0
      %2411 = vmatprep.subr.bf16.mxu0 0
      %2412 = vmatpush1.bf16.msra.mxu0 0
      %2413 = vmatprep.subr.bf16.mxu0 0
      %2414 = vmatpush1.bf16.msra.mxu0 0
      %2415 = vmatprep.subr.bf16.mxu0 0
      %2416 = vmatpush1.bf16.msra.mxu0 0
      %2417 = vmatprep.subr.bf16.mxu0 0
      %2418 = vmatpush1.bf16.msra.mxu0 0
      %2419 = vmatprep.subr.bf16.mxu0 0
      %2420 = vmatpush1.bf16.msra.mxu0 0
      %2421 = vmatprep.subr.bf16.mxu0 0
      %2422 = vmatpush1.bf16.msra.mxu0 0
      %2423 = vmatprep.mubr.bf16.mxu0 0
      %2424 = vmatmul.mubr.bf16.gmra.mrb[0].mxu0 %v2389
      %v2425 = vpop.f32.mrb[0].mxu0
      %v2426 = vadd.f32 0.0, %v2425
      %v2427 = vpop.f32.mrb[0].mxu0
      %v2428 = vpop.f32.mrb[0].mxu0
      %v2429 = vadd.f32 0.0, %v2428
      %v2430 = vpop.f32.mrb[0].mxu0
      %2431 = vdwg.mxu0
      %v2433 = vsel %vm2079, %v2059, 0
      %2435 = vmatprep.subr.bf16.mxu0 0
      %2436 = vmatpush1.bf16.msra.mxu0 %v2075
      %2437 = vmatprep.subr.bf16.mxu0 0
      %2438 = vmatpush1.bf16.msra.mxu0 %v2076
      %2439 = vmatprep.subr.bf16.mxu0 0
      %2440 = vmatpush1.bf16.msra.mxu0 0
      %2441 = vmatprep.subr.bf16.mxu0 0
      %2442 = vmatpush1.bf16.msra.mxu0 0
      %2443 = vmatprep.subr.bf16.mxu0 0
      %2444 = vmatpush1.bf16.msra.mxu0 0
      %2445 = vmatprep.subr.bf16.mxu0 0
      %2446 = vmatpush1.bf16.msra.mxu0 0
      %2447 = vmatprep.subr.bf16.mxu0 0
      %2448 = vmatpush1.bf16.msra.mxu0 0
      %2449 = vmatprep.subr.bf16.mxu0 0
      %2450 = vmatpush1.bf16.msra.mxu0 0
      %2451 = vmatprep.subr.bf16.mxu0 0
      %2452 = vmatpush1.bf16.msra.mxu0 0
      %2453 = vmatprep.subr.bf16.mxu0 0
      %2454 = vmatpush1.bf16.msra.mxu0 0
      %2455 = vmatprep.subr.bf16.mxu0 0
      %2456 = vmatpush1.bf16.msra.mxu0 0
      %2457 = vmatprep.subr.bf16.mxu0 0
      %2458 = vmatpush1.bf16.msra.mxu0 0
      %2459 = vmatprep.subr.bf16.mxu0 0
      %2460 = vmatpush1.bf16.msra.mxu0 0
      %2461 = vmatprep.subr.bf16.mxu0 0
      %2462 = vmatpush1.bf16.msra.mxu0 0
      %2463 = vmatprep.subr.bf16.mxu0 0
      %2464 = vmatpush1.bf16.msra.mxu0 0
      %2465 = vmatprep.subr.bf16.mxu0 0
      %2466 = vmatpush1.bf16.msra.mxu0 0
      %2467 = vmatprep.mubr.bf16.mxu0 0
      %2468 = vmatmul.mubr.bf16.gmra.mrb[0].mxu0 %v2433
      %v2469 = vpop.f32.mrb[0].mxu0
      %v2470 = vadd.f32 0.0, %v2469
      %v2471 = vpop.f32.mrb[0].mxu0
      %v2472 = vpop.f32.mrb[0].mxu0
      %v2473 = vadd.f32 0.0, %v2472
      %v2474 = vpop.f32.mrb[0].mxu0
      %2475 = vdwg.mxu0
      %v2477 = vsel %vm2079, %v2060, 0
      %2479 = vmatprep.subr.bf16.mxu0 0
      %2480 = vmatpush1.bf16.msra.mxu0 %v2075
      %2481 = vmatprep.subr.bf16.mxu0 0
      %2482 = vmatpush1.bf16.msra.mxu0 %v2076
      %2483 = vmatprep.subr.bf16.mxu0 0
      %2484 = vmatpush1.bf16.msra.mxu0 0
      %2485 = vmatprep.subr.bf16.mxu0 0
      %2486 = vmatpush1.bf16.msra.mxu0 0
      %2487 = vmatprep.subr.bf16.mxu0 0
      %2488 = vmatpush1.bf16.msra.mxu0 0
      %2489 = vmatprep.subr.bf16.mxu0 0
      %2490 = vmatpush1.bf16.msra.mxu0 0
      %2491 = vmatprep.subr.bf16.mxu0 0
      %2492 = vmatpush1.bf16.msra.mxu0 0
      %2493 = vmatprep.subr.bf16.mxu0 0
      %2494 = vmatpush1.bf16.msra.mxu0 0
      %2495 = vmatprep.subr.bf16.mxu0 0
      %2496 = vmatpush1.bf16.msra.mxu0 0
      %2497 = vmatprep.subr.bf16.mxu0 0
      %2498 = vmatpush1.bf16.msra.mxu0 0
      %2499 = vmatprep.subr.bf16.mxu0 0
      %2500 = vmatpush1.bf16.msra.mxu0 0
      %2501 = vmatprep.subr.bf16.mxu0 0
      %2502 = vmatpush1.bf16.msra.mxu0 0
      %2503 = vmatprep.subr.bf16.mxu0 0
      %2504 = vmatpush1.bf16.msra.mxu0 0
      %2505 = vmatprep.subr.bf16.mxu0 0
      %2506 = vmatpush1.bf16.msra.mxu0 0
      %2507 = vmatprep.subr.bf16.mxu0 0
      %2508 = vmatpush1.bf16.msra.mxu0 0
      %2509 = vmatprep.subr.bf16.mxu0 0
      %2510 = vmatpush1.bf16.msra.mxu0 0
      %2511 = vmatprep.mubr.bf16.mxu0 0
      %2512 = vmatmul.mubr.bf16.gmra.mrb[0].mxu0 %v2477
      %v2513 = vpop.f32.mrb[0].mxu0
      %v2514 = vadd.f32 0.0, %v2513
      %v2515 = vpop.f32.mrb[0].mxu0
      %v2516 = vpop.f32.mrb[0].mxu0
      %v2517 = vadd.f32 0.0, %v2516
      %v2518 = vpop.f32.mrb[0].mxu0
      %2519 = vdwg.mxu0
      %v2521 = vsel %vm2079, %v2061, 0
      %2523 = vmatprep.subr.bf16.mxu0 0
      %2524 = vmatpush1.bf16.msra.mxu0 %v2075
      %2525 = vmatprep.subr.bf16.mxu0 0
      %2526 = vmatpush1.bf16.msra.mxu0 %v2076
      %2527 = vmatprep.subr.bf16.mxu0 0
      %2528 = vmatpush1.bf16.msra.mxu0 0
      %2529 = vmatprep.subr.bf16.mxu0 0
      %2530 = vmatpush1.bf16.msra.mxu0 0
      %2531 = vmatprep.subr.bf16.mxu0 0
      %2532 = vmatpush1.bf16.msra.mxu0 0
      %2533 = vmatprep.subr.bf16.mxu0 0
      %2534 = vmatpush1.bf16.msra.mxu0 0
      %2535 = vmatprep.subr.bf16.mxu0 0
      %2536 = vmatpush1.bf16.msra.mxu0 0
      %2537 = vmatprep.subr.bf16.mxu0 0
      %2538 = vmatpush1.bf16.msra.mxu0 0
      %2539 = vmatprep.subr.bf16.mxu0 0
      %2540 = vmatpush1.bf16.msra.mxu0 0
      %2541 = vmatprep.subr.bf16.mxu0 0
      %2542 = vmatpush1.bf16.msra.mxu0 0
      %2543 = vmatprep.subr.bf16.mxu0 0
      %2544 = vmatpush1.bf16.msra.mxu0 0
      %2545 = vmatprep.subr.bf16.mxu0 0
      %2546 = vmatpush1.bf16.msra.mxu0 0
      %2547 = vmatprep.subr.bf16.mxu0 0
      %2548 = vmatpush1.bf16.msra.mxu0 0
      %2549 = vmatprep.subr.bf16.mxu0 0
      %2550 = vmatpush1.bf16.msra.mxu0 0
      %2551 = vmatprep.subr.bf16.mxu0 0
      %2552 = vmatpush1.bf16.msra.mxu0 0
      %2553 = vmatprep.subr.bf16.mxu0 0
      %2554 = vmatpush1.bf16.msra.mxu0 0
      %2555 = vmatprep.mubr.bf16.mxu0 0
      %2556 = vmatmul.mubr.bf16.gmra.mrb[0].mxu0 %v2521
      %v2557 = vpop.f32.mrb[0].mxu0
      %v2558 = vadd.f32 0.0, %v2557
      %v2559 = vpop.f32.mrb[0].mxu0
      %v2560 = vpop.f32.mrb[0].mxu0
      %v2561 = vadd.f32 0.0, %v2560
      %v2562 = vpop.f32.mrb[0].mxu0
      %2563 = vdwg.mxu0
      %v2565 = vsel %vm2079, %v2062, 0
      %2567 = vmatprep.subr.bf16.mxu0 0
      %2568 = vmatpush1.bf16.msra.mxu0 %v2075
      %2569 = vmatprep.subr.bf16.mxu0 0
      %2570 = vmatpush1.bf16.msra.mxu0 %v2076
      %2571 = vmatprep.subr.bf16.mxu0 0
      %2572 = vmatpush1.bf16.msra.mxu0 0
      %2573 = vmatprep.subr.bf16.mxu0 0
      %2574 = vmatpush1.bf16.msra.mxu0 0
      %2575 = vmatprep.subr.bf16.mxu0 0
      %2576 = vmatpush1.bf16.msra.mxu0 0
      %2577 = vmatprep.subr.bf16.mxu0 0
      %2578 = vmatpush1.bf16.msra.mxu0 0
      %2579 = vmatprep.subr.bf16.mxu0 0
      %2580 = vmatpush1.bf16.msra.mxu0 0
      %2581 = vmatprep.subr.bf16.mxu0 0
      %2582 = vmatpush1.bf16.msra.mxu0 0
      %2583 = vmatprep.subr.bf16.mxu0 0
      %2584 = vmatpush1.bf16.msra.mxu0 0
      %2585 = vmatprep.subr.bf16.mxu0 0
      %2586 = vmatpush1.bf16.msra.mxu0 0
      %2587 = vmatprep.subr.bf16.mxu0 0
      %2588 = vmatpush1.bf16.msra.mxu0 0
      %2589 = vmatprep.subr.bf16.mxu0 0
      %2590 = vmatpush1.bf16.msra.mxu0 0
      %2591 = vmatprep.subr.bf16.mxu0 0
      %2592 = vmatpush1.bf16.msra.mxu0 0
      %2593 = vmatprep.subr.bf16.mxu0 0
      %2594 = vmatpush1.bf16.msra.mxu0 0
      %2595 = vmatprep.subr.bf16.mxu0 0
      %2596 = vmatpush1.bf16.msra.mxu0 0
      %2597 = vmatprep.subr.bf16.mxu0 0
      %2598 = vmatpush1.bf16.msra.mxu0 0
      %2599 = vmatprep.mubr.bf16.mxu0 0
      %2600 = vmatmul.mubr.bf16.gmra.mrb[0].mxu0 %v2565
      %v2601 = vpop.f32.mrb[0].mxu0
      %v2602 = vadd.f32 0.0, %v2601
      %v2603 = vpop.f32.mrb[0].mxu0
      %v2604 = vpop.f32.mrb[0].mxu0
      %v2605 = vadd.f32 0.0, %v2604
      %v2606 = vpop.f32.mrb[0].mxu0
      %2607 = vdwg.mxu0
      %v2609 = vsel %vm2079, %v2063, 0
      %2611 = vmatprep.subr.bf16.mxu0 0
      %2612 = vmatpush1.bf16.msra.mxu0 %v2075
      %2613 = vmatprep.subr.bf16.mxu0 0
      %2614 = vmatpush1.bf16.msra.mxu0 %v2076
      %2615 = vmatprep.subr.bf16.mxu0 0
      %2616 = vmatpush1.bf16.msra.mxu0 0
      %2617 = vmatprep.subr.bf16.mxu0 0
      %2618 = vmatpush1.bf16.msra.mxu0 0
      %2619 = vmatprep.subr.bf16.mxu0 0
      %2620 = vmatpush1.bf16.msra.mxu0 0
      %2621 = vmatprep.subr.bf16.mxu0 0
      %2622 = vmatpush1.bf16.msra.mxu0 0
      %2623 = vmatprep.subr.bf16.mxu0 0
      %2624 = vmatpush1.bf16.msra.mxu0 0
      %2625 = vmatprep.subr.bf16.mxu0 0
      %2626 = vmatpush1.bf16.msra.mxu0 0
      %2627 = vmatprep.subr.bf16.mxu0 0
      %2628 = vmatpush1.bf16.msra.mxu0 0
      %2629 = vmatprep.subr.bf16.mxu0 0
      %2630 = vmatpush1.bf16.msra.mxu0 0
      %2631 = vmatprep.subr.bf16.mxu0 0
      %2632 = vmatpush1.bf16.msra.mxu0 0
      %2633 = vmatprep.subr.bf16.mxu0 0
      %2634 = vmatpush1.bf16.msra.mxu0 0
      %2635 = vmatprep.subr.bf16.mxu0 0
      %2636 = vmatpush1.bf16.msra.mxu0 0
      %2637 = vmatprep.subr.bf16.mxu0 0
      %2638 = vmatpush1.bf16.msra.mxu0 0
      %2639 = vmatprep.subr.bf16.mxu0 0
      %2640 = vmatpush1.bf16.msra.mxu0 0
      %2641 = vmatprep.subr.bf16.mxu0 0
      %2642 = vmatpush1.bf16.msra.mxu0 0
      %2643 = vmatprep.mubr.bf16.mxu0 0
      %2644 = vmatmul.mubr.bf16.gmra.mrb[0].mxu0 %v2609
      %v2645 = vpop.f32.mrb[0].mxu0
      %v2646 = vadd.f32 0.0, %v2645
      %v2647 = vpop.f32.mrb[0].mxu0
      %v2648 = vpop.f32.mrb[0].mxu0
      %v2649 = vadd.f32 0.0, %v2648
      %v2650 = vpop.f32.mrb[0].mxu0
      %2651 = vdwg.mxu0
      %v2653 = vsel %vm2079, %v2064, 0
      %2655 = vmatprep.subr.bf16.mxu0 0
      %2656 = vmatpush1.bf16.msra.mxu0 %v2075
      %2657 = vmatprep.subr.bf16.mxu0 0
      %2658 = vmatpush1.bf16.msra.mxu0 %v2076
      %2659 = vmatprep.subr.bf16.mxu0 0
      %2660 = vmatpush1.bf16.msra.mxu0 0
      %2661 = vmatprep.subr.bf16.mxu0 0
      %2662 = vmatpush1.bf16.msra.mxu0 0
      %2663 = vmatprep.subr.bf16.mxu0 0
      %2664 = vmatpush1.bf16.msra.mxu0 0
      %2665 = vmatprep.subr.bf16.mxu0 0
      %2666 = vmatpush1.bf16.msra.mxu0 0
      %2667 = vmatprep.subr.bf16.mxu0 0
      %2668 = vmatpush1.bf16.msra.mxu0 0
      %2669 = vmatprep.subr.bf16.mxu0 0
      %2670 = vmatpush1.bf16.msra.mxu0 0
      %2671 = vmatprep.subr.bf16.mxu0 0
      %2672 = vmatpush1.bf16.msra.mxu0 0
      %2673 = vmatprep.subr.bf16.mxu0 0
      %2674 = vmatpush1.bf16.msra.mxu0 0
      %2675 = vmatprep.subr.bf16.mxu0 0
      %2676 = vmatpush1.bf16.msra.mxu0 0
      %2677 = vmatprep.subr.bf16.mxu0 0
      %2678 = vmatpush1.bf16.msra.mxu0 0
      %2679 = vmatprep.subr.bf16.mxu0 0
      %2680 = vmatpush1.bf16.msra.mxu0 0
      %2681 = vmatprep.subr.bf16.mxu0 0
      %2682 = vmatpush1.bf16.msra.mxu0 0
      %2683 = vmatprep.subr.bf16.mxu0 0
      %2684 = vmatpush1.bf16.msra.mxu0 0
      %2685 = vmatprep.subr.bf16.mxu0 0
      %2686 = vmatpush1.bf16.msra.mxu0 0
      %2687 = vmatprep.mubr.bf16.mxu0 0
      %2688 = vmatmul.mubr.bf16.gmra.mrb[0].mxu0 %v2653
      %v2689 = vpop.f32.mrb[0].mxu0
      %v2690 = vadd.f32 0.0, %v2689
      %v2691 = vpop.f32.mrb[0].mxu0
      %v2692 = vpop.f32.mrb[0].mxu0
      %v2693 = vadd.f32 0.0, %v2692
      %v2694 = vpop.f32.mrb[0].mxu0
      %2695 = vdwg.mxu0
      %v2697 = vsel %vm2079, %v2065, 0
      %2699 = vmatprep.subr.bf16.mxu0 0
      %2700 = vmatpush1.bf16.msra.mxu0 %v2075
      %2701 = vmatprep.subr.bf16.mxu0 0
      %2702 = vmatpush1.bf16.msra.mxu0 %v2076
      %2703 = vmatprep.subr.bf16.mxu0 0
      %2704 = vmatpush1.bf16.msra.mxu0 0
      %2705 = vmatprep.subr.bf16.mxu0 0
      %2706 = vmatpush1.bf16.msra.mxu0 0
      %2707 = vmatprep.subr.bf16.mxu0 0
      %2708 = vmatpush1.bf16.msra.mxu0 0
      %2709 = vmatprep.subr.bf16.mxu0 0
      %2710 = vmatpush1.bf16.msra.mxu0 0
      %2711 = vmatprep.subr.bf16.mxu0 0
      %2712 = vmatpush1.bf16.msra.mxu0 0
      %2713 = vmatprep.subr.bf16.mxu0 0
      %2714 = vmatpush1.bf16.msra.mxu0 0
      %2715 = vmatprep.subr.bf16.mxu0 0
      %2716 = vmatpush1.bf16.msra.mxu0 0
      %2717 = vmatprep.subr.bf16.mxu0 0
      %2718 = vmatpush1.bf16.msra.mxu0 0
      %2719 = vmatprep.subr.bf16.mxu0 0
      %2720 = vmatpush1.bf16.msra.mxu0 0
      %2721 = vmatprep.subr.bf16.mxu0 0
      %2722 = vmatpush1.bf16.msra.mxu0 0
      %2723 = vmatprep.subr.bf16.mxu0 0
      %2724 = vmatpush1.bf16.msra.mxu0 0
      %2725 = vmatprep.subr.bf16.mxu0 0
      %2726 = vmatpush1.bf16.msra.mxu0 0
      %2727 = vmatprep.subr.bf16.mxu0 0
      %2728 = vmatpush1.bf16.msra.mxu0 0
      %2729 = vmatprep.subr.bf16.mxu0 0
      %2730 = vmatpush1.bf16.msra.mxu0 0
      %2731 = vmatprep.mubr.bf16.mxu0 0
      %2732 = vmatmul.mubr.bf16.gmra.mrb[0].mxu0 %v2697
      %v2733 = vpop.f32.mrb[0].mxu0
      %v2734 = vadd.f32 0.0, %v2733
      %v2735 = vpop.f32.mrb[0].mxu0
      %v2736 = vpop.f32.mrb[0].mxu0
      %v2737 = vadd.f32 0.0, %v2736
      %v2738 = vpop.f32.mrb[0].mxu0
      %2739 = vdwg.mxu0
      %v2741 = vsel %vm2079, %v2066, 0
      %2743 = vmatprep.subr.bf16.mxu0 0
      %2744 = vmatpush1.bf16.msra.mxu0 %v2075
      %2745 = vmatprep.subr.bf16.mxu0 0
      %2746 = vmatpush1.bf16.msra.mxu0 %v2076
      %2747 = vmatprep.subr.bf16.mxu0 0
      %2748 = vmatpush1.bf16.msra.mxu0 0
      %2749 = vmatprep.subr.bf16.mxu0 0
      %2750 = vmatpush1.bf16.msra.mxu0 0
      %2751 = vmatprep.subr.bf16.mxu0 0
      %2752 = vmatpush1.bf16.msra.mxu0 0
      %2753 = vmatprep.subr.bf16.mxu0 0
      %2754 = vmatpush1.bf16.msra.mxu0 0
      %2755 = vmatprep.subr.bf16.mxu0 0
      %2756 = vmatpush1.bf16.msra.mxu0 0
      %2757 = vmatprep.subr.bf16.mxu0 0
      %2758 = vmatpush1.bf16.msra.mxu0 0
      %2759 = vmatprep.subr.bf16.mxu0 0
      %2760 = vmatpush1.bf16.msra.mxu0 0
      %2761 = vmatprep.subr.bf16.mxu0 0
      %2762 = vmatpush1.bf16.msra.mxu0 0
      %2763 = vmatprep.subr.bf16.mxu0 0
      %2764 = vmatpush1.bf16.msra.mxu0 0
      %2765 = vmatprep.subr.bf16.mxu0 0
      %2766 = vmatpush1.bf16.msra.mxu0 0
      %2767 = vmatprep.subr.bf16.mxu0 0
      %2768 = vmatpush1.bf16.msra.mxu0 0
      %2769 = vmatprep.subr.bf16.mxu0 0
      %2770 = vmatpush1.bf16.msra.mxu0 0
      %2771 = vmatprep.subr.bf16.mxu0 0
      %2772 = vmatpush1.bf16.msra.mxu0 0
      %2773 = vmatprep.subr.bf16.mxu0 0
      %2774 = vmatpush1.bf16.msra.mxu0 0
      %2775 = vmatprep.mubr.bf16.mxu0 0
      %2776 = vmatmul.mubr.bf16.gmra.mrb[0].mxu0 %v2741
      %v2777 = vpop.f32.mrb[0].mxu0
      %v2778 = vadd.f32 0.0, %v2777
      %v2779 = vpop.f32.mrb[0].mxu0
      %v2780 = vpop.f32.mrb[0].mxu0
      %v2781 = vadd.f32 0.0, %v2780
      %v2782 = vpop.f32.mrb[0].mxu0
      %2783 = vdwg.mxu0
      %v2784 = vadd.f32 %v1320, %v2118
      %v2785 = vadd.f32 %v1321, %v2121
      %v2786 = vadd.f32 %v1322, %v2162
      %v2787 = vadd.f32 %v1323, %v2165
      %v2788 = vadd.f32 %v1324, %v2206
      %v2789 = vadd.f32 %v1325, %v2209
      %v2790 = vadd.f32 %v1326, %v2250
      %v2791 = vadd.f32 %v1327, %v2253
      %v2792 = vadd.f32 %v1328, %v2294
      %v2793 = vadd.f32 %v1329, %v2297
      %v2794 = vadd.f32 %v1330, %v2338
      %v2795 = vadd.f32 %v1331, %v2341
      %v2796 = vadd.f32 %v1332, %v2382
      %v2797 = vadd.f32 %v1333, %v2385
      %v2798 = vadd.f32 %v1334, %v2426
      %v2799 = vadd.f32 %v1335, %v2429
      %v2800 = vadd.f32 %v1336, %v2470
      %v2801 = vadd.f32 %v1337, %v2473
      %v2802 = vadd.f32 %v1338, %v2514
      %v2803 = vadd.f32 %v1339, %v2517
      %v2804 = vadd.f32 %v1340, %v2558
      %v2805 = vadd.f32 %v1341, %v2561
      %v2806 = vadd.f32 %v1342, %v2602
      %v2807 = vadd.f32 %v1343, %v2605
      %v2808 = vadd.f32 %v1344, %v2646
      %v2809 = vadd.f32 %v1345, %v2649
      %v2810 = vadd.f32 %v1346, %v2690
      %v2811 = vadd.f32 %v1347, %v2693
      %v2812 = vadd.f32 %v1348, %v2734
      %v2813 = vadd.f32 %v1349, %v2737
      %v2814 = vadd.f32 %v1350, %v2778
      %v2815 = vadd.f32 %v1351, %v2781
      %vm2816 = vcmask 130048
      %v2817 = vsel %vm2816, %v2784, -inf
      %2818 = vmax.xlane.f32.xlu0 %v2817
      %v2819 = vpop.xlane.xlu0 %2818
      %v2820 = vsel %vm2816, %v2785, -inf
      %2821 = vmax.xlane.f32.xlu0 %v2820
      %v2822 = vpop.xlane.xlu0 %2821
      %v2823 = vsel %vm2816, %v2786, -inf
      %2824 = vmax.xlane.f32.xlu0 %v2823
      %v2825 = vpop.xlane.xlu0 %2824
      %v2826 = vsel %vm2816, %v2787, -inf
      %2827 = vmax.xlane.f32.xlu0 %v2826
      %v2828 = vpop.xlane.xlu0 %2827
      %v2829 = vsel %vm2816, %v2788, -inf
      %2830 = vmax.xlane.f32.xlu0 %v2829
      %v2831 = vpop.xlane.xlu0 %2830
      %v2832 = vsel %vm2816, %v2789, -inf
      %2833 = vmax.xlane.f32.xlu0 %v2832
      %v2834 = vpop.xlane.xlu0 %2833
      %v2835 = vsel %vm2816, %v2790, -inf
      %2836 = vmax.xlane.f32.xlu0 %v2835
      %v2837 = vpop.xlane.xlu0 %2836
      %v2838 = vsel %vm2816, %v2791, -inf
      %2839 = vmax.xlane.f32.xlu0 %v2838
      %v2840 = vpop.xlane.xlu0 %2839
      %v2841 = vsel %vm2816, %v2792, -inf
      %2842 = vmax.xlane.f32.xlu0 %v2841
      %v2843 = vpop.xlane.xlu0 %2842
      %v2844 = vsel %vm2816, %v2793, -inf
      %2845 = vmax.xlane.f32.xlu0 %v2844
      %v2846 = vpop.xlane.xlu0 %2845
      %v2847 = vsel %vm2816, %v2794, -inf
      %2848 = vmax.xlane.f32.xlu0 %v2847
      %v2849 = vpop.xlane.xlu0 %2848
      %v2850 = vsel %vm2816, %v2795, -inf
      %2851 = vmax.xlane.f32.xlu0 %v2850
      %v2852 = vpop.xlane.xlu0 %2851
      %v2853 = vsel %vm2816, %v2796, -inf
      %2854 = vmax.xlane.f32.xlu0 %v2853
      %v2855 = vpop.xlane.xlu0 %2854
      %v2856 = vsel %vm2816, %v2797, -inf
      %2857 = vmax.xlane.f32.xlu0 %v2856
      %v2858 = vpop.xlane.xlu0 %2857
      %v2859 = vsel %vm2816, %v2798, -inf
      %2860 = vmax.xlane.f32.xlu0 %v2859
      %v2861 = vpop.xlane.xlu0 %2860
      %v2862 = vsel %vm2816, %v2799, -inf
      %2863 = vmax.xlane.f32.xlu0 %v2862
      %v2864 = vpop.xlane.xlu0 %2863
      %v2865 = vsel %vm2816, %v2800, -inf
      %2866 = vmax.xlane.f32.xlu0 %v2865
      %v2867 = vpop.xlane.xlu0 %2866
      %v2868 = vsel %vm2816, %v2801, -inf
      %2869 = vmax.xlane.f32.xlu0 %v2868
      %v2870 = vpop.xlane.xlu0 %2869
      %v2871 = vsel %vm2816, %v2802, -inf
      %2872 = vmax.xlane.f32.xlu0 %v2871
      %v2873 = vpop.xlane.xlu0 %2872
      %v2874 = vsel %vm2816, %v2803, -inf
      %2875 = vmax.xlane.f32.xlu0 %v2874
      %v2876 = vpop.xlane.xlu0 %2875
      %v2877 = vsel %vm2816, %v2804, -inf
      %2878 = vmax.xlane.f32.xlu0 %v2877
      %v2879 = vpop.xlane.xlu0 %2878
      %v2880 = vsel %vm2816, %v2805, -inf
      %2881 = vmax.xlane.f32.xlu0 %v2880
      %v2882 = vpop.xlane.xlu0 %2881
      %v2883 = vsel %vm2816, %v2806, -inf
      %2884 = vmax.xlane.f32.xlu0 %v2883
      %v2885 = vpop.xlane.xlu0 %2884
      %v2886 = vsel %vm2816, %v2807, -inf
      %2887 = vmax.xlane.f32.xlu0 %v2886
      %v2888 = vpop.xlane.xlu0 %2887
      %v2889 = vsel %vm2816, %v2808, -inf
      %2890 = vmax.xlane.f32.xlu0 %v2889
      %v2891 = vpop.xlane.xlu0 %2890
      %v2892 = vsel %vm2816, %v2809, -inf
      %2893 = vmax.xlane.f32.xlu0 %v2892
      %v2894 = vpop.xlane.xlu0 %2893
      %v2895 = vsel %vm2816, %v2810, -inf
      %2896 = vmax.xlane.f32.xlu0 %v2895
      %v2897 = vpop.xlane.xlu0 %2896
      %v2898 = vsel %vm2816, %v2811, -inf
      %2899 = vmax.xlane.f32.xlu0 %v2898
      %v2900 = vpop.xlane.xlu0 %2899
      %v2901 = vsel %vm2816, %v2812, -inf
      %2902 = vmax.xlane.f32.xlu0 %v2901
      %v2903 = vpop.xlane.xlu0 %2902
      %v2904 = vsel %vm2816, %v2813, -inf
      %2905 = vmax.xlane.f32.xlu0 %v2904
      %v2906 = vpop.xlane.xlu0 %2905
      %v2907 = vsel %vm2816, %v2814, -inf
      %2908 = vmax.xlane.f32.xlu0 %v2907
      %v2909 = vpop.xlane.xlu0 %2908
      %v2910 = vsel %vm2816, %v2815, -inf
      %2911 = vmax.xlane.f32.xlu0 %v2910
      %v2912 = vpop.xlane.xlu0 %2911
      %v2913 = vsub.f32 %v2784, %v2819
      %v2914 = vsub.f32 %v2785, %v2822
      %v2915 = vsub.f32 %v2786, %v2825
      %v2916 = vsub.f32 %v2787, %v2828
      %v2917 = vsub.f32 %v2788, %v2831
      %v2918 = vsub.f32 %v2789, %v2834
      %v2919 = vsub.f32 %v2790, %v2837
      %v2920 = vsub.f32 %v2791, %v2840
      %v2921 = vsub.f32 %v2792, %v2843
      %v2922 = vsub.f32 %v2793, %v2846
      %v2923 = vsub.f32 %v2794, %v2849
      %v2924 = vsub.f32 %v2795, %v2852
      %v2925 = vsub.f32 %v2796, %v2855
      %v2926 = vsub.f32 %v2797, %v2858
      %v2927 = vsub.f32 %v2798, %v2861
      %v2928 = vsub.f32 %v2799, %v2864
      %v2929 = vsub.f32 %v2800, %v2867
      %v2930 = vsub.f32 %v2801, %v2870
      %v2931 = vsub.f32 %v2802, %v2873
      %v2932 = vsub.f32 %v2803, %v2876
      %v2933 = vsub.f32 %v2804, %v2879
      %v2934 = vsub.f32 %v2805, %v2882
      %v2935 = vsub.f32 %v2806, %v2885
      %v2936 = vsub.f32 %v2807, %v2888
      %v2937 = vsub.f32 %v2808, %v2891
      %v2938 = vsub.f32 %v2809, %v2894
      %v2939 = vsub.f32 %v2810, %v2897
      %v2940 = vsub.f32 %v2811, %v2900
      %v2941 = vsub.f32 %v2812, %v2903
      %v2942 = vsub.f32 %v2813, %v2906
      %v2943 = vsub.f32 %v2814, %v2909
      %v2944 = vsub.f32 %v2815, %v2912
      %v2945 = vmul.f32 %v2913, 1.442695
      %v2946 = vpow.pop %v2945
      %v2947 = vmul.f32 %v2914, 1.442695
      %v2948 = vpow.pop %v2947
      %v2949 = vmul.f32 %v2915, 1.442695
      %v2950 = vpow.pop %v2949
      %v2951 = vmul.f32 %v2916, 1.442695
      %v2952 = vpow.pop %v2951
      %v2953 = vmul.f32 %v2917, 1.442695
      %v2954 = vpow.pop %v2953
      %v2955 = vmul.f32 %v2918, 1.442695
      %v2956 = vpow.pop %v2955
      %v2957 = vmul.f32 %v2919, 1.442695
      %v2958 = vpow.pop %v2957
      %v2959 = vmul.f32 %v2920, 1.442695
      %v2960 = vpow.pop %v2959
      %v2961 = vmul.f32 %v2921, 1.442695
      %v2962 = vpow.pop %v2961
      %v2963 = vmul.f32 %v2922, 1.442695
      %v2964 = vpow.pop %v2963
      %v2965 = vmul.f32 %v2923, 1.442695
      %v2966 = vpow.pop %v2965
      %v2967 = vmul.f32 %v2924, 1.442695
      %v2968 = vpow.pop %v2967
      %v2969 = vmul.f32 %v2925, 1.442695
      %v2970 = vpow.pop %v2969
      %v2971 = vmul.f32 %v2926, 1.442695
      %v2972 = vpow.pop %v2971
      %v2973 = vmul.f32 %v2927, 1.442695
      %v2974 = vpow.pop %v2973
      %v2975 = vmul.f32 %v2928, 1.442695
      %v2976 = vpow.pop %v2975
      %v2977 = vmul.f32 %v2929, 1.442695
      %v2978 = vpow.pop %v2977
      %v2979 = vmul.f32 %v2930, 1.442695
      %v2980 = vpow.pop %v2979
      %v2981 = vmul.f32 %v2931, 1.442695
      %v2982 = vpow.pop %v2981
      %v2983 = vmul.f32 %v2932, 1.442695
      %v2984 = vpow.pop %v2983
      %v2985 = vmul.f32 %v2933, 1.442695
      %v2986 = vpow.pop %v2985
      %v2987 = vmul.f32 %v2934, 1.442695
      %v2988 = vpow.pop %v2987
      %v2989 = vmul.f32 %v2935, 1.442695
      %v2990 = vpow.pop %v2989
      %v2991 = vmul.f32 %v2936, 1.442695
      %v2992 = vpow.pop %v2991
      %v2993 = vmul.f32 %v2937, 1.442695
      %v2994 = vpow.pop %v2993
      %v2995 = vmul.f32 %v2938, 1.442695
      %v2996 = vpow.pop %v2995
      %v2997 = vmul.f32 %v2939, 1.442695
      %v2998 = vpow.pop %v2997
      %v2999 = vmul.f32 %v2940, 1.442695
      %v3000 = vpow.pop %v2999
      %v3001 = vmul.f32 %v2941, 1.442695
      %v3002 = vpow.pop %v3001
      %v3003 = vmul.f32 %v2942, 1.442695
      %v3004 = vpow.pop %v3003
      %v3005 = vmul.f32 %v2943, 1.442695
      %v3006 = vpow.pop %v3005
      %v3007 = vmul.f32 %v2944, 1.442695
      %v3008 = vpow.pop %v3007
      %v3009 = vsel %vm2816, %v2946, 0.0
      %3010 = vadd.xlane.f32.xlu0 %v3009
      %v3011 = vpop.xlane.xlu0 %3010
      %v3012 = vsel %vm2816, %v2948, 0.0
      %3013 = vadd.xlane.f32.xlu0 %v3012
      %v3014 = vpop.xlane.xlu0 %3013
      %v3015 = vsel %vm2816, %v2950, 0.0
      %3016 = vadd.xlane.f32.xlu0 %v3015
      %v3017 = vpop.xlane.xlu0 %3016
      %v3018 = vsel %vm2816, %v2952, 0.0
      %3019 = vadd.xlane.f32.xlu0 %v3018
      %v3020 = vpop.xlane.xlu0 %3019
      %v3021 = vsel %vm2816, %v2954, 0.0
      %3022 = vadd.xlane.f32.xlu0 %v3021
      %v3023 = vpop.xlane.xlu0 %3022
      %v3024 = vsel %vm2816, %v2956, 0.0
      %3025 = vadd.xlane.f32.xlu0 %v3024
      %v3026 = vpop.xlane.xlu0 %3025
      %v3027 = vsel %vm2816, %v2958, 0.0
      %3028 = vadd.xlane.f32.xlu0 %v3027
      %v3029 = vpop.xlane.xlu0 %3028
      %v3030 = vsel %vm2816, %v2960, 0.0
      %3031 = vadd.xlane.f32.xlu0 %v3030
      %v3032 = vpop.xlane.xlu0 %3031
      %v3033 = vsel %vm2816, %v2962, 0.0
      %3034 = vadd.xlane.f32.xlu0 %v3033
      %v3035 = vpop.xlane.xlu0 %3034
      %v3036 = vsel %vm2816, %v2964, 0.0
      %3037 = vadd.xlane.f32.xlu0 %v3036
      %v3038 = vpop.xlane.xlu0 %3037
      %v3039 = vsel %vm2816, %v2966, 0.0
      %3040 = vadd.xlane.f32.xlu0 %v3039
      %v3041 = vpop.xlane.xlu0 %3040
      %v3042 = vsel %vm2816, %v2968, 0.0
      %3043 = vadd.xlane.f32.xlu0 %v3042
      %v3044 = vpop.xlane.xlu0 %3043
      %v3045 = vsel %vm2816, %v2970, 0.0
      %3046 = vadd.xlane.f32.xlu0 %v3045
      %v3047 = vpop.xlane.xlu0 %3046
      %v3048 = vsel %vm2816, %v2972, 0.0
      %3049 = vadd.xlane.f32.xlu0 %v3048
      %v3050 = vpop.xlane.xlu0 %3049
      %v3051 = vsel %vm2816, %v2974, 0.0
      %3052 = vadd.xlane.f32.xlu0 %v3051
      %v3053 = vpop.xlane.xlu0 %3052
      %v3054 = vsel %vm2816, %v2976, 0.0
      %3055 = vadd.xlane.f32.xlu0 %v3054
      %v3056 = vpop.xlane.xlu0 %3055
      %v3057 = vsel %vm2816, %v2978, 0.0
      %3058 = vadd.xlane.f32.xlu0 %v3057
      %v3059 = vpop.xlane.xlu0 %3058
      %v3060 = vsel %vm2816, %v2980, 0.0
      %3061 = vadd.xlane.f32.xlu0 %v3060
      %v3062 = vpop.xlane.xlu0 %3061
      %v3063 = vsel %vm2816, %v2982, 0.0
      %3064 = vadd.xlane.f32.xlu0 %v3063
      %v3065 = vpop.xlane.xlu0 %3064
      %v3066 = vsel %vm2816, %v2984, 0.0
      %3067 = vadd.xlane.f32.xlu0 %v3066
      %v3068 = vpop.xlane.xlu0 %3067
      %v3069 = vsel %vm2816, %v2986, 0.0
      %3070 = vadd.xlane.f32.xlu0 %v3069
      %v3071 = vpop.xlane.xlu0 %3070
      %v3072 = vsel %vm2816, %v2988, 0.0
      %3073 = vadd.xlane.f32.xlu0 %v3072
      %v3074 = vpop.xlane.xlu0 %3073
      %v3075 = vsel %vm2816, %v2990, 0.0
      %3076 = vadd.xlane.f32.xlu0 %v3075
      %v3077 = vpop.xlane.xlu0 %3076
      %v3078 = vsel %vm2816, %v2992, 0.0
      %3079 = vadd.xlane.f32.xlu0 %v3078
      %v3080 = vpop.xlane.xlu0 %3079
      %v3081 = vsel %vm2816, %v2994, 0.0
      %3082 = vadd.xlane.f32.xlu0 %v3081
      %v3083 = vpop.xlane.xlu0 %3082
      %v3084 = vsel %vm2816, %v2996, 0.0
      %3085 = vadd.xlane.f32.xlu0 %v3084
      %v3086 = vpop.xlane.xlu0 %3085
      %v3087 = vsel %vm2816, %v2998, 0.0
      %3088 = vadd.xlane.f32.xlu0 %v3087
      %v3089 = vpop.xlane.xlu0 %3088
      %v3090 = vsel %vm2816, %v3000, 0.0
      %3091 = vadd.xlane.f32.xlu0 %v3090
      %v3092 = vpop.xlane.xlu0 %3091
      %v3093 = vsel %vm2816, %v3002, 0.0
      %3094 = vadd.xlane.f32.xlu0 %v3093
      %v3095 = vpop.xlane.xlu0 %3094
      %v3096 = vsel %vm2816, %v3004, 0.0
      %3097 = vadd.xlane.f32.xlu0 %v3096
      %v3098 = vpop.xlane.xlu0 %3097
      %v3099 = vsel %vm2816, %v3006, 0.0
      %3100 = vadd.xlane.f32.xlu0 %v3099
      %v3101 = vpop.xlane.xlu0 %3100
      %v3102 = vsel %vm2816, %v3008, 0.0
      %3103 = vadd.xlane.f32.xlu0 %v3102
      %v3104 = vpop.xlane.xlu0 %3103
      %v3105 = vrcp.pop %v3011
      %v3106 = vrcp.pop %v3014
      %v3107 = vrcp.pop %v3017
      %v3108 = vrcp.pop %v3020
      %v3109 = vrcp.pop %v3023
      %v3110 = vrcp.pop %v3026
      %v3111 = vrcp.pop %v3029
      %v3112 = vrcp.pop %v3032
      %v3113 = vrcp.pop %v3035
      %v3114 = vrcp.pop %v3038
      %v3115 = vrcp.pop %v3041
      %v3116 = vrcp.pop %v3044
      %v3117 = vrcp.pop %v3047
      %v3118 = vrcp.pop %v3050
      %v3119 = vrcp.pop %v3053
      %v3120 = vrcp.pop %v3056
      %v3121 = vrcp.pop %v3059
      %v3122 = vrcp.pop %v3062
      %v3123 = vrcp.pop %v3065
      %v3124 = vrcp.pop %v3068
      %v3125 = vrcp.pop %v3071
      %v3126 = vrcp.pop %v3074
      %v3127 = vrcp.pop %v3077
      %v3128 = vrcp.pop %v3080
      %v3129 = vrcp.pop %v3083
      %v3130 = vrcp.pop %v3086
      %v3131 = vrcp.pop %v3089
      %v3132 = vrcp.pop %v3092
      %v3133 = vrcp.pop %v3095
      %v3134 = vrcp.pop %v3098
      %v3135 = vrcp.pop %v3101
      %v3136 = vrcp.pop %v3104
      %v3137 = vmul.f32 %v2946, %v3105
      %v3138 = vmul.f32 %v2948, %v3106
      %v3139 = vmul.f32 %v2950, %v3107
      %v3140 = vmul.f32 %v2952, %v3108
      %v3141 = vmul.f32 %v2954, %v3109
      %v3142 = vmul.f32 %v2956, %v3110
      %v3143 = vmul.f32 %v2958, %v3111
      %v3144 = vmul.f32 %v2960, %v3112
      %v3145 = vmul.f32 %v2962, %v3113
      %v3146 = vmul.f32 %v2964, %v3114
      %v3147 = vmul.f32 %v2966, %v3115
      %v3148 = vmul.f32 %v2968, %v3116
      %v3149 = vmul.f32 %v2970, %v3117
      %v3150 = vmul.f32 %v2972, %v3118
      %v3151 = vmul.f32 %v2974, %v3119
      %v3152 = vmul.f32 %v2976, %v3120
      %v3153 = vmul.f32 %v2978, %v3121
      %v3154 = vmul.f32 %v2980, %v3122
      %v3155 = vmul.f32 %v2982, %v3123
      %v3156 = vmul.f32 %v2984, %v3124
      %v3157 = vmul.f32 %v2986, %v3125
      %v3158 = vmul.f32 %v2988, %v3126
      %v3159 = vmul.f32 %v2990, %v3127
      %v3160 = vmul.f32 %v2992, %v3128
      %v3161 = vmul.f32 %v2994, %v3129
      %v3162 = vmul.f32 %v2996, %v3130
      %v3163 = vmul.f32 %v2998, %v3131
      %v3164 = vmul.f32 %v3000, %v3132
      %v3165 = vmul.f32 %v3002, %v3133
      %v3166 = vmul.f32 %v3004, %v3134
      %v3167 = vmul.f32 %v3006, %v3135
      %v3168 = vmul.f32 %v3008, %v3136
      %v3169 = vpack.c.bf16 %v3138, %v3137
      %v3170 = vpack.c.bf16 %v3140, %v3139
      %v3171 = vpack.c.bf16 %v3142, %v3141
      %v3172 = vpack.c.bf16 %v3144, %v3143
      %v3173 = vpack.c.bf16 %v3146, %v3145
      %v3174 = vpack.c.bf16 %v3148, %v3147
      %v3175 = vpack.c.bf16 %v3150, %v3149
      %v3176 = vpack.c.bf16 %v3152, %v3151
      %v3177 = vpack.c.bf16 %v3154, %v3153
      %v3178 = vpack.c.bf16 %v3156, %v3155
      %v3179 = vpack.c.bf16 %v3158, %v3157
      %v3180 = vpack.c.bf16 %v3160, %v3159
      %v3181 = vpack.c.bf16 %v3162, %v3161
      %v3182 = vpack.c.bf16 %v3164, %v3163
      %v3183 = vpack.c.bf16 %v3166, %v3165
      %v3184 = vpack.c.bf16 %v3168, %v3167
      %v3187 = vunpack.c.l.b16 %v375
      %v3188 = vunpack.c.l.b16 %v376
      %v3189 = vpack.c.b16 %v3188, %v3187
      %v3192 = vsel %vm2816, %v3169, 0
      %3194 = vmatprep.subr.bf16.mxu0 0
      %3195 = vmatpush1.bf16.msra.mxu0 %v3189
      %3196 = vmatprep.subr.bf16.mxu0 0
      %3197 = vmatpush1.bf16.msra.mxu0 0
      %3198 = vmatprep.subr.bf16.mxu0 0
      %3199 = vmatpush1.bf16.msra.mxu0 0
      %3200 = vmatprep.subr.bf16.mxu0 0
      %3201 = vmatpush1.bf16.msra.mxu0 0
      %3202 = vmatprep.subr.bf16.mxu0 0
      %3203 = vmatpush1.bf16.msra.mxu0 0
      %3204 = vmatprep.subr.bf16.mxu0 0
      %3205 = vmatpush1.bf16.msra.mxu0 0
      %3206 = vmatprep.subr.bf16.mxu0 0
      %3207 = vmatpush1.bf16.msra.mxu0 0
      %3208 = vmatprep.subr.bf16.mxu0 0
      %3209 = vmatpush1.bf16.msra.mxu0 0
      %3210 = vmatprep.subr.bf16.mxu0 0
      %3211 = vmatpush1.bf16.msra.mxu0 0
      %3212 = vmatprep.subr.bf16.mxu0 0
      %3213 = vmatpush1.bf16.msra.mxu0 0
      %3214 = vmatprep.subr.bf16.mxu0 0
      %3215 = vmatpush1.bf16.msra.mxu0 0
      %3216 = vmatprep.subr.bf16.mxu0 0
      %3217 = vmatpush1.bf16.msra.mxu0 0
      %3218 = vmatprep.subr.bf16.mxu0 0
      %3219 = vmatpush1.bf16.msra.mxu0 0
      %3220 = vmatprep.subr.bf16.mxu0 0
      %3221 = vmatpush1.bf16.msra.mxu0 0
      %3222 = vmatprep.subr.bf16.mxu0 0
      %3223 = vmatpush1.bf16.msra.mxu0 0
      %3224 = vmatprep.subr.bf16.mxu0 0
      %3225 = vmatpush1.bf16.msra.mxu0 0
      %3226 = vmatprep.mubr.bf16.mxu0 0
      %3227 = vmatmul.mubr.bf16.gmra.mrb[0].mxu0 %v3192
      %v3228 = vpop.f32.mrb[0].mxu0
      %v3229 = vadd.f32 0.0, %v3228
      %v3230 = vpop.f32.mrb[0].mxu0
      %v3231 = vpop.f32.mrb[0].mxu0
      %v3232 = vadd.f32 0.0, %v3231
      %v3233 = vpop.f32.mrb[0].mxu0
      %3234 = vdwg.mxu0
      %v3237 = vunpack.c.l.b16 %v377
      %v3238 = vunpack.c.l.b16 %v378
      %v3239 = vpack.c.b16 %v3238, %v3237
      %v3242 = vsel %vm2816, %v3170, 0
      %3244 = vmatprep.subr.bf16.mxu0 0
      %3245 = vmatpush1.bf16.msra.mxu0 %v3239
      %3246 = vmatprep.subr.bf16.mxu0 0
      %3247 = vmatpush1.bf16.msra.mxu0 0
      %3248 = vmatprep.subr.bf16.mxu0 0
      %3249 = vmatpush1.bf16.msra.mxu0 0
      %3250 = vmatprep.subr.bf16.mxu0 0
      %3251 = vmatpush1.bf16.msra.mxu0 0
      %3252 = vmatprep.subr.bf16.mxu0 0
      %3253 = vmatpush1.bf16.msra.mxu0 0
      %3254 = vmatprep.subr.bf16.mxu0 0
      %3255 = vmatpush1.bf16.msra.mxu0 0
      %3256 = vmatprep.subr.bf16.mxu0 0
      %3257 = vmatpush1.bf16.msra.mxu0 0
      %3258 = vmatprep.subr.bf16.mxu0 0
      %3259 = vmatpush1.bf16.msra.mxu0 0
      %3260 = vmatprep.subr.bf16.mxu0 0
      %3261 = vmatpush1.bf16.msra.mxu0 0
      %3262 = vmatprep.subr.bf16.mxu0 0
      %3263 = vmatpush1.bf16.msra.mxu0 0
      %3264 = vmatprep.subr.bf16.mxu0 0
      %3265 = vmatpush1.bf16.msra.mxu0 0
      %3266 = vmatprep.subr.bf16.mxu0 0
      %3267 = vmatpush1.bf16.msra.mxu0 0
      %3268 = vmatprep.subr.bf16.mxu0 0
      %3269 = vmatpush1.bf16.msra.mxu0 0
      %3270 = vmatprep.subr.bf16.mxu0 0
      %3271 = vmatpush1.bf16.msra.mxu0 0
      %3272 = vmatprep.subr.bf16.mxu0 0
      %3273 = vmatpush1.bf16.msra.mxu0 0
      %3274 = vmatprep.subr.bf16.mxu0 0
      %3275 = vmatpush1.bf16.msra.mxu0 0
      %3276 = vmatprep.mubr.bf16.mxu0 0
      %3277 = vmatmul.mubr.bf16.gmra.mrb[0].mxu0 %v3242
      %v3278 = vpop.f32.mrb[0].mxu0
      %v3279 = vadd.f32 0.0, %v3278
      %v3280 = vpop.f32.mrb[0].mxu0
      %v3281 = vpop.f32.mrb[0].mxu0
      %v3282 = vadd.f32 0.0, %v3281
      %v3283 = vpop.f32.mrb[0].mxu0
      %3284 = vdwg.mxu0
      %v3287 = vunpack.c.l.b16 %v379
      %v3288 = vunpack.c.l.b16 %v380
      %v3289 = vpack.c.b16 %v3288, %v3287
      %v3292 = vsel %vm2816, %v3171, 0
      %3294 = vmatprep.subr.bf16.mxu0 0
      %3295 = vmatpush1.bf16.msra.mxu0 %v3289
      %3296 = vmatprep.subr.bf16.mxu0 0
      %3297 = vmatpush1.bf16.msra.mxu0 0
      %3298 = vmatprep.subr.bf16.mxu0 0
      %3299 = vmatpush1.bf16.msra.mxu0 0
      %3300 = vmatprep.subr.bf16.mxu0 0
      %3301 = vmatpush1.bf16.msra.mxu0 0
      %3302 = vmatprep.subr.bf16.mxu0 0
      %3303 = vmatpush1.bf16.msra.mxu0 0
      %3304 = vmatprep.subr.bf16.mxu0 0
      %3305 = vmatpush1.bf16.msra.mxu0 0
      %3306 = vmatprep.subr.bf16.mxu0 0
      %3307 = vmatpush1.bf16.msra.mxu0 0
      %3308 = vmatprep.subr.bf16.mxu0 0
      %3309 = vmatpush1.bf16.msra.mxu0 0
      %3310 = vmatprep.subr.bf16.mxu0 0
      %3311 = vmatpush1.bf16.msra.mxu0 0
      %3312 = vmatprep.subr.bf16.mxu0 0
      %3313 = vmatpush1.bf16.msra.mxu0 0
      %3314 = vmatprep.subr.bf16.mxu0 0
      %3315 = vmatpush1.bf16.msra.mxu0 0
      %3316 = vmatprep.subr.bf16.mxu0 0
      %3317 = vmatpush1.bf16.msra.mxu0 0
      %3318 = vmatprep.subr.bf16.mxu0 0
      %3319 = vmatpush1.bf16.msra.mxu0 0
      %3320 = vmatprep.subr.bf16.mxu0 0
      %3321 = vmatpush1.bf16.msra.mxu0 0
      %3322 = vmatprep.subr.bf16.mxu0 0
      %3323 = vmatpush1.bf16.msra.mxu0 0
      %3324 = vmatprep.subr.bf16.mxu0 0
      %3325 = vmatpush1.bf16.msra.mxu0 0
      %3326 = vmatprep.mubr.bf16.mxu0 0
      %3327 = vmatmul.mubr.bf16.gmra.mrb[0].mxu0 %v3292
      %v3328 = vpop.f32.mrb[0].mxu0
      %v3329 = vadd.f32 0.0, %v3328
      %v3330 = vpop.f32.mrb[0].mxu0
      %v3331 = vpop.f32.mrb[0].mxu0
      %v3332 = vadd.f32 0.0, %v3331
      %v3333 = vpop.f32.mrb[0].mxu0
      %3334 = vdwg.mxu0
      %v3337 = vunpack.c.l.b16 %v381
      %v3338 = vunpack.c.l.b16 %v382
      %v3339 = vpack.c.b16 %v3338, %v3337
      %v3342 = vsel %vm2816, %v3172, 0
      %3344 = vmatprep.subr.bf16.mxu0 0
      %3345 = vmatpush1.bf16.msra.mxu0 %v3339
      %3346 = vmatprep.subr.bf16.mxu0 0
      %3347 = vmatpush1.bf16.msra.mxu0 0
      %3348 = vmatprep.subr.bf16.mxu0 0
      %3349 = vmatpush1.bf16.msra.mxu0 0
      %3350 = vmatprep.subr.bf16.mxu0 0
      %3351 = vmatpush1.bf16.msra.mxu0 0
      %3352 = vmatprep.subr.bf16.mxu0 0
      %3353 = vmatpush1.bf16.msra.mxu0 0
      %3354 = vmatprep.subr.bf16.mxu0 0
      %3355 = vmatpush1.bf16.msra.mxu0 0
      %3356 = vmatprep.subr.bf16.mxu0 0
      %3357 = vmatpush1.bf16.msra.mxu0 0
      %3358 = vmatprep.subr.bf16.mxu0 0
      %3359 = vmatpush1.bf16.msra.mxu0 0
      %3360 = vmatprep.subr.bf16.mxu0 0
      %3361 = vmatpush1.bf16.msra.mxu0 0
      %3362 = vmatprep.subr.bf16.mxu0 0
      %3363 = vmatpush1.bf16.msra.mxu0 0
      %3364 = vmatprep.subr.bf16.mxu0 0
      %3365 = vmatpush1.bf16.msra.mxu0 0
      %3366 = vmatprep.subr.bf16.mxu0 0
      %3367 = vmatpush1.bf16.msra.mxu0 0
      %3368 = vmatprep.subr.bf16.mxu0 0
      %3369 = vmatpush1.bf16.msra.mxu0 0
      %3370 = vmatprep.subr.bf16.mxu0 0
      %3371 = vmatpush1.bf16.msra.mxu0 0
      %3372 = vmatprep.subr.bf16.mxu0 0
      %3373 = vmatpush1.bf16.msra.mxu0 0
      %3374 = vmatprep.subr.bf16.mxu0 0
      %3375 = vmatpush1.bf16.msra.mxu0 0
      %3376 = vmatprep.mubr.bf16.mxu0 0
      %3377 = vmatmul.mubr.bf16.gmra.mrb[0].mxu0 %v3342
      %v3378 = vpop.f32.mrb[0].mxu0
      %v3379 = vadd.f32 0.0, %v3378
      %v3380 = vpop.f32.mrb[0].mxu0
      %v3381 = vpop.f32.mrb[0].mxu0
      %v3382 = vadd.f32 0.0, %v3381
      %v3383 = vpop.f32.mrb[0].mxu0
      %3384 = vdwg.mxu0
      %v3387 = vunpack.c.l.b16 %v383
      %v3388 = vunpack.c.l.b16 %v384
      %v3389 = vpack.c.b16 %v3388, %v3387
      %v3392 = vsel %vm2816, %v3173, 0
      %3394 = vmatprep.subr.bf16.mxu0 0
      %3395 = vmatpush1.bf16.msra.mxu0 %v3389
      %3396 = vmatprep.subr.bf16.mxu0 0
      %3397 = vmatpush1.bf16.msra.mxu0 0
      %3398 = vmatprep.subr.bf16.mxu0 0
      %3399 = vmatpush1.bf16.msra.mxu0 0
      %3400 = vmatprep.subr.bf16.mxu0 0
      %3401 = vmatpush1.bf16.msra.mxu0 0
      %3402 = vmatprep.subr.bf16.mxu0 0
      %3403 = vmatpush1.bf16.msra.mxu0 0
      %3404 = vmatprep.subr.bf16.mxu0 0
      %3405 = vmatpush1.bf16.msra.mxu0 0
      %3406 = vmatprep.subr.bf16.mxu0 0
      %3407 = vmatpush1.bf16.msra.mxu0 0
      %3408 = vmatprep.subr.bf16.mxu0 0
      %3409 = vmatpush1.bf16.msra.mxu0 0
      %3410 = vmatprep.subr.bf16.mxu0 0
      %3411 = vmatpush1.bf16.msra.mxu0 0
      %3412 = vmatprep.subr.bf16.mxu0 0
      %3413 = vmatpush1.bf16.msra.mxu0 0
      %3414 = vmatprep.subr.bf16.mxu0 0
      %3415 = vmatpush1.bf16.msra.mxu0 0
      %3416 = vmatprep.subr.bf16.mxu0 0
      %3417 = vmatpush1.bf16.msra.mxu0 0
      %3418 = vmatprep.subr.bf16.mxu0 0
      %3419 = vmatpush1.bf16.msra.mxu0 0
      %3420 = vmatprep.subr.bf16.mxu0 0
      %3421 = vmatpush1.bf16.msra.mxu0 0
      %3422 = vmatprep.subr.bf16.mxu0 0
      %3423 = vmatpush1.bf16.msra.mxu0 0
      %3424 = vmatprep.subr.bf16.mxu0 0
      %3425 = vmatpush1.bf16.msra.mxu0 0
      %3426 = vmatprep.mubr.bf16.mxu0 0
      %3427 = vmatmul.mubr.bf16.gmra.mrb[0].mxu0 %v3392
      %v3428 = vpop.f32.mrb[0].mxu0
      %v3429 = vadd.f32 0.0, %v3428
      %v3430 = vpop.f32.mrb[0].mxu0
      %v3431 = vpop.f32.mrb[0].mxu0
      %v3432 = vadd.f32 0.0, %v3431
      %v3433 = vpop.f32.mrb[0].mxu0
      %3434 = vdwg.mxu0
      %v3437 = vunpack.c.l.b16 %v385
      %v3438 = vunpack.c.l.b16 %v386
      %v3439 = vpack.c.b16 %v3438, %v3437
      %v3442 = vsel %vm2816, %v3174, 0
      %3444 = vmatprep.subr.bf16.mxu0 0
      %3445 = vmatpush1.bf16.msra.mxu0 %v3439
      %3446 = vmatprep.subr.bf16.mxu0 0
      %3447 = vmatpush1.bf16.msra.mxu0 0
      %3448 = vmatprep.subr.bf16.mxu0 0
      %3449 = vmatpush1.bf16.msra.mxu0 0
      %3450 = vmatprep.subr.bf16.mxu0 0
      %3451 = vmatpush1.bf16.msra.mxu0 0
      %3452 = vmatprep.subr.bf16.mxu0 0
      %3453 = vmatpush1.bf16.msra.mxu0 0
      %3454 = vmatprep.subr.bf16.mxu0 0
      %3455 = vmatpush1.bf16.msra.mxu0 0
      %3456 = vmatprep.subr.bf16.mxu0 0
      %3457 = vmatpush1.bf16.msra.mxu0 0
      %3458 = vmatprep.subr.bf16.mxu0 0
      %3459 = vmatpush1.bf16.msra.mxu0 0
      %3460 = vmatprep.subr.bf16.mxu0 0
      %3461 = vmatpush1.bf16.msra.mxu0 0
      %3462 = vmatprep.subr.bf16.mxu0 0
      %3463 = vmatpush1.bf16.msra.mxu0 0
      %3464 = vmatprep.subr.bf16.mxu0 0
      %3465 = vmatpush1.bf16.msra.mxu0 0
      %3466 = vmatprep.subr.bf16.mxu0 0
      %3467 = vmatpush1.bf16.msra.mxu0 0
      %3468 = vmatprep.subr.bf16.mxu0 0
      %3469 = vmatpush1.bf16.msra.mxu0 0
      %3470 = vmatprep.subr.bf16.mxu0 0
      %3471 = vmatpush1.bf16.msra.mxu0 0
      %3472 = vmatprep.subr.bf16.mxu0 0
      %3473 = vmatpush1.bf16.msra.mxu0 0
      %3474 = vmatprep.subr.bf16.mxu0 0
      %3475 = vmatpush1.bf16.msra.mxu0 0
      %3476 = vmatprep.mubr.bf16.mxu0 0
      %3477 = vmatmul.mubr.bf16.gmra.mrb[0].mxu0 %v3442
      %v3478 = vpop.f32.mrb[0].mxu0
      %v3479 = vadd.f32 0.0, %v3478
      %v3480 = vpop.f32.mrb[0].mxu0
      %v3481 = vpop.f32.mrb[0].mxu0
      %v3482 = vadd.f32 0.0, %v3481
      %v3483 = vpop.f32.mrb[0].mxu0
      %3484 = vdwg.mxu0
      %v3487 = vunpack.c.l.b16 %v387
      %v3488 = vunpack.c.l.b16 %v388
      %v3489 = vpack.c.b16 %v3488, %v3487
      %v3492 = vsel %vm2816, %v3175, 0
      %3494 = vmatprep.subr.bf16.mxu0 0
      %3495 = vmatpush1.bf16.msra.mxu0 %v3489
      %3496 = vmatprep.subr.bf16.mxu0 0
      %3497 = vmatpush1.bf16.msra.mxu0 0
      %3498 = vmatprep.subr.bf16.mxu0 0
      %3499 = vmatpush1.bf16.msra.mxu0 0
      %3500 = vmatprep.subr.bf16.mxu0 0
      %3501 = vmatpush1.bf16.msra.mxu0 0
      %3502 = vmatprep.subr.bf16.mxu0 0
      %3503 = vmatpush1.bf16.msra.mxu0 0
      %3504 = vmatprep.subr.bf16.mxu0 0
      %3505 = vmatpush1.bf16.msra.mxu0 0
      %3506 = vmatprep.subr.bf16.mxu0 0
      %3507 = vmatpush1.bf16.msra.mxu0 0
      %3508 = vmatprep.subr.bf16.mxu0 0
      %3509 = vmatpush1.bf16.msra.mxu0 0
      %3510 = vmatprep.subr.bf16.mxu0 0
      %3511 = vmatpush1.bf16.msra.mxu0 0
      %3512 = vmatprep.subr.bf16.mxu0 0
      %3513 = vmatpush1.bf16.msra.mxu0 0
      %3514 = vmatprep.subr.bf16.mxu0 0
      %3515 = vmatpush1.bf16.msra.mxu0 0
      %3516 = vmatprep.subr.bf16.mxu0 0
      %3517 = vmatpush1.bf16.msra.mxu0 0
      %3518 = vmatprep.subr.bf16.mxu0 0
      %3519 = vmatpush1.bf16.msra.mxu0 0
      %3520 = vmatprep.subr.bf16.mxu0 0
      %3521 = vmatpush1.bf16.msra.mxu0 0
      %3522 = vmatprep.subr.bf16.mxu0 0
      %3523 = vmatpush1.bf16.msra.mxu0 0
      %3524 = vmatprep.subr.bf16.mxu0 0
      %3525 = vmatpush1.bf16.msra.mxu0 0
      %3526 = vmatprep.mubr.bf16.mxu0 0
      %3527 = vmatmul.mubr.bf16.gmra.mrb[0].mxu0 %v3492
      %v3528 = vpop.f32.mrb[0].mxu0
      %v3529 = vadd.f32 0.0, %v3528
      %v3530 = vpop.f32.mrb[0].mxu0
      %v3531 = vpop.f32.mrb[0].mxu0
      %v3532 = vadd.f32 0.0, %v3531
      %v3533 = vpop.f32.mrb[0].mxu0
      %3534 = vdwg.mxu0
      %v3537 = vunpack.c.l.b16 %v389
      %v3538 = vunpack.c.l.b16 %v390
      %v3539 = vpack.c.b16 %v3538, %v3537
      %v3542 = vsel %vm2816, %v3176, 0
      %3544 = vmatprep.subr.bf16.mxu0 0
      %3545 = vmatpush1.bf16.msra.mxu0 %v3539
      %3546 = vmatprep.subr.bf16.mxu0 0
      %3547 = vmatpush1.bf16.msra.mxu0 0
      %3548 = vmatprep.subr.bf16.mxu0 0
      %3549 = vmatpush1.bf16.msra.mxu0 0
      %3550 = vmatprep.subr.bf16.mxu0 0
      %3551 = vmatpush1.bf16.msra.mxu0 0
      %3552 = vmatprep.subr.bf16.mxu0 0
      %3553 = vmatpush1.bf16.msra.mxu0 0
      %3554 = vmatprep.subr.bf16.mxu0 0
      %3555 = vmatpush1.bf16.msra.mxu0 0
      %3556 = vmatprep.subr.bf16.mxu0 0
      %3557 = vmatpush1.bf16.msra.mxu0 0
      %3558 = vmatprep.subr.bf16.mxu0 0
      %3559 = vmatpush1.bf16.msra.mxu0 0
      %3560 = vmatprep.subr.bf16.mxu0 0
      %3561 = vmatpush1.bf16.msra.mxu0 0
      %3562 = vmatprep.subr.bf16.mxu0 0
      %3563 = vmatpush1.bf16.msra.mxu0 0
      %3564 = vmatprep.subr.bf16.mxu0 0
      %3565 = vmatpush1.bf16.msra.mxu0 0
      %3566 = vmatprep.subr.bf16.mxu0 0
      %3567 = vmatpush1.bf16.msra.mxu0 0
      %3568 = vmatprep.subr.bf16.mxu0 0
      %3569 = vmatpush1.bf16.msra.mxu0 0
      %3570 = vmatprep.subr.bf16.mxu0 0
      %3571 = vmatpush1.bf16.msra.mxu0 0
      %3572 = vmatprep.subr.bf16.mxu0 0
      %3573 = vmatpush1.bf16.msra.mxu0 0
      %3574 = vmatprep.subr.bf16.mxu0 0
      %3575 = vmatpush1.bf16.msra.mxu0 0
      %3576 = vmatprep.mubr.bf16.mxu0 0
      %3577 = vmatmul.mubr.bf16.gmra.mrb[0].mxu0 %v3542
      %v3578 = vpop.f32.mrb[0].mxu0
      %v3579 = vadd.f32 0.0, %v3578
      %v3580 = vpop.f32.mrb[0].mxu0
      %v3581 = vpop.f32.mrb[0].mxu0
      %v3582 = vadd.f32 0.0, %v3581
      %v3583 = vpop.f32.mrb[0].mxu0
      %3584 = vdwg.mxu0
      %v3587 = vunpack.c.l.b16 %v391
      %v3588 = vunpack.c.l.b16 %v392
      %v3589 = vpack.c.b16 %v3588, %v3587
      %v3592 = vsel %vm2816, %v3177, 0
      %3594 = vmatprep.subr.bf16.mxu0 0
      %3595 = vmatpush1.bf16.msra.mxu0 %v3589
      %3596 = vmatprep.subr.bf16.mxu0 0
      %3597 = vmatpush1.bf16.msra.mxu0 0
      %3598 = vmatprep.subr.bf16.mxu0 0
      %3599 = vmatpush1.bf16.msra.mxu0 0
      %3600 = vmatprep.subr.bf16.mxu0 0
      %3601 = vmatpush1.bf16.msra.mxu0 0
      %3602 = vmatprep.subr.bf16.mxu0 0
      %3603 = vmatpush1.bf16.msra.mxu0 0
      %3604 = vmatprep.subr.bf16.mxu0 0
      %3605 = vmatpush1.bf16.msra.mxu0 0
      %3606 = vmatprep.subr.bf16.mxu0 0
      %3607 = vmatpush1.bf16.msra.mxu0 0
      %3608 = vmatprep.subr.bf16.mxu0 0
      %3609 = vmatpush1.bf16.msra.mxu0 0
      %3610 = vmatprep.subr.bf16.mxu0 0
      %3611 = vmatpush1.bf16.msra.mxu0 0
      %3612 = vmatprep.subr.bf16.mxu0 0
      %3613 = vmatpush1.bf16.msra.mxu0 0
      %3614 = vmatprep.subr.bf16.mxu0 0
      %3615 = vmatpush1.bf16.msra.mxu0 0
      %3616 = vmatprep.subr.bf16.mxu0 0
      %3617 = vmatpush1.bf16.msra.mxu0 0
      %3618 = vmatprep.subr.bf16.mxu0 0
      %3619 = vmatpush1.bf16.msra.mxu0 0
      %3620 = vmatprep.subr.bf16.mxu0 0
      %3621 = vmatpush1.bf16.msra.mxu0 0
      %3622 = vmatprep.subr.bf16.mxu0 0
      %3623 = vmatpush1.bf16.msra.mxu0 0
      %3624 = vmatprep.subr.bf16.mxu0 0
      %3625 = vmatpush1.bf16.msra.mxu0 0
      %3626 = vmatprep.mubr.bf16.mxu0 0
      %3627 = vmatmul.mubr.bf16.gmra.mrb[0].mxu0 %v3592
      %v3628 = vpop.f32.mrb[0].mxu0
      %v3629 = vadd.f32 0.0, %v3628
      %v3630 = vpop.f32.mrb[0].mxu0
      %v3631 = vpop.f32.mrb[0].mxu0
      %v3632 = vadd.f32 0.0, %v3631
      %v3633 = vpop.f32.mrb[0].mxu0
      %3634 = vdwg.mxu0
      %v3637 = vunpack.c.l.b16 %v393
      %v3638 = vunpack.c.l.b16 %v394
      %v3639 = vpack.c.b16 %v3638, %v3637
      %v3642 = vsel %vm2816, %v3178, 0
      %3644 = vmatprep.subr.bf16.mxu0 0
      %3645 = vmatpush1.bf16.msra.mxu0 %v3639
      %3646 = vmatprep.subr.bf16.mxu0 0
      %3647 = vmatpush1.bf16.msra.mxu0 0
      %3648 = vmatprep.subr.bf16.mxu0 0
      %3649 = vmatpush1.bf16.msra.mxu0 0
      %3650 = vmatprep.subr.bf16.mxu0 0
      %3651 = vmatpush1.bf16.msra.mxu0 0
      %3652 = vmatprep.subr.bf16.mxu0 0
      %3653 = vmatpush1.bf16.msra.mxu0 0
      %3654 = vmatprep.subr.bf16.mxu0 0
      %3655 = vmatpush1.bf16.msra.mxu0 0
      %3656 = vmatprep.subr.bf16.mxu0 0
      %3657 = vmatpush1.bf16.msra.mxu0 0
      %3658 = vmatprep.subr.bf16.mxu0 0
      %3659 = vmatpush1.bf16.msra.mxu0 0
      %3660 = vmatprep.subr.bf16.mxu0 0
      %3661 = vmatpush1.bf16.msra.mxu0 0
      %3662 = vmatprep.subr.bf16.mxu0 0
      %3663 = vmatpush1.bf16.msra.mxu0 0
      %3664 = vmatprep.subr.bf16.mxu0 0
      %3665 = vmatpush1.bf16.msra.mxu0 0
      %3666 = vmatprep.subr.bf16.mxu0 0
      %3667 = vmatpush1.bf16.msra.mxu0 0
      %3668 = vmatprep.subr.bf16.mxu0 0
      %3669 = vmatpush1.bf16.msra.mxu0 0
      %3670 = vmatprep.subr.bf16.mxu0 0
      %3671 = vmatpush1.bf16.msra.mxu0 0
      %3672 = vmatprep.subr.bf16.mxu0 0
      %3673 = vmatpush1.bf16.msra.mxu0 0
      %3674 = vmatprep.subr.bf16.mxu0 0
      %3675 = vmatpush1.bf16.msra.mxu0 0
      %3676 = vmatprep.mubr.bf16.mxu0 0
      %3677 = vmatmul.mubr.bf16.gmra.mrb[0].mxu0 %v3642
      %v3678 = vpop.f32.mrb[0].mxu0
      %v3679 = vadd.f32 0.0, %v3678
      %v3680 = vpop.f32.mrb[0].mxu0
      %v3681 = vpop.f32.mrb[0].mxu0
      %v3682 = vadd.f32 0.0, %v3681
      %v3683 = vpop.f32.mrb[0].mxu0
      %3684 = vdwg.mxu0
      %v3687 = vunpack.c.l.b16 %v395
      %v3688 = vunpack.c.l.b16 %v396
      %v3689 = vpack.c.b16 %v3688, %v3687
      %v3692 = vsel %vm2816, %v3179, 0
      %3694 = vmatprep.subr.bf16.mxu0 0
      %3695 = vmatpush1.bf16.msra.mxu0 %v3689
      %3696 = vmatprep.subr.bf16.mxu0 0
      %3697 = vmatpush1.bf16.msra.mxu0 0
      %3698 = vmatprep.subr.bf16.mxu0 0
      %3699 = vmatpush1.bf16.msra.mxu0 0
      %3700 = vmatprep.subr.bf16.mxu0 0
      %3701 = vmatpush1.bf16.msra.mxu0 0
      %3702 = vmatprep.subr.bf16.mxu0 0
      %3703 = vmatpush1.bf16.msra.mxu0 0
      %3704 = vmatprep.subr.bf16.mxu0 0
      %3705 = vmatpush1.bf16.msra.mxu0 0
      %3706 = vmatprep.subr.bf16.mxu0 0
      %3707 = vmatpush1.bf16.msra.mxu0 0
      %3708 = vmatprep.subr.bf16.mxu0 0
      %3709 = vmatpush1.bf16.msra.mxu0 0
      %3710 = vmatprep.subr.bf16.mxu0 0
      %3711 = vmatpush1.bf16.msra.mxu0 0
      %3712 = vmatprep.subr.bf16.mxu0 0
      %3713 = vmatpush1.bf16.msra.mxu0 0
      %3714 = vmatprep.subr.bf16.mxu0 0
      %3715 = vmatpush1.bf16.msra.mxu0 0
      %3716 = vmatprep.subr.bf16.mxu0 0
      %3717 = vmatpush1.bf16.msra.mxu0 0
      %3718 = vmatprep.subr.bf16.mxu0 0
      %3719 = vmatpush1.bf16.msra.mxu0 0
      %3720 = vmatprep.subr.bf16.mxu0 0
      %3721 = vmatpush1.bf16.msra.mxu0 0
      %3722 = vmatprep.subr.bf16.mxu0 0
      %3723 = vmatpush1.bf16.msra.mxu0 0
      %3724 = vmatprep.subr.bf16.mxu0 0
      %3725 = vmatpush1.bf16.msra.mxu0 0
      %3726 = vmatprep.mubr.bf16.mxu0 0
      %3727 = vmatmul.mubr.bf16.gmra.mrb[0].mxu0 %v3692
      %v3728 = vpop.f32.mrb[0].mxu0
      %v3729 = vadd.f32 0.0, %v3728
      %v3730 = vpop.f32.mrb[0].mxu0
      %v3731 = vpop.f32.mrb[0].mxu0
      %v3732 = vadd.f32 0.0, %v3731
      %v3733 = vpop.f32.mrb[0].mxu0
      %3734 = vdwg.mxu0
      %v3737 = vunpack.c.l.b16 %v397
      %v3738 = vunpack.c.l.b16 %v398
      %v3739 = vpack.c.b16 %v3738, %v3737
      %v3742 = vsel %vm2816, %v3180, 0
      %3744 = vmatprep.subr.bf16.mxu0 0
      %3745 = vmatpush1.bf16.msra.mxu0 %v3739
      %3746 = vmatprep.subr.bf16.mxu0 0
      %3747 = vmatpush1.bf16.msra.mxu0 0
      %3748 = vmatprep.subr.bf16.mxu0 0
      %3749 = vmatpush1.bf16.msra.mxu0 0
      %3750 = vmatprep.subr.bf16.mxu0 0
      %3751 = vmatpush1.bf16.msra.mxu0 0
      %3752 = vmatprep.subr.bf16.mxu0 0
      %3753 = vmatpush1.bf16.msra.mxu0 0
      %3754 = vmatprep.subr.bf16.mxu0 0
      %3755 = vmatpush1.bf16.msra.mxu0 0
      %3756 = vmatprep.subr.bf16.mxu0 0
      %3757 = vmatpush1.bf16.msra.mxu0 0
      %3758 = vmatprep.subr.bf16.mxu0 0
      %3759 = vmatpush1.bf16.msra.mxu0 0
      %3760 = vmatprep.subr.bf16.mxu0 0
      %3761 = vmatpush1.bf16.msra.mxu0 0
      %3762 = vmatprep.subr.bf16.mxu0 0
      %3763 = vmatpush1.bf16.msra.mxu0 0
      %3764 = vmatprep.subr.bf16.mxu0 0
      %3765 = vmatpush1.bf16.msra.mxu0 0
      %3766 = vmatprep.subr.bf16.mxu0 0
      %3767 = vmatpush1.bf16.msra.mxu0 0
      %3768 = vmatprep.subr.bf16.mxu0 0
      %3769 = vmatpush1.bf16.msra.mxu0 0
      %3770 = vmatprep.subr.bf16.mxu0 0
      %3771 = vmatpush1.bf16.msra.mxu0 0
      %3772 = vmatprep.subr.bf16.mxu0 0
      %3773 = vmatpush1.bf16.msra.mxu0 0
      %3774 = vmatprep.subr.bf16.mxu0 0
      %3775 = vmatpush1.bf16.msra.mxu0 0
      %3776 = vmatprep.mubr.bf16.mxu0 0
      %3777 = vmatmul.mubr.bf16.gmra.mrb[0].mxu0 %v3742
      %v3778 = vpop.f32.mrb[0].mxu0
      %v3779 = vadd.f32 0.0, %v3778
      %v3780 = vpop.f32.mrb[0].mxu0
      %v3781 = vpop.f32.mrb[0].mxu0
      %v3782 = vadd.f32 0.0, %v3781
      %v3783 = vpop.f32.mrb[0].mxu0
      %3784 = vdwg.mxu0
      %v3787 = vunpack.c.l.b16 %v399
      %v3788 = vunpack.c.l.b16 %v400
      %v3789 = vpack.c.b16 %v3788, %v3787
      %v3792 = vsel %vm2816, %v3181, 0
      %3794 = vmatprep.subr.bf16.mxu0 0
      %3795 = vmatpush1.bf16.msra.mxu0 %v3789
      %3796 = vmatprep.subr.bf16.mxu0 0
      %3797 = vmatpush1.bf16.msra.mxu0 0
      %3798 = vmatprep.subr.bf16.mxu0 0
      %3799 = vmatpush1.bf16.msra.mxu0 0
      %3800 = vmatprep.subr.bf16.mxu0 0
      %3801 = vmatpush1.bf16.msra.mxu0 0
      %3802 = vmatprep.subr.bf16.mxu0 0
      %3803 = vmatpush1.bf16.msra.mxu0 0
      %3804 = vmatprep.subr.bf16.mxu0 0
      %3805 = vmatpush1.bf16.msra.mxu0 0
      %3806 = vmatprep.subr.bf16.mxu0 0
      %3807 = vmatpush1.bf16.msra.mxu0 0
      %3808 = vmatprep.subr.bf16.mxu0 0
      %3809 = vmatpush1.bf16.msra.mxu0 0
      %3810 = vmatprep.subr.bf16.mxu0 0
      %3811 = vmatpush1.bf16.msra.mxu0 0
      %3812 = vmatprep.subr.bf16.mxu0 0
      %3813 = vmatpush1.bf16.msra.mxu0 0
      %3814 = vmatprep.subr.bf16.mxu0 0
      %3815 = vmatpush1.bf16.msra.mxu0 0
      %3816 = vmatprep.subr.bf16.mxu0 0
      %3817 = vmatpush1.bf16.msra.mxu0 0
      %3818 = vmatprep.subr.bf16.mxu0 0
      %3819 = vmatpush1.bf16.msra.mxu0 0
      %3820 = vmatprep.subr.bf16.mxu0 0
      %3821 = vmatpush1.bf16.msra.mxu0 0
      %3822 = vmatprep.subr.bf16.mxu0 0
      %3823 = vmatpush1.bf16.msra.mxu0 0
      %3824 = vmatprep.subr.bf16.mxu0 0
      %3825 = vmatpush1.bf16.msra.mxu0 0
      %3826 = vmatprep.mubr.bf16.mxu0 0
      %3827 = vmatmul.mubr.bf16.gmra.mrb[0].mxu0 %v3792
      %v3828 = vpop.f32.mrb[0].mxu0
      %v3829 = vadd.f32 0.0, %v3828
      %v3830 = vpop.f32.mrb[0].mxu0
      %v3831 = vpop.f32.mrb[0].mxu0
      %v3832 = vadd.f32 0.0, %v3831
      %v3833 = vpop.f32.mrb[0].mxu0
      %3834 = vdwg.mxu0
      %v3837 = vunpack.c.l.b16 %v401
      %v3838 = vunpack.c.l.b16 %v402
      %v3839 = vpack.c.b16 %v3838, %v3837
      %v3842 = vsel %vm2816, %v3182, 0
      %3844 = vmatprep.subr.bf16.mxu0 0
      %3845 = vmatpush1.bf16.msra.mxu0 %v3839
      %3846 = vmatprep.subr.bf16.mxu0 0
      %3847 = vmatpush1.bf16.msra.mxu0 0
      %3848 = vmatprep.subr.bf16.mxu0 0
      %3849 = vmatpush1.bf16.msra.mxu0 0
      %3850 = vmatprep.subr.bf16.mxu0 0
      %3851 = vmatpush1.bf16.msra.mxu0 0
      %3852 = vmatprep.subr.bf16.mxu0 0
      %3853 = vmatpush1.bf16.msra.mxu0 0
      %3854 = vmatprep.subr.bf16.mxu0 0
      %3855 = vmatpush1.bf16.msra.mxu0 0
      %3856 = vmatprep.subr.bf16.mxu0 0
      %3857 = vmatpush1.bf16.msra.mxu0 0
      %3858 = vmatprep.subr.bf16.mxu0 0
      %3859 = vmatpush1.bf16.msra.mxu0 0
      %3860 = vmatprep.subr.bf16.mxu0 0
      %3861 = vmatpush1.bf16.msra.mxu0 0
      %3862 = vmatprep.subr.bf16.mxu0 0
      %3863 = vmatpush1.bf16.msra.mxu0 0
      %3864 = vmatprep.subr.bf16.mxu0 0
      %3865 = vmatpush1.bf16.msra.mxu0 0
      %3866 = vmatprep.subr.bf16.mxu0 0
      %3867 = vmatpush1.bf16.msra.mxu0 0
      %3868 = vmatprep.subr.bf16.mxu0 0
      %3869 = vmatpush1.bf16.msra.mxu0 0
      %3870 = vmatprep.subr.bf16.mxu0 0
      %3871 = vmatpush1.bf16.msra.mxu0 0
      %3872 = vmatprep.subr.bf16.mxu0 0
      %3873 = vmatpush1.bf16.msra.mxu0 0
      %3874 = vmatprep.subr.bf16.mxu0 0
      %3875 = vmatpush1.bf16.msra.mxu0 0
      %3876 = vmatprep.mubr.bf16.mxu0 0
      %3877 = vmatmul.mubr.bf16.gmra.mrb[0].mxu0 %v3842
      %v3878 = vpop.f32.mrb[0].mxu0
      %v3879 = vadd.f32 0.0, %v3878
      %v3880 = vpop.f32.mrb[0].mxu0
      %v3881 = vpop.f32.mrb[0].mxu0
      %v3882 = vadd.f32 0.0, %v3881
      %v3883 = vpop.f32.mrb[0].mxu0
      %3884 = vdwg.mxu0
      %v3887 = vunpack.c.l.b16 %v403
      %v3888 = vunpack.c.l.b16 %v404
      %v3889 = vpack.c.b16 %v3888, %v3887
      %v3892 = vsel %vm2816, %v3183, 0
      %3894 = vmatprep.subr.bf16.mxu0 0
      %3895 = vmatpush1.bf16.msra.mxu0 %v3889
      %3896 = vmatprep.subr.bf16.mxu0 0
      %3897 = vmatpush1.bf16.msra.mxu0 0
      %3898 = vmatprep.subr.bf16.mxu0 0
      %3899 = vmatpush1.bf16.msra.mxu0 0
      %3900 = vmatprep.subr.bf16.mxu0 0
      %3901 = vmatpush1.bf16.msra.mxu0 0
      %3902 = vmatprep.subr.bf16.mxu0 0
      %3903 = vmatpush1.bf16.msra.mxu0 0
      %3904 = vmatprep.subr.bf16.mxu0 0
      %3905 = vmatpush1.bf16.msra.mxu0 0
      %3906 = vmatprep.subr.bf16.mxu0 0
      %3907 = vmatpush1.bf16.msra.mxu0 0
      %3908 = vmatprep.subr.bf16.mxu0 0
      %3909 = vmatpush1.bf16.msra.mxu0 0
      %3910 = vmatprep.subr.bf16.mxu0 0
      %3911 = vmatpush1.bf16.msra.mxu0 0
      %3912 = vmatprep.subr.bf16.mxu0 0
      %3913 = vmatpush1.bf16.msra.mxu0 0
      %3914 = vmatprep.subr.bf16.mxu0 0
      %3915 = vmatpush1.bf16.msra.mxu0 0
      %3916 = vmatprep.subr.bf16.mxu0 0
      %3917 = vmatpush1.bf16.msra.mxu0 0
      %3918 = vmatprep.subr.bf16.mxu0 0
      %3919 = vmatpush1.bf16.msra.mxu0 0
      %3920 = vmatprep.subr.bf16.mxu0 0
      %3921 = vmatpush1.bf16.msra.mxu0 0
      %3922 = vmatprep.subr.bf16.mxu0 0
      %3923 = vmatpush1.bf16.msra.mxu0 0
      %3924 = vmatprep.subr.bf16.mxu0 0
      %3925 = vmatpush1.bf16.msra.mxu0 0
      %3926 = vmatprep.mubr.bf16.mxu0 0
      %3927 = vmatmul.mubr.bf16.gmra.mrb[0].mxu0 %v3892
      %v3928 = vpop.f32.mrb[0].mxu0
      %v3929 = vadd.f32 0.0, %v3928
      %v3930 = vpop.f32.mrb[0].mxu0
      %v3931 = vpop.f32.mrb[0].mxu0
      %v3932 = vadd.f32 0.0, %v3931
      %v3933 = vpop.f32.mrb[0].mxu0
      %3934 = vdwg.mxu0
      %v3937 = vunpack.c.l.b16 %v405
      %v3938 = vunpack.c.l.b16 %v406
      %v3939 = vpack.c.b16 %v3938, %v3937
      %v3942 = vsel %vm2816, %v3184, 0
      %3944 = vmatprep.subr.bf16.mxu0 0
      %3945 = vmatpush1.bf16.msra.mxu0 %v3939
      %3946 = vmatprep.subr.bf16.mxu0 0
      %3947 = vmatpush1.bf16.msra.mxu0 0
      %3948 = vmatprep.subr.bf16.mxu0 0
      %3949 = vmatpush1.bf16.msra.mxu0 0
      %3950 = vmatprep.subr.bf16.mxu0 0
      %3951 = vmatpush1.bf16.msra.mxu0 0
      %3952 = vmatprep.subr.bf16.mxu0 0
      %3953 = vmatpush1.bf16.msra.mxu0 0
      %3954 = vmatprep.subr.bf16.mxu0 0
      %3955 = vmatpush1.bf16.msra.mxu0 0
      %3956 = vmatprep.subr.bf16.mxu0 0
      %3957 = vmatpush1.bf16.msra.mxu0 0
      %3958 = vmatprep.subr.bf16.mxu0 0
      %3959 = vmatpush1.bf16.msra.mxu0 0
      %3960 = vmatprep.subr.bf16.mxu0 0
      %3961 = vmatpush1.bf16.msra.mxu0 0
      %3962 = vmatprep.subr.bf16.mxu0 0
      %3963 = vmatpush1.bf16.msra.mxu0 0
      %3964 = vmatprep.subr.bf16.mxu0 0
      %3965 = vmatpush1.bf16.msra.mxu0 0
      %3966 = vmatprep.subr.bf16.mxu0 0
      %3967 = vmatpush1.bf16.msra.mxu0 0
      %3968 = vmatprep.subr.bf16.mxu0 0
      %3969 = vmatpush1.bf16.msra.mxu0 0
      %3970 = vmatprep.subr.bf16.mxu0 0
      %3971 = vmatpush1.bf16.msra.mxu0 0
      %3972 = vmatprep.subr.bf16.mxu0 0
      %3973 = vmatpush1.bf16.msra.mxu0 0
      %3974 = vmatprep.subr.bf16.mxu0 0
      %3975 = vmatpush1.bf16.msra.mxu0 0
      %3976 = vmatprep.mubr.bf16.mxu0 0
      %3977 = vmatmul.mubr.bf16.gmra.mrb[0].mxu0 %v3942
      %v3978 = vpop.f32.mrb[0].mxu0
      %v3979 = vadd.f32 0.0, %v3978
      %v3980 = vpop.f32.mrb[0].mxu0
      %v3981 = vpop.f32.mrb[0].mxu0
      %v3982 = vadd.f32 0.0, %v3981
      %v3983 = vpop.f32.mrb[0].mxu0
      %3984 = vdwg.mxu0
      %v3985 = vpack.c.bf16 %v3232, %v3229
      %v3986 = vpack.c.bf16 %v3282, %v3279
      %v3987 = vpack.c.bf16 %v3332, %v3329
      %v3988 = vpack.c.bf16 %v3382, %v3379
      %v3989 = vpack.c.bf16 %v3432, %v3429
      %v3990 = vpack.c.bf16 %v3482, %v3479
      %v3991 = vpack.c.bf16 %v3532, %v3529
      %v3992 = vpack.c.bf16 %v3582, %v3579
      %v3993 = vpack.c.bf16 %v3632, %v3629
      %v3994 = vpack.c.bf16 %v3682, %v3679
      %v3995 = vpack.c.bf16 %v3732, %v3729
      %v3996 = vpack.c.bf16 %v3782, %v3779
      %v3997 = vpack.c.bf16 %v3832, %v3829
      %v3998 = vpack.c.bf16 %v3882, %v3879
      %v3999 = vpack.c.bf16 %v3932, %v3929
      %v4000 = vpack.c.bf16 %v3982, %v3979
      %v4017 = vunpack.c.l.b16 %v3985
      %v4018 = vunpack.c.h.b16 %v3985
      %v4019 = vunpack.c.l.b16 %v3986
      %v4020 = vunpack.c.h.b16 %v3986
      %v4021 = vunpack.c.l.b16 %v3987
      %v4022 = vunpack.c.h.b16 %v3987
      %v4023 = vunpack.c.l.b16 %v3988
      %v4024 = vunpack.c.h.b16 %v3988
      %v4025 = vunpack.c.l.b16 %v3989
      %v4026 = vunpack.c.h.b16 %v3989
      %v4027 = vunpack.c.l.b16 %v3990
      %v4028 = vunpack.c.h.b16 %v3990
      %v4029 = vunpack.c.l.b16 %v3991
      %v4030 = vunpack.c.h.b16 %v3991
      %v4031 = vunpack.c.l.b16 %v3992
      %v4032 = vunpack.c.h.b16 %v3992
      %v4033 = vunpack.c.l.b16 %v3993
      %v4034 = vunpack.c.h.b16 %v3993
      %v4035 = vunpack.c.l.b16 %v3994
      %v4036 = vunpack.c.h.b16 %v3994
      %v4037 = vunpack.c.l.b16 %v3995
      %v4038 = vunpack.c.h.b16 %v3995
      %v4039 = vunpack.c.l.b16 %v3996
      %v4040 = vunpack.c.h.b16 %v3996
      %v4041 = vunpack.c.l.b16 %v3997
      %v4042 = vunpack.c.h.b16 %v3997
      %v4043 = vunpack.c.l.b16 %v3998
      %v4044 = vunpack.c.h.b16 %v3998
      %v4045 = vunpack.c.l.b16 %v3999
      %v4046 = vunpack.c.h.b16 %v3999
      %v4047 = vunpack.c.l.b16 %v4000
      %v4048 = vunpack.c.h.b16 %v4000
      %v4049 = vpack.c.b16 %v4017, %v4017
      %v4050 = vpack.c.b16 %v4018, %v4018
      %v4051 = vpack.c.b16 %v4019, %v4019
      %v4052 = vpack.c.b16 %v4020, %v4020
      %v4053 = vpack.c.b16 %v4021, %v4021
      %v4054 = vpack.c.b16 %v4022, %v4022
      %v4055 = vpack.c.b16 %v4023, %v4023
      %v4056 = vpack.c.b16 %v4024, %v4024
      %v4057 = vpack.c.b16 %v4025, %v4025
      %v4058 = vpack.c.b16 %v4026, %v4026
      %v4059 = vpack.c.b16 %v4027, %v4027
      %v4060 = vpack.c.b16 %v4028, %v4028
      %v4061 = vpack.c.b16 %v4029, %v4029
      %v4062 = vpack.c.b16 %v4030, %v4030
      %v4063 = vpack.c.b16 %v4031, %v4031
      %v4064 = vpack.c.b16 %v4032, %v4032
      %v4065 = vpack.c.b16 %v4033, %v4033
      %v4066 = vpack.c.b16 %v4034, %v4034
      %v4067 = vpack.c.b16 %v4035, %v4035
      %v4068 = vpack.c.b16 %v4036, %v4036
      %v4069 = vpack.c.b16 %v4037, %v4037
      %v4070 = vpack.c.b16 %v4038, %v4038
      %v4071 = vpack.c.b16 %v4039, %v4039
      %v4072 = vpack.c.b16 %v4040, %v4040
      %v4073 = vpack.c.b16 %v4041, %v4041
      %v4074 = vpack.c.b16 %v4042, %v4042
      %v4075 = vpack.c.b16 %v4043, %v4043
      %v4076 = vpack.c.b16 %v4044, %v4044
      %v4077 = vpack.c.b16 %v4045, %v4045
      %v4078 = vpack.c.b16 %v4046, %v4046
      %v4079 = vpack.c.b16 %v4047, %v4047
      %v4080 = vpack.c.b16 %v4048, %v4048
      %vm4113 = vcmask 60416
      %4114 = vst.msk [vmem:[%s308] sm:$0xf] %vm4113, %v4049
      %4115 = vst.msk [vmem:[%s308 + $0x4] sm:$0xf] %vm4113, %v4050
      %4116 = vst.msk [vmem:[%s308 + $0x8] sm:$0xf] %vm4113, %v4051
      %4117 = vst.msk [vmem:[%s308 + $0xc] sm:$0xf] %vm4113, %v4052
      %4118 = vst.msk [vmem:[%s308 + $0x10] sm:$0xf] %vm4113, %v4053
      %4119 = vst.msk [vmem:[%s308 + $0x14] sm:$0xf] %vm4113, %v4054
      %4120 = vst.msk [vmem:[%s308 + $0x18] sm:$0xf] %vm4113, %v4055
      %4121 = vst.msk [vmem:[%s308 + $0x1c] sm:$0xf] %vm4113, %v4056
      %4122 = vst.msk [vmem:[%s308 + $0x20] sm:$0xf] %vm4113, %v4057
      %4123 = vst.msk [vmem:[%s308 + $0x24] sm:$0xf] %vm4113, %v4058
      %4124 = vst.msk [vmem:[%s308 + $0x28] sm:$0xf] %vm4113, %v4059
      %4125 = vst.msk [vmem:[%s308 + $0x2c] sm:$0xf] %vm4113, %v4060
      %4126 = vst.msk [vmem:[%s308 + $0x30] sm:$0xf] %vm4113, %v4061
      %4127 = vst.msk [vmem:[%s308 + $0x34] sm:$0xf] %vm4113, %v4062
      %4128 = vst.msk [vmem:[%s308 + $0x38] sm:$0xf] %vm4113, %v4063
      %4129 = vst.msk [vmem:[%s308 + $0x3c] sm:$0xf] %vm4113, %v4064
      %4130 = vst.msk [vmem:[%s308 + $0x40] sm:$0xf] %vm4113, %v4065
      %4131 = vst.msk [vmem:[%s308 + $0x44] sm:$0xf] %vm4113, %v4066
      %4132 = vst.msk [vmem:[%s308 + $0x48] sm:$0xf] %vm4113, %v4067
      %4133 = vst.msk [vmem:[%s308 + $0x4c] sm:$0xf] %vm4113, %v4068
      %4134 = vst.msk [vmem:[%s308 + $0x50] sm:$0xf] %vm4113, %v4069
      %4135 = vst.msk [vmem:[%s308 + $0x54] sm:$0xf] %vm4113, %v4070
      %4136 = vst.msk [vmem:[%s308 + $0x58] sm:$0xf] %vm4113, %v4071
      %4137 = vst.msk [vmem:[%s308 + $0x5c] sm:$0xf] %vm4113, %v4072
      %4138 = vst.msk [vmem:[%s308 + $0x60] sm:$0xf] %vm4113, %v4073
      %4139 = vst.msk [vmem:[%s308 + $0x64] sm:$0xf] %vm4113, %v4074
      %4140 = vst.msk [vmem:[%s308 + $0x68] sm:$0xf] %vm4113, %v4075
      %4141 = vst.msk [vmem:[%s308 + $0x6c] sm:$0xf] %vm4113, %v4076
      %4142 = vst.msk [vmem:[%s308 + $0x70] sm:$0xf] %vm4113, %v4077
      %4143 = vst.msk [vmem:[%s308 + $0x74] sm:$0xf] %vm4113, %v4078
      %4144 = vst.msk [vmem:[%s308 + $0x78] sm:$0xf] %vm4113, %v4079
      %4145 = vst.msk [vmem:[%s308 + $0x7c] sm:$0xf] %vm4113, %v4080
      %s4146 = smul.u32 16, %s17
      %p4147 = scmp.lt.s32.totalorder %s4146, 31
      %s4148 = scalar_select %p4147, %s4146, 31
      %s4149 = smul.addr %s4148, 2
      %s4150 = smul.addr %s4149, 4
      %s4151 = scalar_lea.vmem %s6, %s4150
      // Predicated region
      $region45: #{_lambda_.4} parent=43 // pred_check
        %p4152 = pneg %p176
      $region46: #{_lambda_.4} parent=43 // pred_check_branch
        %4154 = sbr.rel (%p4152) target = $region48
      $region47: #{_lambda_.4} parent=43 // pred_region
        %s4155 = smul.u32 16, %s17
      $region48: #{_lambda_.4} parent=43 // pred_fallthru
        _
    $region44: #{_lambda_.4} parent=5 // pred_fallthru
      _
    %p4156 = scmp.le.s32.totalorder 2, %s12
    // Predicated region
    $region49: #{_lambda_.4} parent=5 // pred_check
      %p4157 = pneg %p4156
    $region50: #{_lambda_.4} parent=5 // pred_check_branch
      %4159 = sbr.rel (%p4157) target = $region52
    $region51: #{_lambda_.4} parent=5 // pred_region
      %s4160 = ssub.s32 %s12, 2
      // Predicated region
      $region53: #{_lambda_.4} parent=51 // pred_check
        %p4161 = pneg %p182
      $region54: #{_lambda_.4} parent=51 // pred_check_branch
        %4163 = sbr.rel (%p4161) target = $region56
      $region55: #{_lambda_.4} parent=51 // pred_region
        %s4164 = smul.u32 16, %s18
        %p4165 = scmp.lt.s32.totalorder %s4164, 31
        %s4166 = scalar_select %p4165, %s4164, 31
        %s4167 = smul.addr %s4166, 2
        %s4168 = smul.addr %s4167, 4
        %s4169 = scalar_lea.vmem %s6, %s4168
      $region56: #{_lambda_.4} parent=51 // pred_fallthru
        _
    $region52: #{_lambda_.4} parent=5 // pred_fallthru
      _
  $region6: #{_lambda_.4} parent=0 // loop_footer
    %s16 = sadd.s32 1, %s12
  $region7: #{_lambda_.4} parent=0 // loop_footer_branch
    %11 = sbr.rel target = $region3
  $region8: #{_lambda_.4} parent=0 // loop_exit
    _

</llo_original>
